<compile_context>
chip_gen: v6e
topology: v6e:2x2x1
jax: 0.10.0
libtpu: 0.0.40
codegen_flags: <defaults>
</compile_context>

<pallas_src>
import jax
import jax.numpy as jnp
from jax.experimental import pallas as pl
from jax.experimental.pallas import tpu as pltpu

NUM_CLASSES = 10
LATENT_DIM = 100
IN_DIM = LATENT_DIM + NUM_CLASSES          # 110
IN_DIM_PAD = 128                            # lane-aligned K for first matmul
H1, H2, H3 = 256, 512, 1024
OUT_DIM = 28 * 28                           # 784
OUT_DIM_PAD = 896                           # 7 * 128, lane-dense output slab


def _round_up(x, m):
    return ((x + m - 1) // m) * m


def _generator_mlp_kernel(x_ref,
                          w1_ref, b1_ref,
                          w2_ref, b2_ref,
                          w3_ref, b3_ref,
                          w4_ref, b4_ref,
                          out_ref):
    """Generator MLP hot path: 4 bf16 matmuls (f32 accum) + fused epilogues."""
    x = x_ref[...]                                                     # (TB,128) bf16

    h = jnp.dot(x, w1_ref[...], preferred_element_type=jnp.float32)   # (TB,256) f32
    h = jnp.maximum(h + b1_ref[...], 0.0).astype(jnp.bfloat16)        # ReLU -> bf16

    h = jnp.dot(h, w2_ref[...], preferred_element_type=jnp.float32)   # (TB,512)
    h = jnp.maximum(h + b2_ref[...], 0.0).astype(jnp.bfloat16)

    h = jnp.dot(h, w3_ref[...], preferred_element_type=jnp.float32)   # (TB,1024)
    h = jnp.maximum(h + b3_ref[...], 0.0).astype(jnp.bfloat16)

    h = jnp.dot(h, w4_ref[...], preferred_element_type=jnp.float32)   # (TB,896)
    out_ref[...] = jnp.tanh(h + b4_ref[...]).astype(out_ref.dtype)    # Tanh, bf16 out


def generator_forward(z, labels, params):
    """JAX wrapper: embedding lookup + concat + padding (glue), MLP in Pallas."""
    emb = params["label_emb"]                       # (10, 10) f32
    c = jnp.take(emb, labels, axis=0)               # (B, 10) embedding lookup
    x = jnp.concatenate([z.astype(jnp.float32), c], axis=1)   # (B, 110) f32
    B = x.shape[0]

    # Adaptive batch tile: small B -> tile covers exactly the (16-rounded) batch;
    # large B -> 256-row tiles (fills 256-wide MXU, fewer grid steps).
    TB = max(16, min(256, _round_up(B, 16)))
    B_pad = _round_up(B, TB)

    # Pad features to 128 (K alignment) and batch to a multiple of TB.
    x = jnp.pad(x, ((0, B_pad - B), (0, IN_DIM_PAD - IN_DIM)))
    x = x.astype(jnp.bfloat16)                      # (B_pad, 128) bf16

    n_btiles = B_pad // TB

    def batch_map(i):
        return (i, 0)

    def const_map(i):
        return (0, 0)

    w_spec = lambda shape: pl.BlockSpec(shape, const_map)

    out_flat = pl.pallas_call(
        _generator_mlp_kernel,
        out_shape=jax.ShapeDtypeStruct((B_pad, OUT_DIM_PAD), jnp.bfloat16),
        grid=(n_btiles,),
        in_specs=[
            pl.BlockSpec((TB, IN_DIM_PAD), batch_map),            # x
            w_spec((IN_DIM_PAD, H1)), w_spec((1, H1)),            # w1, b1
            w_spec((H1, H2)),         w_spec((1, H2)),            # w2, b2
            w_spec((H2, H3)),         w_spec((1, H3)),            # w3, b3
            w_spec((H3, OUT_DIM_PAD)), w_spec((1, OUT_DIM_PAD)),  # w4, b4
        ],
        out_specs=pl.BlockSpec((TB, OUT_DIM_PAD), batch_map),
        compiler_params=pltpu.CompilerParams(
            dimension_semantics=("parallel",),
            vmem_limit_bytes=32 << 20,
        ),
    )(
        x,
        params["w1"], params["b1"],
        params["w2"], params["b2"],
        params["w3"], params["b3"],
        params["w4"], params["b4"],
    )

    # Drop batch/feature padding, restore f32, then match PyTorch: .view(-1,1,28,28)
    return out_flat[:B, :OUT_DIM].astype(jnp.float32).reshape(-1, 1, 28, 28)


def generator_reference(z, labels, params):
    """Pure-JAX f32 reference (same bf16-stored weights, f32 activations)."""
    emb = params["label_emb"]
    c = jnp.take(emb, labels, axis=0)
    x = jnp.concatenate([z.astype(jnp.float32), c], axis=1)
    x = jnp.pad(x, ((0, 0), (0, IN_DIM_PAD - IN_DIM)))
    h = jnp.maximum(x @ params["w1"].astype(jnp.float32) + params["b1"], 0.0)
    h = jnp.maximum(h @ params["w2"].astype(jnp.float32) + params["b2"], 0.0)
    h = jnp.maximum(h @ params["w3"].astype(jnp.float32) + params["b3"], 0.0)
    out = jnp.tanh(h @ params["w4"].astype(jnp.float32) + params["b4"])
    return out[:, :OUT_DIM].reshape(-1, 1, 28, 28)


def init_generator_params(key):
    """Deterministic parameter init matching the PyTorch module's shapes.

    Weights are stored as (in_features, out_features) so the kernel can do
    x @ W directly (PyTorch stores (out, in) and does x @ W.T — same math).
    Weights are kept in bf16 (bandwidth win; accumulation is f32 in the
    kernel); biases stay f32 for the fused f32 epilogue.
    """
    keys = jax.random.split(key, 5)

    def lin(k, fan_in, fan_out):
        # PyTorch nn.Linear default: U(-1/sqrt(fan_in), 1/sqrt(fan_in))
        bound = 1.0 / jnp.sqrt(fan_in)
        kw, kb = jax.random.split(k)
        w = jax.random.uniform(kw, (fan_in, fan_out), jnp.float32, -bound, bound)
        b = jax.random.uniform(kb, (1, fan_out), jnp.float32, -bound, bound)
        return w, b

    emb = jax.random.normal(keys[0], (NUM_CLASSES, NUM_CLASSES), jnp.float32)
    w1, b1 = lin(keys[1], IN_DIM, H1)
    w2, b2 = lin(keys[2], H1, H2)
    w3, b3 = lin(keys[3], H2, H3)
    w4, b4 = lin(keys[4], H3, OUT_DIM)

    # Zero-pad w1 rows 110->128 (matches zero-padded input features) and
    # w4/b4 columns 784->896 (lane-dense output; padding sliced off in wrapper).
    w1 = jnp.pad(w1, ((0, IN_DIM_PAD - IN_DIM), (0, 0)))
    w4 = jnp.pad(w4, ((0, 0), (0, OUT_DIM_PAD - OUT_DIM)))
    b4 = jnp.pad(b4, ((0, 0), (0, OUT_DIM_PAD - OUT_DIM)))

    return {
        "label_emb": emb,
        "w1": w1.astype(jnp.bfloat16), "b1": b1,
        "w2": w2.astype(jnp.bfloat16), "b2": b2,
        "w3": w3.astype(jnp.bfloat16), "b3": b3,
        "w4": w4.astype(jnp.bfloat16), "b4": b4,
    }


if __name__ == "__main__":
    key = jax.random.PRNGKey(0)
    k_params, k_z, k_z2 = jax.random.split(key, 3)

    params = init_generator_params(k_params)

    # --- Shipped inference shape: num_samples=5, one fixed class id ---
    num_samples = 5
    class_id = 3
    z = jax.random.normal(k_z, (num_samples, LATENT_DIM), jnp.float32)
    labels = jnp.full((num_samples,), class_id, dtype=jnp.int32)

    imgs = jax.block_until_ready(generator_forward(z, labels, params))
    assert imgs.shape == (num_samples, 1, 28, 28), imgs.shape
    assert imgs.dtype == jnp.float32
    assert bool(jnp.all(jnp.abs(imgs) <= 1.0 + 1e-6))   # Tanh range
    assert bool(jnp.all(jnp.isfinite(imgs)))
    ref = generator_reference(z, labels, params)
    err = float(jnp.max(jnp.abs(imgs - ref)))
    assert err < 0.05, f"small-batch max abs err {err}"

    # --- Throughput path: multi-tile grid (TB=256) with ragged batch padding ---
    B2 = 300
    z2 = jax.random.normal(k_z2, (B2, LATENT_DIM), jnp.float32)
    labels2 = (jnp.arange(B2, dtype=jnp.int32) % NUM_CLASSES)
    imgs2 = jax.block_until_ready(generator_forward(z2, labels2, params))
    assert imgs2.shape == (B2, 1, 28, 28), imgs2.shape
    assert bool(jnp.all(jnp.isfinite(imgs2)))
    ref2 = generator_reference(z2, labels2, params)
    err2 = float(jnp.max(jnp.abs(imgs2 - ref2)))
    assert err2 < 0.05, f"large-batch max abs err {err2}"

    print("KERNEL_OK")
</pallas_src>

<mosaic_0001>
module attributes {stable_mosaic.version = 11 : i64} {
  func.func @_generator_mlp_kernel(%arg0: i32, %arg1: memref<16x128xbf16, #tpu.memory_space<vmem>>, %arg2: memref<128x256xbf16, #tpu.memory_space<vmem>>, %arg3: memref<1x256xf32, #tpu.memory_space<vmem>>, %arg4: memref<256x512xbf16, #tpu.memory_space<vmem>>, %arg5: memref<1x512xf32, #tpu.memory_space<vmem>>, %arg6: memref<512x1024xbf16, #tpu.memory_space<vmem>>, %arg7: memref<1x1024xf32, #tpu.memory_space<vmem>>, %arg8: memref<1024x896xbf16, #tpu.memory_space<vmem>>, %arg9: memref<1x896xf32, #tpu.memory_space<vmem>>, %arg10: memref<16x896xbf16, #tpu.memory_space<vmem>>) attributes {dimension_semantics = [#tpu.dimension_semantics<parallel>], iteration_bounds = array<i64: 1>, scalar_prefetch = 0 : i64, scratch_operands = 0 : i64, tpu.core_type = #tpu.core_type<tc>, window_params = [{transform_indices = @transform_0, window_bounds = array<i64: 16, 128>}, {pipeline_mode = #tpu.pipeline_mode<synchronous>, transform_indices = @transform_1, window_bounds = array<i64: 128, 256>}, {pipeline_mode = #tpu.pipeline_mode<synchronous>, transform_indices = @transform_2, window_bounds = array<i64: 1, 256>}, {pipeline_mode = #tpu.pipeline_mode<synchronous>, transform_indices = @transform_3, window_bounds = array<i64: 256, 512>}, {pipeline_mode = #tpu.pipeline_mode<synchronous>, transform_indices = @transform_4, window_bounds = array<i64: 1, 512>}, {pipeline_mode = #tpu.pipeline_mode<synchronous>, transform_indices = @transform_5, window_bounds = array<i64: 512, 1024>}, {pipeline_mode = #tpu.pipeline_mode<synchronous>, transform_indices = @transform_6, window_bounds = array<i64: 1, 1024>}, {pipeline_mode = #tpu.pipeline_mode<synchronous>, transform_indices = @transform_7, window_bounds = array<i64: 1024, 896>}, {pipeline_mode = #tpu.pipeline_mode<synchronous>, transform_indices = @transform_8, window_bounds = array<i64: 1, 896>}, {transform_indices = @transform_9, window_bounds = array<i64: 16, 896>}]} {
    %c0 = arith.constant 0 : index
    %c0_0 = arith.constant 0 : index
    %0 = vector.load %arg1[%c0, %c0_0] : memref<16x128xbf16, #tpu.memory_space<vmem>>, vector<16x128xbf16>
    %c0_1 = arith.constant 0 : index
    %c0_2 = arith.constant 0 : index
    %1 = vector.load %arg2[%c0_1, %c0_2] : memref<128x256xbf16, #tpu.memory_space<vmem>>, vector<128x256xbf16>
    %cst = arith.constant dense<0.000000e+00> : vector<16x256xf32>
    %2 = tpu.matmul %0, %1, %cst {dimension_numbers = #tpu.dot_dimension_numbers<[1], [0], [0], [1], [0, 0, 1, 1], [], []>} : vector<16x128xbf16>, vector<128x256xbf16>, vector<16x256xf32> -> vector<16x256xf32>
    %c0_3 = arith.constant 0 : index
    %c0_4 = arith.constant 0 : index
    %3 = vector.load %arg3[%c0_3, %c0_4] : memref<1x256xf32, #tpu.memory_space<vmem>>, vector<1x256xf32>
    %4 = vector.broadcast %3 : vector<1x256xf32> to vector<16x256xf32>
    %5 = arith.addf %2, %4 : vector<16x256xf32>
    %cst_5 = arith.constant 0.000000e+00 : f32
    %6 = vector.broadcast %cst_5 : f32 to vector<16x256xf32>
    %7 = arith.maximumf %5, %6 : vector<16x256xf32>
    %8 = arith.truncf %7 : vector<16x256xf32> to vector<16x256xbf16>
    %c0_6 = arith.constant 0 : index
    %c0_7 = arith.constant 0 : index
    %9 = vector.load %arg4[%c0_6, %c0_7] : memref<256x512xbf16, #tpu.memory_space<vmem>>, vector<256x512xbf16>
    %cst_8 = arith.constant dense<0.000000e+00> : vector<16x512xf32>
    %10 = tpu.matmul %8, %9, %cst_8 {dimension_numbers = #tpu.dot_dimension_numbers<[1], [0], [0], [1], [0, 0, 1, 1], [], []>} : vector<16x256xbf16>, vector<256x512xbf16>, vector<16x512xf32> -> vector<16x512xf32>
    %c0_9 = arith.constant 0 : index
    %c0_10 = arith.constant 0 : index
    %11 = vector.load %arg5[%c0_9, %c0_10] : memref<1x512xf32, #tpu.memory_space<vmem>>, vector<1x512xf32>
    %12 = vector.broadcast %11 : vector<1x512xf32> to vector<16x512xf32>
    %13 = arith.addf %10, %12 : vector<16x512xf32>
    %cst_11 = arith.constant 0.000000e+00 : f32
    %14 = vector.broadcast %cst_11 : f32 to vector<16x512xf32>
    %15 = arith.maximumf %13, %14 : vector<16x512xf32>
    %16 = arith.truncf %15 : vector<16x512xf32> to vector<16x512xbf16>
    %c0_12 = arith.constant 0 : index
    %c0_13 = arith.constant 0 : index
    %17 = vector.load %arg6[%c0_12, %c0_13] : memref<512x1024xbf16, #tpu.memory_space<vmem>>, vector<512x1024xbf16>
    %cst_14 = arith.constant dense<0.000000e+00> : vector<16x1024xf32>
    %18 = tpu.matmul %16, %17, %cst_14 {dimension_numbers = #tpu.dot_dimension_numbers<[1], [0], [0], [1], [0, 0, 1, 1], [], []>} : vector<16x512xbf16>, vector<512x1024xbf16>, vector<16x1024xf32> -> vector<16x1024xf32>
    %c0_15 = arith.constant 0 : index
    %c0_16 = arith.constant 0 : index
    %19 = vector.load %arg7[%c0_15, %c0_16] : memref<1x1024xf32, #tpu.memory_space<vmem>>, vector<1x1024xf32>
    %20 = vector.broadcast %19 : vector<1x1024xf32> to vector<16x1024xf32>
    %21 = arith.addf %18, %20 : vector<16x1024xf32>
    %cst_17 = arith.constant 0.000000e+00 : f32
    %22 = vector.broadcast %cst_17 : f32 to vector<16x1024xf32>
    %23 = arith.maximumf %21, %22 : vector<16x1024xf32>
    %24 = arith.truncf %23 : vector<16x1024xf32> to vector<16x1024xbf16>
    %c0_18 = arith.constant 0 : index
    %c0_19 = arith.constant 0 : index
    %25 = vector.load %arg8[%c0_18, %c0_19] : memref<1024x896xbf16, #tpu.memory_space<vmem>>, vector<1024x896xbf16>
    %cst_20 = arith.constant dense<0.000000e+00> : vector<16x896xf32>
    %26 = tpu.matmul %24, %25, %cst_20 {dimension_numbers = #tpu.dot_dimension_numbers<[1], [0], [0], [1], [0, 0, 1, 1], [], []>} : vector<16x1024xbf16>, vector<1024x896xbf16>, vector<16x896xf32> -> vector<16x896xf32>
    %c0_21 = arith.constant 0 : index
    %c0_22 = arith.constant 0 : index
    %27 = vector.load %arg9[%c0_21, %c0_22] : memref<1x896xf32, #tpu.memory_space<vmem>>, vector<1x896xf32>
    %28 = vector.broadcast %27 : vector<1x896xf32> to vector<16x896xf32>
    %29 = arith.addf %26, %28 : vector<16x896xf32>
    %30 = math.tanh %29 : vector<16x896xf32>
    %31 = arith.truncf %30 : vector<16x896xf32> to vector<16x896xbf16>
    %c0_23 = arith.constant 0 : index
    %c0_24 = arith.constant 0 : index
    %32 = vector.load %arg10[%c0_23, %c0_24] : memref<16x896xbf16, #tpu.memory_space<vmem>>, vector<16x896xbf16>
    tpu.vector_store %arg10[%c0_23, %c0_24], %31 {strides = array<i32>} : memref<16x896xbf16, #tpu.memory_space<vmem>>, vector<16x896xbf16>,
    return
  }
  func.func @transform_0(%arg0: i32) -> (i32, i32) {
    %c0_i32 = arith.constant 0 : i32
    %c0_i32_0 = arith.constant 0 : i32
    return %arg0, %c0_i32 : i32, i32
  }
  func.func @transform_1(%arg0: i32) -> (i32, i32) {
    %c0_i32 = arith.constant 0 : i32
    %c0_i32_0 = arith.constant 0 : i32
    %c0_i32_1 = arith.constant 0 : i32
    return %c0_i32, %c0_i32_0 : i32, i32
  }
  func.func @transform_2(%arg0: i32) -> (i32, i32) {
    %c0_i32 = arith.constant 0 : i32
    %c0_i32_0 = arith.constant 0 : i32
    %c0_i32_1 = arith.constant 0 : i32
    return %c0_i32, %c0_i32_0 : i32, i32
  }
  func.func @transform_3(%arg0: i32) -> (i32, i32) {
    %c0_i32 = arith.constant 0 : i32
    %c0_i32_0 = arith.constant 0 : i32
    %c0_i32_1 = arith.constant 0 : i32
    return %c0_i32, %c0_i32_0 : i32, i32
  }
  func.func @transform_4(%arg0: i32) -> (i32, i32) {
    %c0_i32 = arith.constant 0 : i32
    %c0_i32_0 = arith.constant 0 : i32
    %c0_i32_1 = arith.constant 0 : i32
    return %c0_i32, %c0_i32_0 : i32, i32
  }
  func.func @transform_5(%arg0: i32) -> (i32, i32) {
    %c0_i32 = arith.constant 0 : i32
    %c0_i32_0 = arith.constant 0 : i32
    %c0_i32_1 = arith.constant 0 : i32
    return %c0_i32, %c0_i32_0 : i32, i32
  }
  func.func @transform_6(%arg0: i32) -> (i32, i32) {
    %c0_i32 = arith.constant 0 : i32
    %c0_i32_0 = arith.constant 0 : i32
    %c0_i32_1 = arith.constant 0 : i32
    return %c0_i32, %c0_i32_0 : i32, i32
  }
  func.func @transform_7(%arg0: i32) -> (i32, i32) {
    %c0_i32 = arith.constant 0 : i32
    %c0_i32_0 = arith.constant 0 : i32
    %c0_i32_1 = arith.constant 0 : i32
    return %c0_i32, %c0_i32_0 : i32, i32
  }
  func.func @transform_8(%arg0: i32) -> (i32, i32) {
    %c0_i32 = arith.constant 0 : i32
    %c0_i32_0 = arith.constant 0 : i32
    %c0_i32_1 = arith.constant 0 : i32
    return %c0_i32, %c0_i32_0 : i32, i32
  }
  func.func @transform_9(%arg0: i32) -> (i32, i32) {
    %c0_i32 = arith.constant 0 : i32
    %c0_i32_0 = arith.constant 0 : i32
    return %arg0, %c0_i32 : i32, i32
  }
}

</mosaic_0001>

<llo_original>
// kernel: tpu_custom_call.1
$region0: #{tpu_custom_call.1}
  #allocation0 [shape = 'u32[]', space=smem, size = 0x4, offset = 0x4, fixed_abs, tag = 'smem constant byte address 0x4 - core index']
  #allocation1 [shape = 'u32[144,128]{1,0:T(1,128)}', space=vmem, size = 0x12000, scoped, tag = 'internal scratch']
  %s0 = inlined_call_operand.hbm [shape: bf16[16,128], index: 0, kind: input, shape index: {}]
  %s1 = inlined_call_operand.hbm [shape: bf16[128,256], index: 1, kind: input, shape index: {}]
  %s2 = inlined_call_operand.hbm [shape: f32[1,256], index: 2, kind: input, shape index: {}]
  %s3 = inlined_call_operand.hbm [shape: bf16[256,512], index: 3, kind: input, shape index: {}]
  %s4 = inlined_call_operand.hbm [shape: f32[1,512], index: 4, kind: input, shape index: {}]
  %s5 = inlined_call_operand.hbm [shape: bf16[512,1024], index: 5, kind: input, shape index: {}]
  %s6 = inlined_call_operand.hbm [shape: f32[1,1024], index: 6, kind: input, shape index: {}]
  %s7 = inlined_call_operand.hbm [shape: bf16[1024,896], index: 7, kind: input, shape index: {}]
  %s8 = inlined_call_operand.hbm [shape: f32[1,896], index: 8, kind: input, shape index: {}]
  %s9 = inlined_call_operand.hbm [shape: bf16[16,896], index: 9, kind: output, shape index: {}]
  %s10 = sld [smem:[#allocation0]]
  $region82: #{tpu_custom_call.1} parent=0
    _
  %s12 = ssub.s32 1, %s10
  %s13 = scalar_select 0, %s12, %s10
  $region1: #{tpu_custom_call.1} parent=0
    #allocation2 [shape = 'u8[4096]{0}', space=vmem, size = 0x1000, scoped, tag = 'input window, operand 0, single buffered']
    #allocation3 [shape = 's32[1]{0}', space=sflag, size = 0x4, scoped, tag = 'scoped memory for tpu_custom_call.1']
    #allocation4 [shape = 's32[1]{0}', space=sflag, size = 0x4, scoped, tag = 'scoped memory for tpu_custom_call.1']
    #allocation5 [shape = 'u8[65536]{0}', space=vmem, size = 0x10000, scoped, tag = 'input window, operand 1, single buffered']
    #allocation6 [shape = 's32[1]{0}', space=sflag, size = 0x4, scoped, tag = 'scoped memory for tpu_custom_call.1']
    #allocation7 [shape = 'u8[1024]{0}', space=vmem, size = 0x400, scoped, tag = 'input window, operand 2, single buffered']
    #allocation8 [shape = 'u8[262144]{0}', space=vmem, size = 0x40000, scoped, tag = 'input window, operand 3, single buffered']
    #allocation9 [shape = 's32[1]{0}', space=sflag, size = 0x4, scoped, tag = 'scoped memory for tpu_custom_call.1']
    #allocation10 [shape = 'u8[2048]{0}', space=vmem, size = 0x800, scoped, tag = 'input window, operand 4, single buffered']
    #allocation11 [shape = 'u8[1048576]{0}', space=vmem, size = 0x100000, scoped, tag = 'input window, operand 5, single buffered']
    #allocation12 [shape = 's32[1]{0}', space=sflag, size = 0x4, scoped, tag = 'scoped memory for tpu_custom_call.1']
    #allocation13 [shape = 'u8[4096]{0}', space=vmem, size = 0x1000, scoped, tag = 'input window, operand 6, single buffered']
    #allocation14 [shape = 'u8[1835008]{0}', space=vmem, size = 0x1c0000, scoped, tag = 'input window, operand 7, single buffered']
    #allocation15 [shape = 's32[1]{0}', space=sflag, size = 0x4, scoped, tag = 'scoped memory for tpu_custom_call.1']
    #allocation16 [shape = 'u8[3584]{0}', space=vmem, size = 0x1000, scoped, tag = 'input window, operand 8, single buffered']
    #allocation17 [shape = 'u8[28672]{0}', space=vmem, size = 0x7000, scoped, tag = 'output window, operand 0, single buffered']
    %14 = vsyncpa [#allocation3], 0
    %15 = vsyncpa [#allocation6], 0
    %16 = vsyncpa [#allocation9], 0
    %17 = vsyncpa [#allocation12], 0
    %18 = vsyncpa [#allocation15], 0
    %19 = vsyncpa [#allocation4], 0
    // Predicated region
    $region2: #{tpu_custom_call.1} parent=1 // pred_check
      _
    $region3: #{tpu_custom_call.1} parent=1 // pred_check_branch
      %21 = sbr.rel (0) target = $region5
    $region4: #{tpu_custom_call.1} parent=1 // pred_region
      %s23 = ssub.s32 128, 128
      %24 = vsyncadd [#allocation3], %s23
      %s25 = sshll.u32 [#allocation2], 4
      %s26 = int_to_ptr.vmem [resolvable:$true] %s25
      %31 = dma.hbm_to_vmem [thread:$0]  %s0, 128, %s26, [#allocation3], 64, 64, 4
    $region5: #{tpu_custom_call.1} parent=1 // pred_fallthru
      _
    // Predicated region
    $region6: #{tpu_custom_call.1} parent=1 // pred_check
      _
    $region7: #{tpu_custom_call.1} parent=1 // pred_check_branch
      %33 = sbr.rel (0) target = $region9
    $region8: #{tpu_custom_call.1} parent=1 // pred_region
      %s35 = ssub.s32 2048, 2048
      %36 = vsyncadd [#allocation6], %s35
      %s37 = sshll.u32 [#allocation5], 4
      %s38 = int_to_ptr.vmem [resolvable:$true] %s37
      %43 = dma.hbm_to_vmem [thread:$0]  %s1, 2048, %s38, [#allocation6], 128, 128, 8
    $region9: #{tpu_custom_call.1} parent=1 // pred_fallthru
      _
    // Predicated region
    $region10: #{tpu_custom_call.1} parent=1 // pred_check
      _
    $region11: #{tpu_custom_call.1} parent=1 // pred_check_branch
      %45 = sbr.rel (0) target = $region13
    $region12: #{tpu_custom_call.1} parent=1 // pred_region
      %s47 = ssub.s32 32, 32
      %48 = vsyncadd [#allocation6], %s47
      %s50 = sshll.u32 [#allocation7], 4
      %s51 = int_to_ptr.vmem [resolvable:$true] %s50
      %53 = dma.hbm_to_vmem [thread:$0]  %s2, 32, %s51, [#allocation6]
    $region13: #{tpu_custom_call.1} parent=1 // pred_fallthru
      _
    // Predicated region
    $region14: #{tpu_custom_call.1} parent=1 // pred_check
      _
    $region15: #{tpu_custom_call.1} parent=1 // pred_check_branch
      %55 = sbr.rel (0) target = $region17
    $region16: #{tpu_custom_call.1} parent=1 // pred_region
      %s57 = ssub.s32 8192, 8192
      %58 = vsyncadd [#allocation9], %s57
      %s59 = sshll.u32 [#allocation8], 4
      %s60 = int_to_ptr.vmem [resolvable:$true] %s59
      %65 = dma.hbm_to_vmem [thread:$0]  %s3, 8192, %s60, [#allocation9], 256, 256, 16
    $region17: #{tpu_custom_call.1} parent=1 // pred_fallthru
      _
    // Predicated region
    $region18: #{tpu_custom_call.1} parent=1 // pred_check
      _
    $region19: #{tpu_custom_call.1} parent=1 // pred_check_branch
      %67 = sbr.rel (0) target = $region21
    $region20: #{tpu_custom_call.1} parent=1 // pred_region
      %s69 = ssub.s32 64, 64
      %70 = vsyncadd [#allocation9], %s69
      %s72 = sshll.u32 [#allocation10], 4
      %s73 = int_to_ptr.vmem [resolvable:$true] %s72
      %75 = dma.hbm_to_vmem [thread:$0]  %s4, 64, %s73, [#allocation9]
    $region21: #{tpu_custom_call.1} parent=1 // pred_fallthru
      _
    // Predicated region
    $region22: #{tpu_custom_call.1} parent=1 // pred_check
      _
    $region23: #{tpu_custom_call.1} parent=1 // pred_check_branch
      %77 = sbr.rel (0) target = $region25
    $region24: #{tpu_custom_call.1} parent=1 // pred_region
      %s79 = ssub.s32 32768, 32768
      %80 = vsyncadd [#allocation12], %s79
      %s81 = sshll.u32 [#allocation11], 4
      %s82 = int_to_ptr.vmem [resolvable:$true] %s81
      %87 = dma.hbm_to_vmem [thread:$0]  %s5, 32768, %s82, [#allocation12], 512, 512, 32
    $region25: #{tpu_custom_call.1} parent=1 // pred_fallthru
      _
    // Predicated region
    $region26: #{tpu_custom_call.1} parent=1 // pred_check
      _
    $region27: #{tpu_custom_call.1} parent=1 // pred_check_branch
      %89 = sbr.rel (0) target = $region29
    $region28: #{tpu_custom_call.1} parent=1 // pred_region
      %s91 = ssub.s32 128, 128
      %92 = vsyncadd [#allocation12], %s91
      %s94 = sshll.u32 [#allocation13], 4
      %s95 = int_to_ptr.vmem [resolvable:$true] %s94
      %97 = dma.hbm_to_vmem [thread:$0]  %s6, 128, %s95, [#allocation12]
    $region29: #{tpu_custom_call.1} parent=1 // pred_fallthru
      _
    // Predicated region
    $region30: #{tpu_custom_call.1} parent=1 // pred_check
      _
    $region31: #{tpu_custom_call.1} parent=1 // pred_check_branch
      %99 = sbr.rel (0) target = $region33
    $region32: #{tpu_custom_call.1} parent=1 // pred_region
      %s101 = ssub.s32 57344, 57344
      %102 = vsyncadd [#allocation15], %s101
      %s103 = sshll.u32 [#allocation14], 4
      %s104 = int_to_ptr.vmem [resolvable:$true] %s103
      %109 = dma.hbm_to_vmem [thread:$0]  %s7, 57344, %s104, [#allocation15], 448, 448, 28
    $region33: #{tpu_custom_call.1} parent=1 // pred_fallthru
      _
    // Predicated region
    $region34: #{tpu_custom_call.1} parent=1 // pred_check
      _
    $region35: #{tpu_custom_call.1} parent=1 // pred_check_branch
      %111 = sbr.rel (0) target = $region37
    $region36: #{tpu_custom_call.1} parent=1 // pred_region
      %s113 = ssub.s32 112, 112
      %114 = vsyncadd [#allocation15], %s113
      %s116 = sshll.u32 [#allocation16], 4
      %s117 = int_to_ptr.vmem [resolvable:$true] %s116
      %119 = dma.hbm_to_vmem [thread:$0]  %s8, 112, %s117, [#allocation15]
    $region37: #{tpu_custom_call.1} parent=1 // pred_fallthru
      _
    // Predicated region
    $region38: #{tpu_custom_call.1} parent=1 // pred_check
      _
    $region39: #{tpu_custom_call.1} parent=1 // pred_check_branch
      %121 = sbr.rel (0) target = $region41
    $region40: #{tpu_custom_call.1} parent=1 // pred_region
      %122 = dma.done [#allocation3], 128
    $region41: #{tpu_custom_call.1} parent=1 // pred_fallthru
      _
    // Predicated region
    $region42: #{tpu_custom_call.1} parent=1 // pred_check
      _
    $region43: #{tpu_custom_call.1} parent=1 // pred_check_branch
      %124 = sbr.rel (0) target = $region45
    $region44: #{tpu_custom_call.1} parent=1 // pred_region
      %125 = dma.done [#allocation6], 2048
    $region45: #{tpu_custom_call.1} parent=1 // pred_fallthru
      _
    // Predicated region
    $region46: #{tpu_custom_call.1} parent=1 // pred_check
      _
    $region47: #{tpu_custom_call.1} parent=1 // pred_check_branch
      %127 = sbr.rel (0) target = $region49
    $region48: #{tpu_custom_call.1} parent=1 // pred_region
      %128 = dma.done [#allocation6], 32
    $region49: #{tpu_custom_call.1} parent=1 // pred_fallthru
      _
    // Predicated region
    $region50: #{tpu_custom_call.1} parent=1 // pred_check
      _
    $region51: #{tpu_custom_call.1} parent=1 // pred_check_branch
      %130 = sbr.rel (0) target = $region53
    $region52: #{tpu_custom_call.1} parent=1 // pred_region
      %131 = dma.done [#allocation9], 8192
    $region53: #{tpu_custom_call.1} parent=1 // pred_fallthru
      _
    // Predicated region
    $region54: #{tpu_custom_call.1} parent=1 // pred_check
      _
    $region55: #{tpu_custom_call.1} parent=1 // pred_check_branch
      %133 = sbr.rel (0) target = $region57
    $region56: #{tpu_custom_call.1} parent=1 // pred_region
      %134 = dma.done [#allocation9], 64
    $region57: #{tpu_custom_call.1} parent=1 // pred_fallthru
      _
    // Predicated region
    $region58: #{tpu_custom_call.1} parent=1 // pred_check
      _
    $region59: #{tpu_custom_call.1} parent=1 // pred_check_branch
      %136 = sbr.rel (0) target = $region61
    $region60: #{tpu_custom_call.1} parent=1 // pred_region
      %137 = dma.done [#allocation12], 32768
    $region61: #{tpu_custom_call.1} parent=1 // pred_fallthru
      _
    // Predicated region
    $region62: #{tpu_custom_call.1} parent=1 // pred_check
      _
    $region63: #{tpu_custom_call.1} parent=1 // pred_check_branch
      %139 = sbr.rel (0) target = $region65
    $region64: #{tpu_custom_call.1} parent=1 // pred_region
      %140 = dma.done [#allocation12], 128
    $region65: #{tpu_custom_call.1} parent=1 // pred_fallthru
      _
    // Predicated region
    $region66: #{tpu_custom_call.1} parent=1 // pred_check
      _
    $region67: #{tpu_custom_call.1} parent=1 // pred_check_branch
      %142 = sbr.rel (0) target = $region69
    $region68: #{tpu_custom_call.1} parent=1 // pred_region
      %143 = dma.done [#allocation15], 57344
    $region69: #{tpu_custom_call.1} parent=1 // pred_fallthru
      _
    // Predicated region
    $region70: #{tpu_custom_call.1} parent=1 // pred_check
      _
    $region71: #{tpu_custom_call.1} parent=1 // pred_check_branch
      %145 = sbr.rel (0) target = $region73
    $region72: #{tpu_custom_call.1} parent=1 // pred_region
      %146 = dma.done [#allocation15], 112
    $region73: #{tpu_custom_call.1} parent=1 // pred_fallthru
      _
    %v148 = vld [vmem:[#allocation2] sm:$0xf]
    %v149 = vld [vmem:[#allocation2 + $0x4] sm:$0xf]
    %v150 = vld [vmem:[#allocation5] sm:$0xff]
    %v151 = vld [vmem:[#allocation5 + $0x8] sm:$0xff]
    %v152 = vld [vmem:[#allocation5 + $0x10] sm:$0xff]
    %v153 = vld [vmem:[#allocation5 + $0x18] sm:$0xff]
    %v154 = vld [vmem:[#allocation5 + $0x20] sm:$0xff]
    %v155 = vld [vmem:[#allocation5 + $0x28] sm:$0xff]
    %v156 = vld [vmem:[#allocation5 + $0x30] sm:$0xff]
    %v157 = vld [vmem:[#allocation5 + $0x38] sm:$0xff]
    %v158 = vld [vmem:[#allocation5 + $0x40] sm:$0xff]
    %v159 = vld [vmem:[#allocation5 + $0x48] sm:$0xff]
    %v160 = vld [vmem:[#allocation5 + $0x50] sm:$0xff]
    %v161 = vld [vmem:[#allocation5 + $0x58] sm:$0xff]
    %v162 = vld [vmem:[#allocation5 + $0x60] sm:$0xff]
    %v163 = vld [vmem:[#allocation5 + $0x68] sm:$0xff]
    %v164 = vld [vmem:[#allocation5 + $0x70] sm:$0xff]
    %v165 = vld [vmem:[#allocation5 + $0x78] sm:$0xff]
    %v166 = vld [vmem:[#allocation7] sm:$0x3]
    %v168 = vlaneseq
    %v169 = vshrl.u32 %v168, 7
    %v170 = vsub.s32 0, %v169
    %v171 = vrot.slane %v166, %v170
    %v172 = vlaneseq
    %v173 = vshrl.u32 %v172, 7
    %v174 = vsub.s32 1, %v173
    %v175 = vrot.slane %v166, %v174
    %v180 = vunpack.c.l.b16 %v148
    %v181 = vunpack.c.l.b16 %v149
    %v182 = vpack.c.b16 %v181, %v180
    %v200 = vunpack.c.l.b16 %v150
    %v201 = vunpack.c.h.b16 %v150
    %v202 = vunpack.c.l.b16 %v151
    %v203 = vunpack.c.h.b16 %v151
    %v204 = vunpack.c.l.b16 %v152
    %v205 = vunpack.c.h.b16 %v152
    %v206 = vunpack.c.l.b16 %v153
    %v207 = vunpack.c.h.b16 %v153
    %v208 = vunpack.c.l.b16 %v154
    %v209 = vunpack.c.h.b16 %v154
    %v210 = vunpack.c.l.b16 %v155
    %v211 = vunpack.c.h.b16 %v155
    %v212 = vunpack.c.l.b16 %v156
    %v213 = vunpack.c.h.b16 %v156
    %v214 = vunpack.c.l.b16 %v157
    %v215 = vunpack.c.h.b16 %v157
    %v216 = vunpack.c.l.b16 %v158
    %v217 = vunpack.c.h.b16 %v158
    %v218 = vunpack.c.l.b16 %v159
    %v219 = vunpack.c.h.b16 %v159
    %v220 = vunpack.c.l.b16 %v160
    %v221 = vunpack.c.h.b16 %v160
    %v222 = vunpack.c.l.b16 %v161
    %v223 = vunpack.c.h.b16 %v161
    %v224 = vunpack.c.l.b16 %v162
    %v225 = vunpack.c.h.b16 %v162
    %v226 = vunpack.c.l.b16 %v163
    %v227 = vunpack.c.h.b16 %v163
    %v228 = vunpack.c.l.b16 %v164
    %v229 = vunpack.c.h.b16 %v164
    %v230 = vunpack.c.l.b16 %v165
    %v231 = vunpack.c.h.b16 %v165
    %v232 = vpack.c.b16 %v202, %v200
    %v233 = vpack.c.b16 %v203, %v201
    %v234 = vpack.c.b16 %v206, %v204
    %v235 = vpack.c.b16 %v207, %v205
    %v236 = vpack.c.b16 %v210, %v208
    %v237 = vpack.c.b16 %v211, %v209
    %v238 = vpack.c.b16 %v214, %v212
    %v239 = vpack.c.b16 %v215, %v213
    %v240 = vpack.c.b16 %v218, %v216
    %v241 = vpack.c.b16 %v219, %v217
    %v242 = vpack.c.b16 %v222, %v220
    %v243 = vpack.c.b16 %v223, %v221
    %v244 = vpack.c.b16 %v226, %v224
    %v245 = vpack.c.b16 %v227, %v225
    %v246 = vpack.c.b16 %v230, %v228
    %v247 = vpack.c.b16 %v231, %v229
    %264 = vmatprep.subr.bf16.mxu0 %v247
    %265 = vmatpush1.bf16.msra.mxu0 %v246
    %266 = vmatprep.subr.bf16.mxu0 %v245
    %267 = vmatpush1.bf16.msra.mxu0 %v244
    %268 = vmatprep.subr.bf16.mxu0 %v243
    %269 = vmatpush1.bf16.msra.mxu0 %v242
    %270 = vmatprep.subr.bf16.mxu0 %v241
    %271 = vmatpush1.bf16.msra.mxu0 %v240
    %272 = vmatprep.subr.bf16.mxu0 %v239
    %273 = vmatpush1.bf16.msra.mxu0 %v238
    %274 = vmatprep.subr.bf16.mxu0 %v237
    %275 = vmatpush1.bf16.msra.mxu0 %v236
    %276 = vmatprep.subr.bf16.mxu0 %v235
    %277 = vmatpush1.bf16.msra.mxu0 %v234
    %278 = vmatprep.subr.bf16.mxu0 %v233
    %279 = vmatpush1.bf16.msra.mxu0 %v232
    %280 = vmatprep.subr.bf16.mxu0 0
    %281 = vmatpush2.bf16.msra.mxu0 0
    %282 = vmatprep.subr.bf16.mxu0 0
    %283 = vmatpush2.bf16.msra.mxu0 0
    %284 = vmatprep.subr.bf16.mxu0 0
    %285 = vmatpush2.bf16.msra.mxu0 0
    %286 = vmatprep.subr.bf16.mxu0 0
    %287 = vmatpush2.bf16.msra.mxu0 0
    %288 = vmatprep.subr.bf16.mxu0 0
    %289 = vmatpush2.bf16.msra.mxu0 0
    %290 = vmatprep.subr.bf16.mxu0 0
    %291 = vmatpush2.bf16.msra.mxu0 0
    %292 = vmatprep.subr.bf16.mxu0 0
    %293 = vmatpush2.bf16.msra.mxu0 0
    %294 = vmatprep.subr.bf16.mxu0 0
    %295 = vmatpush2.bf16.msra.mxu0 0
    %296 = vmatprep.mubr.bf16.mxu0 0
    %297 = vmatmul.mubr.bf16.gmra.mxu0 %v182
    %v298 = vpop.f32.mrf.mxu0
    %v299 = vadd.f32 %v171, %v298
    %v300 = vpop.f32.mrf.mxu0
    %v301 = vadd.f32 %v175, %v300
    %v302 = vpop.f32.mrf.mxu0
    %v303 = vadd.f32 %v171, %v302
    %v304 = vpop.f32.mrf.mxu0
    %v305 = vadd.f32 %v175, %v304
    %306 = vdwg.mxu0
    %v307 = vmax.f32 %v299, 0.0
    %v308 = vmax.f32 %v301, 0.0
    %v309 = vmax.f32 %v303, 0.0
    %v310 = vmax.f32 %v305, 0.0
    %v311 = vpack.c.bf16 %v309, %v307
    %v312 = vpack.c.bf16 %v310, %v308
    %v313 = vld [vmem:[#allocation8] sm:$0xff]
    %v314 = vld [vmem:[#allocation8 + $0x8] sm:$0xff]
    %v315 = vld [vmem:[#allocation8 + $0x10] sm:$0xff]
    %v316 = vld [vmem:[#allocation8 + $0x18] sm:$0xff]
    %v317 = vld [vmem:[#allocation8 + $0x20] sm:$0xff]
    %v318 = vld [vmem:[#allocation8 + $0x28] sm:$0xff]
    %v319 = vld [vmem:[#allocation8 + $0x30] sm:$0xff]
    %v320 = vld [vmem:[#allocation8 + $0x38] sm:$0xff]
    %v321 = vld [vmem:[#allocation8 + $0x40] sm:$0xff]
    %v322 = vld [vmem:[#allocation8 + $0x48] sm:$0xff]
    %v323 = vld [vmem:[#allocation8 + $0x50] sm:$0xff]
    %v324 = vld [vmem:[#allocation8 + $0x58] sm:$0xff]
    %v325 = vld [vmem:[#allocation8 + $0x60] sm:$0xff]
    %v326 = vld [vmem:[#allocation8 + $0x68] sm:$0xff]
    %v327 = vld [vmem:[#allocation8 + $0x70] sm:$0xff]
    %v328 = vld [vmem:[#allocation8 + $0x78] sm:$0xff]
    %v329 = vld [vmem:[#allocation8 + $0x80] sm:$0xff]
    %v330 = vld [vmem:[#allocation8 + $0x88] sm:$0xff]
    %v331 = vld [vmem:[#allocation8 + $0x90] sm:$0xff]
    %v332 = vld [vmem:[#allocation8 + $0x98] sm:$0xff]
    %v333 = vld [vmem:[#allocation8 + $0xa0] sm:$0xff]
    %v334 = vld [vmem:[#allocation8 + $0xa8] sm:$0xff]
    %v335 = vld [vmem:[#allocation8 + $0xb0] sm:$0xff]
    %v336 = vld [vmem:[#allocation8 + $0xb8] sm:$0xff]
    %v337 = vld [vmem:[#allocation8 + $0xc0] sm:$0xff]
    %v338 = vld [vmem:[#allocation8 + $0xc8] sm:$0xff]
    %v339 = vld [vmem:[#allocation8 + $0xd0] sm:$0xff]
    %v340 = vld [vmem:[#allocation8 + $0xd8] sm:$0xff]
    %v341 = vld [vmem:[#allocation8 + $0xe0] sm:$0xff]
    %v342 = vld [vmem:[#allocation8 + $0xe8] sm:$0xff]
    %v343 = vld [vmem:[#allocation8 + $0xf0] sm:$0xff]
    %v344 = vld [vmem:[#allocation8 + $0xf8] sm:$0xff]
    %v345 = vld [vmem:[#allocation8 + $0x100] sm:$0xff]
    %v346 = vld [vmem:[#allocation8 + $0x108] sm:$0xff]
    %v347 = vld [vmem:[#allocation8 + $0x110] sm:$0xff]
    %v348 = vld [vmem:[#allocation8 + $0x118] sm:$0xff]
    %v349 = vld [vmem:[#allocation8 + $0x120] sm:$0xff]
    %v350 = vld [vmem:[#allocation8 + $0x128] sm:$0xff]
    %v351 = vld [vmem:[#allocation8 + $0x130] sm:$0xff]
    %v352 = vld [vmem:[#allocation8 + $0x138] sm:$0xff]
    %v353 = vld [vmem:[#allocation8 + $0x140] sm:$0xff]
    %v354 = vld [vmem:[#allocation8 + $0x148] sm:$0xff]
    %v355 = vld [vmem:[#allocation8 + $0x150] sm:$0xff]
    %v356 = vld [vmem:[#allocation8 + $0x158] sm:$0xff]
    %v357 = vld [vmem:[#allocation8 + $0x160] sm:$0xff]
    %v358 = vld [vmem:[#allocation8 + $0x168] sm:$0xff]
    %v359 = vld [vmem:[#allocation8 + $0x170] sm:$0xff]
    %v360 = vld [vmem:[#allocation8 + $0x178] sm:$0xff]
    %v361 = vld [vmem:[#allocation8 + $0x180] sm:$0xff]
    %v362 = vld [vmem:[#allocation8 + $0x188] sm:$0xff]
    %v363 = vld [vmem:[#allocation8 + $0x190] sm:$0xff]
    %v364 = vld [vmem:[#allocation8 + $0x198] sm:$0xff]
    %v365 = vld [vmem:[#allocation8 + $0x1a0] sm:$0xff]
    %v366 = vld [vmem:[#allocation8 + $0x1a8] sm:$0xff]
    %v367 = vld [vmem:[#allocation8 + $0x1b0] sm:$0xff]
    %v368 = vld [vmem:[#allocation8 + $0x1b8] sm:$0xff]
    %v369 = vld [vmem:[#allocation8 + $0x1c0] sm:$0xff]
    %v370 = vld [vmem:[#allocation8 + $0x1c8] sm:$0xff]
    %v371 = vld [vmem:[#allocation8 + $0x1d0] sm:$0xff]
    %v372 = vld [vmem:[#allocation8 + $0x1d8] sm:$0xff]
    %v373 = vld [vmem:[#allocation8 + $0x1e0] sm:$0xff]
    %v374 = vld [vmem:[#allocation8 + $0x1e8] sm:$0xff]
    %v375 = vld [vmem:[#allocation8 + $0x1f0] sm:$0xff]
    %v376 = vld [vmem:[#allocation8 + $0x1f8] sm:$0xff]
    %v377 = vld [vmem:[#allocation10] sm:$0xf]
    %v379 = vlaneseq
    %v380 = vshrl.u32 %v379, 7
    %v381 = vsub.s32 0, %v380
    %v382 = vrot.slane %v377, %v381
    %v383 = vlaneseq
    %v384 = vshrl.u32 %v383, 7
    %v385 = vsub.s32 1, %v384
    %v386 = vrot.slane %v377, %v385
    %v387 = vlaneseq
    %v388 = vshrl.u32 %v387, 7
    %v389 = vsub.s32 2, %v388
    %v390 = vrot.slane %v377, %v389
    %v391 = vlaneseq
    %v392 = vshrl.u32 %v391, 7
    %v393 = vsub.s32 3, %v392
    %v394 = vrot.slane %v377, %v393
    %v463 = vunpack.c.l.b16 %v313
    %v464 = vunpack.c.h.b16 %v313
    %v465 = vunpack.c.l.b16 %v314
    %v466 = vunpack.c.h.b16 %v314
    %v467 = vunpack.c.l.b16 %v315
    %v468 = vunpack.c.h.b16 %v315
    %v469 = vunpack.c.l.b16 %v316
    %v470 = vunpack.c.h.b16 %v316
    %v471 = vunpack.c.l.b16 %v317
    %v472 = vunpack.c.h.b16 %v317
    %v473 = vunpack.c.l.b16 %v318
    %v474 = vunpack.c.h.b16 %v318
    %v475 = vunpack.c.l.b16 %v319
    %v476 = vunpack.c.h.b16 %v319
    %v477 = vunpack.c.l.b16 %v320
    %v478 = vunpack.c.h.b16 %v320
    %v479 = vunpack.c.l.b16 %v321
    %v480 = vunpack.c.h.b16 %v321
    %v481 = vunpack.c.l.b16 %v322
    %v482 = vunpack.c.h.b16 %v322
    %v483 = vunpack.c.l.b16 %v323
    %v484 = vunpack.c.h.b16 %v323
    %v485 = vunpack.c.l.b16 %v324
    %v486 = vunpack.c.h.b16 %v324
    %v487 = vunpack.c.l.b16 %v325
    %v488 = vunpack.c.h.b16 %v325
    %v489 = vunpack.c.l.b16 %v326
    %v490 = vunpack.c.h.b16 %v326
    %v491 = vunpack.c.l.b16 %v327
    %v492 = vunpack.c.h.b16 %v327
    %v493 = vunpack.c.l.b16 %v328
    %v494 = vunpack.c.h.b16 %v328
    %v495 = vunpack.c.l.b16 %v329
    %v496 = vunpack.c.h.b16 %v329
    %v497 = vunpack.c.l.b16 %v330
    %v498 = vunpack.c.h.b16 %v330
    %v499 = vunpack.c.l.b16 %v331
    %v500 = vunpack.c.h.b16 %v331
    %v501 = vunpack.c.l.b16 %v332
    %v502 = vunpack.c.h.b16 %v332
    %v503 = vunpack.c.l.b16 %v333
    %v504 = vunpack.c.h.b16 %v333
    %v505 = vunpack.c.l.b16 %v334
    %v506 = vunpack.c.h.b16 %v334
    %v507 = vunpack.c.l.b16 %v335
    %v508 = vunpack.c.h.b16 %v335
    %v509 = vunpack.c.l.b16 %v336
    %v510 = vunpack.c.h.b16 %v336
    %v511 = vunpack.c.l.b16 %v337
    %v512 = vunpack.c.h.b16 %v337
    %v513 = vunpack.c.l.b16 %v338
    %v514 = vunpack.c.h.b16 %v338
    %v515 = vunpack.c.l.b16 %v339
    %v516 = vunpack.c.h.b16 %v339
    %v517 = vunpack.c.l.b16 %v340
    %v518 = vunpack.c.h.b16 %v340
    %v519 = vunpack.c.l.b16 %v341
    %v520 = vunpack.c.h.b16 %v341
    %v521 = vunpack.c.l.b16 %v342
    %v522 = vunpack.c.h.b16 %v342
    %v523 = vunpack.c.l.b16 %v343
    %v524 = vunpack.c.h.b16 %v343
    %v525 = vunpack.c.l.b16 %v344
    %v526 = vunpack.c.h.b16 %v344
    %v527 = vunpack.c.l.b16 %v345
    %v528 = vunpack.c.h.b16 %v345
    %v529 = vunpack.c.l.b16 %v346
    %v530 = vunpack.c.h.b16 %v346
    %v531 = vunpack.c.l.b16 %v347
    %v532 = vunpack.c.h.b16 %v347
    %v533 = vunpack.c.l.b16 %v348
    %v534 = vunpack.c.h.b16 %v348
    %v535 = vunpack.c.l.b16 %v349
    %v536 = vunpack.c.h.b16 %v349
    %v537 = vunpack.c.l.b16 %v350
    %v538 = vunpack.c.h.b16 %v350
    %v539 = vunpack.c.l.b16 %v351
    %v540 = vunpack.c.h.b16 %v351
    %v541 = vunpack.c.l.b16 %v352
    %v542 = vunpack.c.h.b16 %v352
    %v543 = vunpack.c.l.b16 %v353
    %v544 = vunpack.c.h.b16 %v353
    %v545 = vunpack.c.l.b16 %v354
    %v546 = vunpack.c.h.b16 %v354
    %v547 = vunpack.c.l.b16 %v355
    %v548 = vunpack.c.h.b16 %v355
    %v549 = vunpack.c.l.b16 %v356
    %v550 = vunpack.c.h.b16 %v356
    %v551 = vunpack.c.l.b16 %v357
    %v552 = vunpack.c.h.b16 %v357
    %v553 = vunpack.c.l.b16 %v358
    %v554 = vunpack.c.h.b16 %v358
    %v555 = vunpack.c.l.b16 %v359
    %v556 = vunpack.c.h.b16 %v359
    %v557 = vunpack.c.l.b16 %v360
    %v558 = vunpack.c.h.b16 %v360
    %v559 = vunpack.c.l.b16 %v361
    %v560 = vunpack.c.h.b16 %v361
    %v561 = vunpack.c.l.b16 %v362
    %v562 = vunpack.c.h.b16 %v362
    %v563 = vunpack.c.l.b16 %v363
    %v564 = vunpack.c.h.b16 %v363
    %v565 = vunpack.c.l.b16 %v364
    %v566 = vunpack.c.h.b16 %v364
    %v567 = vunpack.c.l.b16 %v365
    %v568 = vunpack.c.h.b16 %v365
    %v569 = vunpack.c.l.b16 %v366
    %v570 = vunpack.c.h.b16 %v366
    %v571 = vunpack.c.l.b16 %v367
    %v572 = vunpack.c.h.b16 %v367
    %v573 = vunpack.c.l.b16 %v368
    %v574 = vunpack.c.h.b16 %v368
    %v575 = vunpack.c.l.b16 %v369
    %v576 = vunpack.c.h.b16 %v369
    %v577 = vunpack.c.l.b16 %v370
    %v578 = vunpack.c.h.b16 %v370
    %v579 = vunpack.c.l.b16 %v371
    %v580 = vunpack.c.h.b16 %v371
    %v581 = vunpack.c.l.b16 %v372
    %v582 = vunpack.c.h.b16 %v372
    %v583 = vunpack.c.l.b16 %v373
    %v584 = vunpack.c.h.b16 %v373
    %v585 = vunpack.c.l.b16 %v374
    %v586 = vunpack.c.h.b16 %v374
    %v587 = vunpack.c.l.b16 %v375
    %v588 = vunpack.c.h.b16 %v375
    %v589 = vunpack.c.l.b16 %v376
    %v590 = vunpack.c.h.b16 %v376
    %v591 = vpack.c.b16 %v467, %v463
    %v592 = vpack.c.b16 %v468, %v464
    %v593 = vpack.c.b16 %v469, %v465
    %v594 = vpack.c.b16 %v470, %v466
    %v595 = vpack.c.b16 %v475, %v471
    %v596 = vpack.c.b16 %v476, %v472
    %v597 = vpack.c.b16 %v477, %v473
    %v598 = vpack.c.b16 %v478, %v474
    %v599 = vpack.c.b16 %v483, %v479
    %v600 = vpack.c.b16 %v484, %v480
    %v601 = vpack.c.b16 %v485, %v481
    %v602 = vpack.c.b16 %v486, %v482
    %v603 = vpack.c.b16 %v491, %v487
    %v604 = vpack.c.b16 %v492, %v488
    %v605 = vpack.c.b16 %v493, %v489
    %v606 = vpack.c.b16 %v494, %v490
    %v607 = vpack.c.b16 %v499, %v495
    %v608 = vpack.c.b16 %v500, %v496
    %v609 = vpack.c.b16 %v501, %v497
    %v610 = vpack.c.b16 %v502, %v498
    %v611 = vpack.c.b16 %v507, %v503
    %v612 = vpack.c.b16 %v508, %v504
    %v613 = vpack.c.b16 %v509, %v505
    %v614 = vpack.c.b16 %v510, %v506
    %v615 = vpack.c.b16 %v515, %v511
    %v616 = vpack.c.b16 %v516, %v512
    %v617 = vpack.c.b16 %v517, %v513
    %v618 = vpack.c.b16 %v518, %v514
    %v619 = vpack.c.b16 %v523, %v519
    %v620 = vpack.c.b16 %v524, %v520
    %v621 = vpack.c.b16 %v525, %v521
    %v622 = vpack.c.b16 %v526, %v522
    %v623 = vpack.c.b16 %v531, %v527
    %v624 = vpack.c.b16 %v532, %v528
    %v625 = vpack.c.b16 %v533, %v529
    %v626 = vpack.c.b16 %v534, %v530
    %v627 = vpack.c.b16 %v539, %v535
    %v628 = vpack.c.b16 %v540, %v536
    %v629 = vpack.c.b16 %v541, %v537
    %v630 = vpack.c.b16 %v542, %v538
    %v631 = vpack.c.b16 %v547, %v543
    %v632 = vpack.c.b16 %v548, %v544
    %v633 = vpack.c.b16 %v549, %v545
    %v634 = vpack.c.b16 %v550, %v546
    %v635 = vpack.c.b16 %v555, %v551
    %v636 = vpack.c.b16 %v556, %v552
    %v637 = vpack.c.b16 %v557, %v553
    %v638 = vpack.c.b16 %v558, %v554
    %v639 = vpack.c.b16 %v563, %v559
    %v640 = vpack.c.b16 %v564, %v560
    %v641 = vpack.c.b16 %v565, %v561
    %v642 = vpack.c.b16 %v566, %v562
    %v643 = vpack.c.b16 %v571, %v567
    %v644 = vpack.c.b16 %v572, %v568
    %v645 = vpack.c.b16 %v573, %v569
    %v646 = vpack.c.b16 %v574, %v570
    %v647 = vpack.c.b16 %v579, %v575
    %v648 = vpack.c.b16 %v580, %v576
    %v649 = vpack.c.b16 %v581, %v577
    %v650 = vpack.c.b16 %v582, %v578
    %v651 = vpack.c.b16 %v587, %v583
    %v652 = vpack.c.b16 %v588, %v584
    %v653 = vpack.c.b16 %v589, %v585
    %v654 = vpack.c.b16 %v590, %v586
    %719 = vmatprep.subr.bf16.mxu0 %v620
    %720 = vmatpush1.bf16.msra.mxu0 %v619
    %721 = vmatprep.subr.bf16.mxu0 %v616
    %722 = vmatpush1.bf16.msra.mxu0 %v615
    %723 = vmatprep.subr.bf16.mxu0 %v612
    %724 = vmatpush1.bf16.msra.mxu0 %v611
    %725 = vmatprep.subr.bf16.mxu0 %v608
    %726 = vmatpush1.bf16.msra.mxu0 %v607
    %727 = vmatprep.subr.bf16.mxu0 %v604
    %728 = vmatpush1.bf16.msra.mxu0 %v603
    %729 = vmatprep.subr.bf16.mxu0 %v600
    %730 = vmatpush1.bf16.msra.mxu0 %v599
    %731 = vmatprep.subr.bf16.mxu0 %v596
    %732 = vmatpush1.bf16.msra.mxu0 %v595
    %733 = vmatprep.subr.bf16.mxu0 %v592
    %734 = vmatpush1.bf16.msra.mxu0 %v591
    %735 = vmatprep.subr.bf16.mxu0 %v652
    %736 = vmatpush2.bf16.msra.mxu0 %v651
    %737 = vmatprep.subr.bf16.mxu0 %v648
    %738 = vmatpush2.bf16.msra.mxu0 %v647
    %739 = vmatprep.subr.bf16.mxu0 %v644
    %740 = vmatpush2.bf16.msra.mxu0 %v643
    %741 = vmatprep.subr.bf16.mxu0 %v640
    %742 = vmatpush2.bf16.msra.mxu0 %v639
    %743 = vmatprep.subr.bf16.mxu0 %v636
    %744 = vmatpush2.bf16.msra.mxu0 %v635
    %745 = vmatprep.subr.bf16.mxu0 %v632
    %746 = vmatpush2.bf16.msra.mxu0 %v631
    %747 = vmatprep.subr.bf16.mxu0 %v628
    %748 = vmatpush2.bf16.msra.mxu0 %v627
    %749 = vmatprep.subr.bf16.mxu0 %v624
    %750 = vmatpush2.bf16.msra.mxu0 %v623
    %751 = vmatprep.mubr.bf16.mxu0 %v312
    %752 = vmatmul.mubr.bf16.gmra.mxu0 %v311
    %v753 = vpop.f32.mrf.mxu0
    %v754 = vadd.f32 %v382, %v753
    %v755 = vpop.f32.mrf.mxu0
    %v756 = vadd.f32 %v386, %v755
    %v757 = vpop.f32.mrf.mxu0
    %v758 = vadd.f32 %v382, %v757
    %v759 = vpop.f32.mrf.mxu0
    %v760 = vadd.f32 %v386, %v759
    %761 = vdwg.mxu0
    %762 = vmatprep.subr.bf16.mxu0 %v622
    %763 = vmatpush1.bf16.msra.mxu0 %v621
    %764 = vmatprep.subr.bf16.mxu0 %v618
    %765 = vmatpush1.bf16.msra.mxu0 %v617
    %766 = vmatprep.subr.bf16.mxu0 %v614
    %767 = vmatpush1.bf16.msra.mxu0 %v613
    %768 = vmatprep.subr.bf16.mxu0 %v610
    %769 = vmatpush1.bf16.msra.mxu0 %v609
    %770 = vmatprep.subr.bf16.mxu0 %v606
    %771 = vmatpush1.bf16.msra.mxu0 %v605
    %772 = vmatprep.subr.bf16.mxu0 %v602
    %773 = vmatpush1.bf16.msra.mxu0 %v601
    %774 = vmatprep.subr.bf16.mxu0 %v598
    %775 = vmatpush1.bf16.msra.mxu0 %v597
    %776 = vmatprep.subr.bf16.mxu0 %v594
    %777 = vmatpush1.bf16.msra.mxu0 %v593
    %778 = vmatprep.subr.bf16.mxu0 %v654
    %779 = vmatpush2.bf16.msra.mxu0 %v653
    %780 = vmatprep.subr.bf16.mxu0 %v650
    %781 = vmatpush2.bf16.msra.mxu0 %v649
    %782 = vmatprep.subr.bf16.mxu0 %v646
    %783 = vmatpush2.bf16.msra.mxu0 %v645
    %784 = vmatprep.subr.bf16.mxu0 %v642
    %785 = vmatpush2.bf16.msra.mxu0 %v641
    %786 = vmatprep.subr.bf16.mxu0 %v638
    %787 = vmatpush2.bf16.msra.mxu0 %v637
    %788 = vmatprep.subr.bf16.mxu0 %v634
    %789 = vmatpush2.bf16.msra.mxu0 %v633
    %790 = vmatprep.subr.bf16.mxu0 %v630
    %791 = vmatpush2.bf16.msra.mxu0 %v629
    %792 = vmatprep.subr.bf16.mxu0 %v626
    %793 = vmatpush2.bf16.msra.mxu0 %v625
    %794 = vmatprep.mubr.bf16.mxu0 %v312
    %795 = vmatmul.mubr.bf16.gmra.mxu0 %v311
    %v796 = vpop.f32.mrf.mxu0
    %v797 = vadd.f32 %v390, %v796
    %v798 = vpop.f32.mrf.mxu0
    %v799 = vadd.f32 %v394, %v798
    %v800 = vpop.f32.mrf.mxu0
    %v801 = vadd.f32 %v390, %v800
    %v802 = vpop.f32.mrf.mxu0
    %v803 = vadd.f32 %v394, %v802
    %804 = vdwg.mxu0
    %v805 = vmax.f32 %v754, 0.0
    %v806 = vmax.f32 %v756, 0.0
    %v807 = vmax.f32 %v797, 0.0
    %v808 = vmax.f32 %v799, 0.0
    %v809 = vmax.f32 %v758, 0.0
    %v810 = vmax.f32 %v760, 0.0
    %v811 = vmax.f32 %v801, 0.0
    %v812 = vmax.f32 %v803, 0.0
    %v813 = vpack.c.bf16 %v809, %v805
    %v814 = vpack.c.bf16 %v810, %v806
    %v815 = vpack.c.bf16 %v811, %v807
    %v816 = vpack.c.bf16 %v812, %v808
    %v817 = vld [vmem:[#allocation11] sm:$0xff]
    %v818 = vld [vmem:[#allocation11 + $0x8] sm:$0xff]
    %v819 = vld [vmem:[#allocation11 + $0x10] sm:$0xff]
    %v820 = vld [vmem:[#allocation11 + $0x18] sm:$0xff]
    %v821 = vld [vmem:[#allocation11 + $0x20] sm:$0xff]
    %v822 = vld [vmem:[#allocation11 + $0x28] sm:$0xff]
    %v823 = vld [vmem:[#allocation11 + $0x30] sm:$0xff]
    %v824 = vld [vmem:[#allocation11 + $0x38] sm:$0xff]
    %v825 = vld [vmem:[#allocation11 + $0x40] sm:$0xff]
    %v826 = vld [vmem:[#allocation11 + $0x48] sm:$0xff]
    %v827 = vld [vmem:[#allocation11 + $0x50] sm:$0xff]
    %v828 = vld [vmem:[#allocation11 + $0x58] sm:$0xff]
    %v829 = vld [vmem:[#allocation11 + $0x60] sm:$0xff]
    %v830 = vld [vmem:[#allocation11 + $0x68] sm:$0xff]
    %v831 = vld [vmem:[#allocation11 + $0x70] sm:$0xff]
    %v832 = vld [vmem:[#allocation11 + $0x78] sm:$0xff]
    %v833 = vld [vmem:[#allocation11 + $0x80] sm:$0xff]
    %v834 = vld [vmem:[#allocation11 + $0x88] sm:$0xff]
    %v835 = vld [vmem:[#allocation11 + $0x90] sm:$0xff]
    %v836 = vld [vmem:[#allocation11 + $0x98] sm:$0xff]
    %v837 = vld [vmem:[#allocation11 + $0xa0] sm:$0xff]
    %v838 = vld [vmem:[#allocation11 + $0xa8] sm:$0xff]
    %v839 = vld [vmem:[#allocation11 + $0xb0] sm:$0xff]
    %v840 = vld [vmem:[#allocation11 + $0xb8] sm:$0xff]
    %v841 = vld [vmem:[#allocation11 + $0xc0] sm:$0xff]
    %v842 = vld [vmem:[#allocation11 + $0xc8] sm:$0xff]
    %v843 = vld [vmem:[#allocation11 + $0xd0] sm:$0xff]
    %v844 = vld [vmem:[#allocation11 + $0xd8] sm:$0xff]
    %v845 = vld [vmem:[#allocation11 + $0xe0] sm:$0xff]
    %v846 = vld [vmem:[#allocation11 + $0xe8] sm:$0xff]
    %v847 = vld [vmem:[#allocation11 + $0xf0] sm:$0xff]
    %v848 = vld [vmem:[#allocation11 + $0xf8] sm:$0xff]
    %v849 = vld [vmem:[#allocation11 + $0x100] sm:$0xff]
    %v850 = vld [vmem:[#allocation11 + $0x108] sm:$0xff]
    %v851 = vld [vmem:[#allocation11 + $0x110] sm:$0xff]
    %v852 = vld [vmem:[#allocation11 + $0x118] sm:$0xff]
    %v853 = vld [vmem:[#allocation11 + $0x120] sm:$0xff]
    %v854 = vld [vmem:[#allocation11 + $0x128] sm:$0xff]
    %v855 = vld [vmem:[#allocation11 + $0x130] sm:$0xff]
    %v856 = vld [vmem:[#allocation11 + $0x138] sm:$0xff]
    %v857 = vld [vmem:[#allocation11 + $0x140] sm:$0xff]
    %v858 = vld [vmem:[#allocation11 + $0x148] sm:$0xff]
    %v859 = vld [vmem:[#allocation11 + $0x150] sm:$0xff]
    %v860 = vld [vmem:[#allocation11 + $0x158] sm:$0xff]
    %v861 = vld [vmem:[#allocation11 + $0x160] sm:$0xff]
    %v862 = vld [vmem:[#allocation11 + $0x168] sm:$0xff]
    %v863 = vld [vmem:[#allocation11 + $0x170] sm:$0xff]
    %v864 = vld [vmem:[#allocation11 + $0x178] sm:$0xff]
    %v865 = vld [vmem:[#allocation11 + $0x180] sm:$0xff]
    %v866 = vld [vmem:[#allocation11 + $0x188] sm:$0xff]
    %v867 = vld [vmem:[#allocation11 + $0x190] sm:$0xff]
    %v868 = vld [vmem:[#allocation11 + $0x198] sm:$0xff]
    %v869 = vld [vmem:[#allocation11 + $0x1a0] sm:$0xff]
    %v870 = vld [vmem:[#allocation11 + $0x1a8] sm:$0xff]
    %v871 = vld [vmem:[#allocation11 + $0x1b0] sm:$0xff]
    %v872 = vld [vmem:[#allocation11 + $0x1b8] sm:$0xff]
    %v873 = vld [vmem:[#allocation11 + $0x1c0] sm:$0xff]
    %v874 = vld [vmem:[#allocation11 + $0x1c8] sm:$0xff]
    %v875 = vld [vmem:[#allocation11 + $0x1d0] sm:$0xff]
    %v876 = vld [vmem:[#allocation11 + $0x1d8] sm:$0xff]
    %v877 = vld [vmem:[#allocation11 + $0x1e0] sm:$0xff]
    %v878 = vld [vmem:[#allocation11 + $0x1e8] sm:$0xff]
    %v879 = vld [vmem:[#allocation11 + $0x1f0] sm:$0xff]
    %v880 = vld [vmem:[#allocation11 + $0x1f8] sm:$0xff]
    %v881 = vld [vmem:[#allocation11 + $0x200] sm:$0xff]
    %v882 = vld [vmem:[#allocation11 + $0x208] sm:$0xff]
    %v883 = vld [vmem:[#allocation11 + $0x210] sm:$0xff]
    %v884 = vld [vmem:[#allocation11 + $0x218] sm:$0xff]
    %v885 = vld [vmem:[#allocation11 + $0x220] sm:$0xff]
    %v886 = vld [vmem:[#allocation11 + $0x228] sm:$0xff]
    %v887 = vld [vmem:[#allocation11 + $0x230] sm:$0xff]
    %v888 = vld [vmem:[#allocation11 + $0x238] sm:$0xff]
    %v889 = vld [vmem:[#allocation11 + $0x240] sm:$0xff]
    %v890 = vld [vmem:[#allocation11 + $0x248] sm:$0xff]
    %v891 = vld [vmem:[#allocation11 + $0x250] sm:$0xff]
    %v892 = vld [vmem:[#allocation11 + $0x258] sm:$0xff]
    %v893 = vld [vmem:[#allocation11 + $0x260] sm:$0xff]
    %v894 = vld [vmem:[#allocation11 + $0x268] sm:$0xff]
    %v895 = vld [vmem:[#allocation11 + $0x270] sm:$0xff]
    %v896 = vld [vmem:[#allocation11 + $0x278] sm:$0xff]
    %v897 = vld [vmem:[#allocation11 + $0x280] sm:$0xff]
    %v898 = vld [vmem:[#allocation11 + $0x288] sm:$0xff]
    %v899 = vld [vmem:[#allocation11 + $0x290] sm:$0xff]
    %v900 = vld [vmem:[#allocation11 + $0x298] sm:$0xff]
    %v901 = vld [vmem:[#allocation11 + $0x2a0] sm:$0xff]
    %v902 = vld [vmem:[#allocation11 + $0x2a8] sm:$0xff]
    %v903 = vld [vmem:[#allocation11 + $0x2b0] sm:$0xff]
    %v904 = vld [vmem:[#allocation11 + $0x2b8] sm:$0xff]
    %v905 = vld [vmem:[#allocation11 + $0x2c0] sm:$0xff]
    %v906 = vld [vmem:[#allocation11 + $0x2c8] sm:$0xff]
    %v907 = vld [vmem:[#allocation11 + $0x2d0] sm:$0xff]
    %v908 = vld [vmem:[#allocation11 + $0x2d8] sm:$0xff]
    %v909 = vld [vmem:[#allocation11 + $0x2e0] sm:$0xff]
    %v910 = vld [vmem:[#allocation11 + $0x2e8] sm:$0xff]
    %v911 = vld [vmem:[#allocation11 + $0x2f0] sm:$0xff]
    %v912 = vld [vmem:[#allocation11 + $0x2f8] sm:$0xff]
    %v913 = vld [vmem:[#allocation11 + $0x300] sm:$0xff]
    %v914 = vld [vmem:[#allocation11 + $0x308] sm:$0xff]
    %v915 = vld [vmem:[#allocation11 + $0x310] sm:$0xff]
    %v916 = vld [vmem:[#allocation11 + $0x318] sm:$0xff]
    %v917 = vld [vmem:[#allocation11 + $0x320] sm:$0xff]
    %v918 = vld [vmem:[#allocation11 + $0x328] sm:$0xff]
    %v919 = vld [vmem:[#allocation11 + $0x330] sm:$0xff]
    %v920 = vld [vmem:[#allocation11 + $0x338] sm:$0xff]
    %v921 = vld [vmem:[#allocation11 + $0x340] sm:$0xff]
    %v922 = vld [vmem:[#allocation11 + $0x348] sm:$0xff]
    %v923 = vld [vmem:[#allocation11 + $0x350] sm:$0xff]
    %v924 = vld [vmem:[#allocation11 + $0x358] sm:$0xff]
    %v925 = vld [vmem:[#allocation11 + $0x360] sm:$0xff]
    %v926 = vld [vmem:[#allocation11 + $0x368] sm:$0xff]
    %v927 = vld [vmem:[#allocation11 + $0x370] sm:$0xff]
    %v928 = vld [vmem:[#allocation11 + $0x378] sm:$0xff]
    %v929 = vld [vmem:[#allocation11 + $0x380] sm:$0xff]
    %v930 = vld [vmem:[#allocation11 + $0x388] sm:$0xff]
    %v931 = vld [vmem:[#allocation11 + $0x390] sm:$0xff]
    %v932 = vld [vmem:[#allocation11 + $0x398] sm:$0xff]
    %v933 = vld [vmem:[#allocation11 + $0x3a0] sm:$0xff]
    %v934 = vld [vmem:[#allocation11 + $0x3a8] sm:$0xff]
    %v935 = vld [vmem:[#allocation11 + $0x3b0] sm:$0xff]
    %v936 = vld [vmem:[#allocation11 + $0x3b8] sm:$0xff]
    %v937 = vld [vmem:[#allocation11 + $0x3c0] sm:$0xff]
    %v938 = vld [vmem:[#allocation11 + $0x3c8] sm:$0xff]
    %v939 = vld [vmem:[#allocation11 + $0x3d0] sm:$0xff]
    %v940 = vld [vmem:[#allocation11 + $0x3d8] sm:$0xff]
    %v941 = vld [vmem:[#allocation11 + $0x3e0] sm:$0xff]
    %v942 = vld [vmem:[#allocation11 + $0x3e8] sm:$0xff]
    %v943 = vld [vmem:[#allocation11 + $0x3f0] sm:$0xff]
    %v944 = vld [vmem:[#allocation11 + $0x3f8] sm:$0xff]
    %v945 = vld [vmem:[#allocation11 + $0x400] sm:$0xff]
    %v946 = vld [vmem:[#allocation11 + $0x408] sm:$0xff]
    %v947 = vld [vmem:[#allocation11 + $0x410] sm:$0xff]
    %v948 = vld [vmem:[#allocation11 + $0x418] sm:$0xff]
    %v949 = vld [vmem:[#allocation11 + $0x420] sm:$0xff]
    %v950 = vld [vmem:[#allocation11 + $0x428] sm:$0xff]
    %v951 = vld [vmem:[#allocation11 + $0x430] sm:$0xff]
    %v952 = vld [vmem:[#allocation11 + $0x438] sm:$0xff]
    %v953 = vld [vmem:[#allocation11 + $0x440] sm:$0xff]
    %v954 = vld [vmem:[#allocation11 + $0x448] sm:$0xff]
    %v955 = vld [vmem:[#allocation11 + $0x450] sm:$0xff]
    %v956 = vld [vmem:[#allocation11 + $0x458] sm:$0xff]
    %v957 = vld [vmem:[#allocation11 + $0x460] sm:$0xff]
    %v958 = vld [vmem:[#allocation11 + $0x468] sm:$0xff]
    %v959 = vld [vmem:[#allocation11 + $0x470] sm:$0xff]
    %v960 = vld [vmem:[#allocation11 + $0x478] sm:$0xff]
    %v961 = vld [vmem:[#allocation11 + $0x480] sm:$0xff]
    %v962 = vld [vmem:[#allocation11 + $0x488] sm:$0xff]
    %v963 = vld [vmem:[#allocation11 + $0x490] sm:$0xff]
    %v964 = vld [vmem:[#allocation11 + $0x498] sm:$0xff]
    %v965 = vld [vmem:[#allocation11 + $0x4a0] sm:$0xff]
    %v966 = vld [vmem:[#allocation11 + $0x4a8] sm:$0xff]
    %v967 = vld [vmem:[#allocation11 + $0x4b0] sm:$0xff]
    %v968 = vld [vmem:[#allocation11 + $0x4b8] sm:$0xff]
    %v969 = vld [vmem:[#allocation11 + $0x4c0] sm:$0xff]
    %v970 = vld [vmem:[#allocation11 + $0x4c8] sm:$0xff]
    %v971 = vld [vmem:[#allocation11 + $0x4d0] sm:$0xff]
    %v972 = vld [vmem:[#allocation11 + $0x4d8] sm:$0xff]
    %v973 = vld [vmem:[#allocation11 + $0x4e0] sm:$0xff]
    %v974 = vld [vmem:[#allocation11 + $0x4e8] sm:$0xff]
    %v975 = vld [vmem:[#allocation11 + $0x4f0] sm:$0xff]
    %v976 = vld [vmem:[#allocation11 + $0x4f8] sm:$0xff]
    %v977 = vld [vmem:[#allocation11 + $0x500] sm:$0xff]
    %v978 = vld [vmem:[#allocation11 + $0x508] sm:$0xff]
    %v979 = vld [vmem:[#allocation11 + $0x510] sm:$0xff]
    %v980 = vld [vmem:[#allocation11 + $0x518] sm:$0xff]
    %v981 = vld [vmem:[#allocation11 + $0x520] sm:$0xff]
    %v982 = vld [vmem:[#allocation11 + $0x528] sm:$0xff]
    %v983 = vld [vmem:[#allocation11 + $0x530] sm:$0xff]
    %v984 = vld [vmem:[#allocation11 + $0x538] sm:$0xff]
    %v985 = vld [vmem:[#allocation11 + $0x540] sm:$0xff]
    %v986 = vld [vmem:[#allocation11 + $0x548] sm:$0xff]
    %v987 = vld [vmem:[#allocation11 + $0x550] sm:$0xff]
    %v988 = vld [vmem:[#allocation11 + $0x558] sm:$0xff]
    %v989 = vld [vmem:[#allocation11 + $0x560] sm:$0xff]
    %v990 = vld [vmem:[#allocation11 + $0x568] sm:$0xff]
    %v991 = vld [vmem:[#allocation11 + $0x570] sm:$0xff]
    %v992 = vld [vmem:[#allocation11 + $0x578] sm:$0xff]
    %v993 = vld [vmem:[#allocation11 + $0x580] sm:$0xff]
    %v994 = vld [vmem:[#allocation11 + $0x588] sm:$0xff]
    %v995 = vld [vmem:[#allocation11 + $0x590] sm:$0xff]
    %v996 = vld [vmem:[#allocation11 + $0x598] sm:$0xff]
    %v997 = vld [vmem:[#allocation11 + $0x5a0] sm:$0xff]
    %v998 = vld [vmem:[#allocation11 + $0x5a8] sm:$0xff]
    %v999 = vld [vmem:[#allocation11 + $0x5b0] sm:$0xff]
    %v1000 = vld [vmem:[#allocation11 + $0x5b8] sm:$0xff]
    %v1001 = vld [vmem:[#allocation11 + $0x5c0] sm:$0xff]
    %v1002 = vld [vmem:[#allocation11 + $0x5c8] sm:$0xff]
    %v1003 = vld [vmem:[#allocation11 + $0x5d0] sm:$0xff]
    %v1004 = vld [vmem:[#allocation11 + $0x5d8] sm:$0xff]
    %v1005 = vld [vmem:[#allocation11 + $0x5e0] sm:$0xff]
    %v1006 = vld [vmem:[#allocation11 + $0x5e8] sm:$0xff]
    %v1007 = vld [vmem:[#allocation11 + $0x5f0] sm:$0xff]
    %v1008 = vld [vmem:[#allocation11 + $0x5f8] sm:$0xff]
    %v1009 = vld [vmem:[#allocation11 + $0x600] sm:$0xff]
    %v1010 = vld [vmem:[#allocation11 + $0x608] sm:$0xff]
    %v1011 = vld [vmem:[#allocation11 + $0x610] sm:$0xff]
    %v1012 = vld [vmem:[#allocation11 + $0x618] sm:$0xff]
    %v1013 = vld [vmem:[#allocation11 + $0x620] sm:$0xff]
    %v1014 = vld [vmem:[#allocation11 + $0x628] sm:$0xff]
    %v1015 = vld [vmem:[#allocation11 + $0x630] sm:$0xff]
    %v1016 = vld [vmem:[#allocation11 + $0x638] sm:$0xff]
    %v1017 = vld [vmem:[#allocation11 + $0x640] sm:$0xff]
    %v1018 = vld [vmem:[#allocation11 + $0x648] sm:$0xff]
    %v1019 = vld [vmem:[#allocation11 + $0x650] sm:$0xff]
    %v1020 = vld [vmem:[#allocation11 + $0x658] sm:$0xff]
    %v1021 = vld [vmem:[#allocation11 + $0x660] sm:$0xff]
    %v1022 = vld [vmem:[#allocation11 + $0x668] sm:$0xff]
    %v1023 = vld [vmem:[#allocation11 + $0x670] sm:$0xff]
    %v1024 = vld [vmem:[#allocation11 + $0x678] sm:$0xff]
    %v1025 = vld [vmem:[#allocation11 + $0x680] sm:$0xff]
    %v1026 = vld [vmem:[#allocation11 + $0x688] sm:$0xff]
    %v1027 = vld [vmem:[#allocation11 + $0x690] sm:$0xff]
    %v1028 = vld [vmem:[#allocation11 + $0x698] sm:$0xff]
    %v1029 = vld [vmem:[#allocation11 + $0x6a0] sm:$0xff]
    %v1030 = vld [vmem:[#allocation11 + $0x6a8] sm:$0xff]
    %v1031 = vld [vmem:[#allocation11 + $0x6b0] sm:$0xff]
    %v1032 = vld [vmem:[#allocation11 + $0x6b8] sm:$0xff]
    %v1033 = vld [vmem:[#allocation11 + $0x6c0] sm:$0xff]
    %v1034 = vld [vmem:[#allocation11 + $0x6c8] sm:$0xff]
    %v1035 = vld [vmem:[#allocation11 + $0x6d0] sm:$0xff]
    %v1036 = vld [vmem:[#allocation11 + $0x6d8] sm:$0xff]
    %v1037 = vld [vmem:[#allocation11 + $0x6e0] sm:$0xff]
    %v1038 = vld [vmem:[#allocation11 + $0x6e8] sm:$0xff]
    %v1039 = vld [vmem:[#allocation11 + $0x6f0] sm:$0xff]
    %v1040 = vld [vmem:[#allocation11 + $0x6f8] sm:$0xff]
    %v1041 = vld [vmem:[#allocation11 + $0x700] sm:$0xff]
    %v1042 = vld [vmem:[#allocation11 + $0x708] sm:$0xff]
    %v1043 = vld [vmem:[#allocation11 + $0x710] sm:$0xff]
    %v1044 = vld [vmem:[#allocation11 + $0x718] sm:$0xff]
    %v1045 = vld [vmem:[#allocation11 + $0x720] sm:$0xff]
    %v1046 = vld [vmem:[#allocation11 + $0x728] sm:$0xff]
    %v1047 = vld [vmem:[#allocation11 + $0x730] sm:$0xff]
    %v1048 = vld [vmem:[#allocation11 + $0x738] sm:$0xff]
    %v1049 = vld [vmem:[#allocation11 + $0x740] sm:$0xff]
    %v1050 = vld [vmem:[#allocation11 + $0x748] sm:$0xff]
    %v1051 = vld [vmem:[#allocation11 + $0x750] sm:$0xff]
    %v1052 = vld [vmem:[#allocation11 + $0x758] sm:$0xff]
    %v1053 = vld [vmem:[#allocation11 + $0x760] sm:$0xff]
    %v1054 = vld [vmem:[#allocation11 + $0x768] sm:$0xff]
    %v1055 = vld [vmem:[#allocation11 + $0x770] sm:$0xff]
    %v1056 = vld [vmem:[#allocation11 + $0x778] sm:$0xff]
    %v1057 = vld [vmem:[#allocation11 + $0x780] sm:$0xff]
    %v1058 = vld [vmem:[#allocation11 + $0x788] sm:$0xff]
    %v1059 = vld [vmem:[#allocation11 + $0x790] sm:$0xff]
    %v1060 = vld [vmem:[#allocation11 + $0x798] sm:$0xff]
    %v1061 = vld [vmem:[#allocation11 + $0x7a0] sm:$0xff]
    %v1062 = vld [vmem:[#allocation11 + $0x7a8] sm:$0xff]
    %v1063 = vld [vmem:[#allocation11 + $0x7b0] sm:$0xff]
    %v1064 = vld [vmem:[#allocation11 + $0x7b8] sm:$0xff]
    %v1065 = vld [vmem:[#allocation11 + $0x7c0] sm:$0xff]
    %v1066 = vld [vmem:[#allocation11 + $0x7c8] sm:$0xff]
    %v1067 = vld [vmem:[#allocation11 + $0x7d0] sm:$0xff]
    %v1068 = vld [vmem:[#allocation11 + $0x7d8] sm:$0xff]
    %v1069 = vld [vmem:[#allocation11 + $0x7e0] sm:$0xff]
    %v1070 = vld [vmem:[#allocation11 + $0x7e8] sm:$0xff]
    %v1071 = vld [vmem:[#allocation11 + $0x7f0] sm:$0xff]
    %v1072 = vld [vmem:[#allocation11 + $0x7f8] sm:$0xff]
    %v1073 = vld [vmem:[#allocation13] sm:$0xff]
    %v1075 = vlaneseq
    %v1076 = vshrl.u32 %v1075, 7
    %v1077 = vsub.s32 0, %v1076
    %v1078 = vrot.slane %v1073, %v1077
    %v1079 = vlaneseq
    %v1080 = vshrl.u32 %v1079, 7
    %v1081 = vsub.s32 1, %v1080
    %v1082 = vrot.slane %v1073, %v1081
    %v1083 = vlaneseq
    %v1084 = vshrl.u32 %v1083, 7
    %v1085 = vsub.s32 2, %v1084
    %v1086 = vrot.slane %v1073, %v1085
    %v1087 = vlaneseq
    %v1088 = vshrl.u32 %v1087, 7
    %v1089 = vsub.s32 3, %v1088
    %v1090 = vrot.slane %v1073, %v1089
    %v1091 = vlaneseq
    %v1092 = vshrl.u32 %v1091, 7
    %v1093 = vsub.s32 4, %v1092
    %v1094 = vrot.slane %v1073, %v1093
    %v1095 = vlaneseq
    %v1096 = vshrl.u32 %v1095, 7
    %v1097 = vsub.s32 5, %v1096
    %v1098 = vrot.slane %v1073, %v1097
    %v1099 = vlaneseq
    %v1100 = vshrl.u32 %v1099, 7
    %v1101 = vsub.s32 6, %v1100
    %v1102 = vrot.slane %v1073, %v1101
    %v1103 = vlaneseq
    %v1104 = vshrl.u32 %v1103, 7
    %v1105 = vsub.s32 7, %v1104
    %v1106 = vrot.slane %v1073, %v1105
    %v1371 = vunpack.c.l.b16 %v817
    %v1372 = vunpack.c.h.b16 %v817
    %v1373 = vunpack.c.l.b16 %v818
    %v1374 = vunpack.c.h.b16 %v818
    %v1375 = vunpack.c.l.b16 %v819
    %v1376 = vunpack.c.h.b16 %v819
    %v1377 = vunpack.c.l.b16 %v820
    %v1378 = vunpack.c.h.b16 %v820
    %v1379 = vunpack.c.l.b16 %v821
    %v1380 = vunpack.c.h.b16 %v821
    %v1381 = vunpack.c.l.b16 %v822
    %v1382 = vunpack.c.h.b16 %v822
    %v1383 = vunpack.c.l.b16 %v823
    %v1384 = vunpack.c.h.b16 %v823
    %v1385 = vunpack.c.l.b16 %v824
    %v1386 = vunpack.c.h.b16 %v824
    %v1387 = vunpack.c.l.b16 %v825
    %v1388 = vunpack.c.h.b16 %v825
    %v1389 = vunpack.c.l.b16 %v826
    %v1390 = vunpack.c.h.b16 %v826
    %v1391 = vunpack.c.l.b16 %v827
    %v1392 = vunpack.c.h.b16 %v827
    %v1393 = vunpack.c.l.b16 %v828
    %v1394 = vunpack.c.h.b16 %v828
    %v1395 = vunpack.c.l.b16 %v829
    %v1396 = vunpack.c.h.b16 %v829
    %v1397 = vunpack.c.l.b16 %v830
    %v1398 = vunpack.c.h.b16 %v830
    %v1399 = vunpack.c.l.b16 %v831
    %v1400 = vunpack.c.h.b16 %v831
    %v1401 = vunpack.c.l.b16 %v832
    %v1402 = vunpack.c.h.b16 %v832
    %v1403 = vunpack.c.l.b16 %v833
    %v1404 = vunpack.c.h.b16 %v833
    %v1405 = vunpack.c.l.b16 %v834
    %v1406 = vunpack.c.h.b16 %v834
    %v1407 = vunpack.c.l.b16 %v835
    %v1408 = vunpack.c.h.b16 %v835
    %v1409 = vunpack.c.l.b16 %v836
    %v1410 = vunpack.c.h.b16 %v836
    %v1411 = vunpack.c.l.b16 %v837
    %v1412 = vunpack.c.h.b16 %v837
    %v1413 = vunpack.c.l.b16 %v838
    %v1414 = vunpack.c.h.b16 %v838
    %v1415 = vunpack.c.l.b16 %v839
    %v1416 = vunpack.c.h.b16 %v839
    %v1417 = vunpack.c.l.b16 %v840
    %v1418 = vunpack.c.h.b16 %v840
    %v1419 = vunpack.c.l.b16 %v841
    %v1420 = vunpack.c.h.b16 %v841
    %v1421 = vunpack.c.l.b16 %v842
    %v1422 = vunpack.c.h.b16 %v842
    %v1423 = vunpack.c.l.b16 %v843
    %v1424 = vunpack.c.h.b16 %v843
    %v1425 = vunpack.c.l.b16 %v844
    %v1426 = vunpack.c.h.b16 %v844
    %v1427 = vunpack.c.l.b16 %v845
    %v1428 = vunpack.c.h.b16 %v845
    %v1429 = vunpack.c.l.b16 %v846
    %v1430 = vunpack.c.h.b16 %v846
    %v1431 = vunpack.c.l.b16 %v847
    %v1432 = vunpack.c.h.b16 %v847
    %v1433 = vunpack.c.l.b16 %v848
    %v1434 = vunpack.c.h.b16 %v848
    %v1435 = vunpack.c.l.b16 %v849
    %v1436 = vunpack.c.h.b16 %v849
    %v1437 = vunpack.c.l.b16 %v850
    %v1438 = vunpack.c.h.b16 %v850
    %v1439 = vunpack.c.l.b16 %v851
    %v1440 = vunpack.c.h.b16 %v851
    %v1441 = vunpack.c.l.b16 %v852
    %v1442 = vunpack.c.h.b16 %v852
    %v1443 = vunpack.c.l.b16 %v853
    %v1444 = vunpack.c.h.b16 %v853
    %v1445 = vunpack.c.l.b16 %v854
    %v1446 = vunpack.c.h.b16 %v854
    %v1447 = vunpack.c.l.b16 %v855
    %v1448 = vunpack.c.h.b16 %v855
    %v1449 = vunpack.c.l.b16 %v856
    %v1450 = vunpack.c.h.b16 %v856
    %v1451 = vunpack.c.l.b16 %v857
    %v1452 = vunpack.c.h.b16 %v857
    %v1453 = vunpack.c.l.b16 %v858
    %v1454 = vunpack.c.h.b16 %v858
    %v1455 = vunpack.c.l.b16 %v859
    %v1456 = vunpack.c.h.b16 %v859
    %v1457 = vunpack.c.l.b16 %v860
    %v1458 = vunpack.c.h.b16 %v860
    %v1459 = vunpack.c.l.b16 %v861
    %v1460 = vunpack.c.h.b16 %v861
    %v1461 = vunpack.c.l.b16 %v862
    %v1462 = vunpack.c.h.b16 %v862
    %v1463 = vunpack.c.l.b16 %v863
    %v1464 = vunpack.c.h.b16 %v863
    %v1465 = vunpack.c.l.b16 %v864
    %v1466 = vunpack.c.h.b16 %v864
    %v1467 = vunpack.c.l.b16 %v865
    %v1468 = vunpack.c.h.b16 %v865
    %v1469 = vunpack.c.l.b16 %v866
    %v1470 = vunpack.c.h.b16 %v866
    %v1471 = vunpack.c.l.b16 %v867
    %v1472 = vunpack.c.h.b16 %v867
    %v1473 = vunpack.c.l.b16 %v868
    %v1474 = vunpack.c.h.b16 %v868
    %v1475 = vunpack.c.l.b16 %v869
    %v1476 = vunpack.c.h.b16 %v869
    %v1477 = vunpack.c.l.b16 %v870
    %v1478 = vunpack.c.h.b16 %v870
    %v1479 = vunpack.c.l.b16 %v871
    %v1480 = vunpack.c.h.b16 %v871
    %v1481 = vunpack.c.l.b16 %v872
    %v1482 = vunpack.c.h.b16 %v872
    %v1483 = vunpack.c.l.b16 %v873
    %v1484 = vunpack.c.h.b16 %v873
    %v1485 = vunpack.c.l.b16 %v874
    %v1486 = vunpack.c.h.b16 %v874
    %v1487 = vunpack.c.l.b16 %v875
    %v1488 = vunpack.c.h.b16 %v875
    %v1489 = vunpack.c.l.b16 %v876
    %v1490 = vunpack.c.h.b16 %v876
    %v1491 = vunpack.c.l.b16 %v877
    %v1492 = vunpack.c.h.b16 %v877
    %v1493 = vunpack.c.l.b16 %v878
    %v1494 = vunpack.c.h.b16 %v878
    %v1495 = vunpack.c.l.b16 %v879
    %v1496 = vunpack.c.h.b16 %v879
    %v1497 = vunpack.c.l.b16 %v880
    %v1498 = vunpack.c.h.b16 %v880
    %v1499 = vunpack.c.l.b16 %v881
    %v1500 = vunpack.c.h.b16 %v881
    %v1501 = vunpack.c.l.b16 %v882
    %v1502 = vunpack.c.h.b16 %v882
    %v1503 = vunpack.c.l.b16 %v883
    %v1504 = vunpack.c.h.b16 %v883
    %v1505 = vunpack.c.l.b16 %v884
    %v1506 = vunpack.c.h.b16 %v884
    %v1507 = vunpack.c.l.b16 %v885
    %v1508 = vunpack.c.h.b16 %v885
    %v1509 = vunpack.c.l.b16 %v886
    %v1510 = vunpack.c.h.b16 %v886
    %v1511 = vunpack.c.l.b16 %v887
    %v1512 = vunpack.c.h.b16 %v887
    %v1513 = vunpack.c.l.b16 %v888
    %v1514 = vunpack.c.h.b16 %v888
    %v1515 = vunpack.c.l.b16 %v889
    %v1516 = vunpack.c.h.b16 %v889
    %v1517 = vunpack.c.l.b16 %v890
    %v1518 = vunpack.c.h.b16 %v890
    %v1519 = vunpack.c.l.b16 %v891
    %v1520 = vunpack.c.h.b16 %v891
    %v1521 = vunpack.c.l.b16 %v892
    %v1522 = vunpack.c.h.b16 %v892
    %v1523 = vunpack.c.l.b16 %v893
    %v1524 = vunpack.c.h.b16 %v893
    %v1525 = vunpack.c.l.b16 %v894
    %v1526 = vunpack.c.h.b16 %v894
    %v1527 = vunpack.c.l.b16 %v895
    %v1528 = vunpack.c.h.b16 %v895
    %v1529 = vunpack.c.l.b16 %v896
    %v1530 = vunpack.c.h.b16 %v896
    %v1531 = vunpack.c.l.b16 %v897
    %v1532 = vunpack.c.h.b16 %v897
    %v1533 = vunpack.c.l.b16 %v898
    %v1534 = vunpack.c.h.b16 %v898
    %v1535 = vunpack.c.l.b16 %v899
    %v1536 = vunpack.c.h.b16 %v899
    %v1537 = vunpack.c.l.b16 %v900
    %v1538 = vunpack.c.h.b16 %v900
    %v1539 = vunpack.c.l.b16 %v901
    %v1540 = vunpack.c.h.b16 %v901
    %v1541 = vunpack.c.l.b16 %v902
    %v1542 = vunpack.c.h.b16 %v902
    %v1543 = vunpack.c.l.b16 %v903
    %v1544 = vunpack.c.h.b16 %v903
    %v1545 = vunpack.c.l.b16 %v904
    %v1546 = vunpack.c.h.b16 %v904
    %v1547 = vunpack.c.l.b16 %v905
    %v1548 = vunpack.c.h.b16 %v905
    %v1549 = vunpack.c.l.b16 %v906
    %v1550 = vunpack.c.h.b16 %v906
    %v1551 = vunpack.c.l.b16 %v907
    %v1552 = vunpack.c.h.b16 %v907
    %v1553 = vunpack.c.l.b16 %v908
    %v1554 = vunpack.c.h.b16 %v908
    %v1555 = vunpack.c.l.b16 %v909
    %v1556 = vunpack.c.h.b16 %v909
    %v1557 = vunpack.c.l.b16 %v910
    %v1558 = vunpack.c.h.b16 %v910
    %v1559 = vunpack.c.l.b16 %v911
    %v1560 = vunpack.c.h.b16 %v911
    %v1561 = vunpack.c.l.b16 %v912
    %v1562 = vunpack.c.h.b16 %v912
    %v1563 = vunpack.c.l.b16 %v913
    %v1564 = vunpack.c.h.b16 %v913
    %v1565 = vunpack.c.l.b16 %v914
    %v1566 = vunpack.c.h.b16 %v914
    %v1567 = vunpack.c.l.b16 %v915
    %v1568 = vunpack.c.h.b16 %v915
    %v1569 = vunpack.c.l.b16 %v916
    %v1570 = vunpack.c.h.b16 %v916
    %v1571 = vunpack.c.l.b16 %v917
    %v1572 = vunpack.c.h.b16 %v917
    %v1573 = vunpack.c.l.b16 %v918
    %v1574 = vunpack.c.h.b16 %v918
    %v1575 = vunpack.c.l.b16 %v919
    %v1576 = vunpack.c.h.b16 %v919
    %v1577 = vunpack.c.l.b16 %v920
    %v1578 = vunpack.c.h.b16 %v920
    %v1579 = vunpack.c.l.b16 %v921
    %v1580 = vunpack.c.h.b16 %v921
    %v1581 = vunpack.c.l.b16 %v922
    %v1582 = vunpack.c.h.b16 %v922
    %v1583 = vunpack.c.l.b16 %v923
    %v1584 = vunpack.c.h.b16 %v923
    %v1585 = vunpack.c.l.b16 %v924
    %v1586 = vunpack.c.h.b16 %v924
    %v1587 = vunpack.c.l.b16 %v925
    %v1588 = vunpack.c.h.b16 %v925
    %v1589 = vunpack.c.l.b16 %v926
    %v1590 = vunpack.c.h.b16 %v926
    %v1591 = vunpack.c.l.b16 %v927
    %v1592 = vunpack.c.h.b16 %v927
    %v1593 = vunpack.c.l.b16 %v928
    %v1594 = vunpack.c.h.b16 %v928
    %v1595 = vunpack.c.l.b16 %v929
    %v1596 = vunpack.c.h.b16 %v929
    %v1597 = vunpack.c.l.b16 %v930
    %v1598 = vunpack.c.h.b16 %v930
    %v1599 = vunpack.c.l.b16 %v931
    %v1600 = vunpack.c.h.b16 %v931
    %v1601 = vunpack.c.l.b16 %v932
    %v1602 = vunpack.c.h.b16 %v932
    %v1603 = vunpack.c.l.b16 %v933
    %v1604 = vunpack.c.h.b16 %v933
    %v1605 = vunpack.c.l.b16 %v934
    %v1606 = vunpack.c.h.b16 %v934
    %v1607 = vunpack.c.l.b16 %v935
    %v1608 = vunpack.c.h.b16 %v935
    %v1609 = vunpack.c.l.b16 %v936
    %v1610 = vunpack.c.h.b16 %v936
    %v1611 = vunpack.c.l.b16 %v937
    %v1612 = vunpack.c.h.b16 %v937
    %v1613 = vunpack.c.l.b16 %v938
    %v1614 = vunpack.c.h.b16 %v938
    %v1615 = vunpack.c.l.b16 %v939
    %v1616 = vunpack.c.h.b16 %v939
    %v1617 = vunpack.c.l.b16 %v940
    %v1618 = vunpack.c.h.b16 %v940
    %v1619 = vunpack.c.l.b16 %v941
    %v1620 = vunpack.c.h.b16 %v941
    %v1621 = vunpack.c.l.b16 %v942
    %v1622 = vunpack.c.h.b16 %v942
    %v1623 = vunpack.c.l.b16 %v943
    %v1624 = vunpack.c.h.b16 %v943
    %v1625 = vunpack.c.l.b16 %v944
    %v1626 = vunpack.c.h.b16 %v944
    %v1627 = vunpack.c.l.b16 %v945
    %v1628 = vunpack.c.h.b16 %v945
    %v1629 = vunpack.c.l.b16 %v946
    %v1630 = vunpack.c.h.b16 %v946
    %v1631 = vunpack.c.l.b16 %v947
    %v1632 = vunpack.c.h.b16 %v947
    %v1633 = vunpack.c.l.b16 %v948
    %v1634 = vunpack.c.h.b16 %v948
    %v1635 = vunpack.c.l.b16 %v949
    %v1636 = vunpack.c.h.b16 %v949
    %v1637 = vunpack.c.l.b16 %v950
    %v1638 = vunpack.c.h.b16 %v950
    %v1639 = vunpack.c.l.b16 %v951
    %v1640 = vunpack.c.h.b16 %v951
    %v1641 = vunpack.c.l.b16 %v952
    %v1642 = vunpack.c.h.b16 %v952
    %v1643 = vunpack.c.l.b16 %v953
    %v1644 = vunpack.c.h.b16 %v953
    %v1645 = vunpack.c.l.b16 %v954
    %v1646 = vunpack.c.h.b16 %v954
    %v1647 = vunpack.c.l.b16 %v955
    %v1648 = vunpack.c.h.b16 %v955
    %v1649 = vunpack.c.l.b16 %v956
    %v1650 = vunpack.c.h.b16 %v956
    %v1651 = vunpack.c.l.b16 %v957
    %v1652 = vunpack.c.h.b16 %v957
    %v1653 = vunpack.c.l.b16 %v958
    %v1654 = vunpack.c.h.b16 %v958
    %v1655 = vunpack.c.l.b16 %v959
    %v1656 = vunpack.c.h.b16 %v959
    %v1657 = vunpack.c.l.b16 %v960
    %v1658 = vunpack.c.h.b16 %v960
    %v1659 = vunpack.c.l.b16 %v961
    %v1660 = vunpack.c.h.b16 %v961
    %v1661 = vunpack.c.l.b16 %v962
    %v1662 = vunpack.c.h.b16 %v962
    %v1663 = vunpack.c.l.b16 %v963
    %v1664 = vunpack.c.h.b16 %v963
    %v1665 = vunpack.c.l.b16 %v964
    %v1666 = vunpack.c.h.b16 %v964
    %v1667 = vunpack.c.l.b16 %v965
    %v1668 = vunpack.c.h.b16 %v965
    %v1669 = vunpack.c.l.b16 %v966
    %v1670 = vunpack.c.h.b16 %v966
    %v1671 = vunpack.c.l.b16 %v967
    %v1672 = vunpack.c.h.b16 %v967
    %v1673 = vunpack.c.l.b16 %v968
    %v1674 = vunpack.c.h.b16 %v968
    %v1675 = vunpack.c.l.b16 %v969
    %v1676 = vunpack.c.h.b16 %v969
    %v1677 = vunpack.c.l.b16 %v970
    %v1678 = vunpack.c.h.b16 %v970
    %v1679 = vunpack.c.l.b16 %v971
    %v1680 = vunpack.c.h.b16 %v971
    %v1681 = vunpack.c.l.b16 %v972
    %v1682 = vunpack.c.h.b16 %v972
    %v1683 = vunpack.c.l.b16 %v973
    %v1684 = vunpack.c.h.b16 %v973
    %v1685 = vunpack.c.l.b16 %v974
    %v1686 = vunpack.c.h.b16 %v974
    %v1687 = vunpack.c.l.b16 %v975
    %v1688 = vunpack.c.h.b16 %v975
    %v1689 = vunpack.c.l.b16 %v976
    %v1690 = vunpack.c.h.b16 %v976
    %v1691 = vunpack.c.l.b16 %v977
    %v1692 = vunpack.c.h.b16 %v977
    %v1693 = vunpack.c.l.b16 %v978
    %v1694 = vunpack.c.h.b16 %v978
    %v1695 = vunpack.c.l.b16 %v979
    %v1696 = vunpack.c.h.b16 %v979
    %v1697 = vunpack.c.l.b16 %v980
    %v1698 = vunpack.c.h.b16 %v980
    %v1699 = vunpack.c.l.b16 %v981
    %v1700 = vunpack.c.h.b16 %v981
    %v1701 = vunpack.c.l.b16 %v982
    %v1702 = vunpack.c.h.b16 %v982
    %v1703 = vunpack.c.l.b16 %v983
    %v1704 = vunpack.c.h.b16 %v983
    %v1705 = vunpack.c.l.b16 %v984
    %v1706 = vunpack.c.h.b16 %v984
    %v1707 = vunpack.c.l.b16 %v985
    %v1708 = vunpack.c.h.b16 %v985
    %v1709 = vunpack.c.l.b16 %v986
    %v1710 = vunpack.c.h.b16 %v986
    %v1711 = vunpack.c.l.b16 %v987
    %v1712 = vunpack.c.h.b16 %v987
    %v1713 = vunpack.c.l.b16 %v988
    %v1714 = vunpack.c.h.b16 %v988
    %v1715 = vunpack.c.l.b16 %v989
    %v1716 = vunpack.c.h.b16 %v989
    %v1717 = vunpack.c.l.b16 %v990
    %v1718 = vunpack.c.h.b16 %v990
    %v1719 = vunpack.c.l.b16 %v991
    %v1720 = vunpack.c.h.b16 %v991
    %v1721 = vunpack.c.l.b16 %v992
    %v1722 = vunpack.c.h.b16 %v992
    %v1723 = vunpack.c.l.b16 %v993
    %v1724 = vunpack.c.h.b16 %v993
    %v1725 = vunpack.c.l.b16 %v994
    %v1726 = vunpack.c.h.b16 %v994
    %v1727 = vunpack.c.l.b16 %v995
    %v1728 = vunpack.c.h.b16 %v995
    %v1729 = vunpack.c.l.b16 %v996
    %v1730 = vunpack.c.h.b16 %v996
    %v1731 = vunpack.c.l.b16 %v997
    %v1732 = vunpack.c.h.b16 %v997
    %v1733 = vunpack.c.l.b16 %v998
    %v1734 = vunpack.c.h.b16 %v998
    %v1735 = vunpack.c.l.b16 %v999
    %v1736 = vunpack.c.h.b16 %v999
    %v1737 = vunpack.c.l.b16 %v1000
    %v1738 = vunpack.c.h.b16 %v1000
    %v1739 = vunpack.c.l.b16 %v1001
    %v1740 = vunpack.c.h.b16 %v1001
    %v1741 = vunpack.c.l.b16 %v1002
    %v1742 = vunpack.c.h.b16 %v1002
    %v1743 = vunpack.c.l.b16 %v1003
    %v1744 = vunpack.c.h.b16 %v1003
    %v1745 = vunpack.c.l.b16 %v1004
    %v1746 = vunpack.c.h.b16 %v1004
    %v1747 = vunpack.c.l.b16 %v1005
    %v1748 = vunpack.c.h.b16 %v1005
    %v1749 = vunpack.c.l.b16 %v1006
    %v1750 = vunpack.c.h.b16 %v1006
    %v1751 = vunpack.c.l.b16 %v1007
    %v1752 = vunpack.c.h.b16 %v1007
    %v1753 = vunpack.c.l.b16 %v1008
    %v1754 = vunpack.c.h.b16 %v1008
    %v1755 = vunpack.c.l.b16 %v1009
    %v1756 = vunpack.c.h.b16 %v1009
    %v1757 = vunpack.c.l.b16 %v1010
    %v1758 = vunpack.c.h.b16 %v1010
    %v1759 = vunpack.c.l.b16 %v1011
    %v1760 = vunpack.c.h.b16 %v1011
    %v1761 = vunpack.c.l.b16 %v1012
    %v1762 = vunpack.c.h.b16 %v1012
    %v1763 = vunpack.c.l.b16 %v1013
    %v1764 = vunpack.c.h.b16 %v1013
    %v1765 = vunpack.c.l.b16 %v1014
    %v1766 = vunpack.c.h.b16 %v1014
    %v1767 = vunpack.c.l.b16 %v1015
    %v1768 = vunpack.c.h.b16 %v1015
    %v1769 = vunpack.c.l.b16 %v1016
    %v1770 = vunpack.c.h.b16 %v1016
    %v1771 = vunpack.c.l.b16 %v1017
    %v1772 = vunpack.c.h.b16 %v1017
    %v1773 = vunpack.c.l.b16 %v1018
    %v1774 = vunpack.c.h.b16 %v1018
    %v1775 = vunpack.c.l.b16 %v1019
    %v1776 = vunpack.c.h.b16 %v1019
    %v1777 = vunpack.c.l.b16 %v1020
    %v1778 = vunpack.c.h.b16 %v1020
    %v1779 = vunpack.c.l.b16 %v1021
    %v1780 = vunpack.c.h.b16 %v1021
    %v1781 = vunpack.c.l.b16 %v1022
    %v1782 = vunpack.c.h.b16 %v1022
    %v1783 = vunpack.c.l.b16 %v1023
    %v1784 = vunpack.c.h.b16 %v1023
    %v1785 = vunpack.c.l.b16 %v1024
    %v1786 = vunpack.c.h.b16 %v1024
    %v1787 = vunpack.c.l.b16 %v1025
    %v1788 = vunpack.c.h.b16 %v1025
    %v1789 = vunpack.c.l.b16 %v1026
    %v1790 = vunpack.c.h.b16 %v1026
    %v1791 = vunpack.c.l.b16 %v1027
    %v1792 = vunpack.c.h.b16 %v1027
    %v1793 = vunpack.c.l.b16 %v1028
    %v1794 = vunpack.c.h.b16 %v1028
    %v1795 = vunpack.c.l.b16 %v1029
    %v1796 = vunpack.c.h.b16 %v1029
    %v1797 = vunpack.c.l.b16 %v1030
    %v1798 = vunpack.c.h.b16 %v1030
    %v1799 = vunpack.c.l.b16 %v1031
    %v1800 = vunpack.c.h.b16 %v1031
    %v1801 = vunpack.c.l.b16 %v1032
    %v1802 = vunpack.c.h.b16 %v1032
    %v1803 = vunpack.c.l.b16 %v1033
    %v1804 = vunpack.c.h.b16 %v1033
    %v1805 = vunpack.c.l.b16 %v1034
    %v1806 = vunpack.c.h.b16 %v1034
    %v1807 = vunpack.c.l.b16 %v1035
    %v1808 = vunpack.c.h.b16 %v1035
    %v1809 = vunpack.c.l.b16 %v1036
    %v1810 = vunpack.c.h.b16 %v1036
    %v1811 = vunpack.c.l.b16 %v1037
    %v1812 = vunpack.c.h.b16 %v1037
    %v1813 = vunpack.c.l.b16 %v1038
    %v1814 = vunpack.c.h.b16 %v1038
    %v1815 = vunpack.c.l.b16 %v1039
    %v1816 = vunpack.c.h.b16 %v1039
    %v1817 = vunpack.c.l.b16 %v1040
    %v1818 = vunpack.c.h.b16 %v1040
    %v1819 = vunpack.c.l.b16 %v1041
    %v1820 = vunpack.c.h.b16 %v1041
    %v1821 = vunpack.c.l.b16 %v1042
    %v1822 = vunpack.c.h.b16 %v1042
    %v1823 = vunpack.c.l.b16 %v1043
    %v1824 = vunpack.c.h.b16 %v1043
    %v1825 = vunpack.c.l.b16 %v1044
    %v1826 = vunpack.c.h.b16 %v1044
    %v1827 = vunpack.c.l.b16 %v1045
    %v1828 = vunpack.c.h.b16 %v1045
    %v1829 = vunpack.c.l.b16 %v1046
    %v1830 = vunpack.c.h.b16 %v1046
    %v1831 = vunpack.c.l.b16 %v1047
    %v1832 = vunpack.c.h.b16 %v1047
    %v1833 = vunpack.c.l.b16 %v1048
    %v1834 = vunpack.c.h.b16 %v1048
    %v1835 = vunpack.c.l.b16 %v1049
    %v1836 = vunpack.c.h.b16 %v1049
    %v1837 = vunpack.c.l.b16 %v1050
    %v1838 = vunpack.c.h.b16 %v1050
    %v1839 = vunpack.c.l.b16 %v1051
    %v1840 = vunpack.c.h.b16 %v1051
    %v1841 = vunpack.c.l.b16 %v1052
    %v1842 = vunpack.c.h.b16 %v1052
    %v1843 = vunpack.c.l.b16 %v1053
    %v1844 = vunpack.c.h.b16 %v1053
    %v1845 = vunpack.c.l.b16 %v1054
    %v1846 = vunpack.c.h.b16 %v1054
    %v1847 = vunpack.c.l.b16 %v1055
    %v1848 = vunpack.c.h.b16 %v1055
    %v1849 = vunpack.c.l.b16 %v1056
    %v1850 = vunpack.c.h.b16 %v1056
    %v1851 = vunpack.c.l.b16 %v1057
    %v1852 = vunpack.c.h.b16 %v1057
    %v1853 = vunpack.c.l.b16 %v1058
    %v1854 = vunpack.c.h.b16 %v1058
    %v1855 = vunpack.c.l.b16 %v1059
    %v1856 = vunpack.c.h.b16 %v1059
    %v1857 = vunpack.c.l.b16 %v1060
    %v1858 = vunpack.c.h.b16 %v1060
    %v1859 = vunpack.c.l.b16 %v1061
    %v1860 = vunpack.c.h.b16 %v1061
    %v1861 = vunpack.c.l.b16 %v1062
    %v1862 = vunpack.c.h.b16 %v1062
    %v1863 = vunpack.c.l.b16 %v1063
    %v1864 = vunpack.c.h.b16 %v1063
    %v1865 = vunpack.c.l.b16 %v1064
    %v1866 = vunpack.c.h.b16 %v1064
    %v1867 = vunpack.c.l.b16 %v1065
    %v1868 = vunpack.c.h.b16 %v1065
    %v1869 = vunpack.c.l.b16 %v1066
    %v1870 = vunpack.c.h.b16 %v1066
    %v1871 = vunpack.c.l.b16 %v1067
    %v1872 = vunpack.c.h.b16 %v1067
    %v1873 = vunpack.c.l.b16 %v1068
    %v1874 = vunpack.c.h.b16 %v1068
    %v1875 = vunpack.c.l.b16 %v1069
    %v1876 = vunpack.c.h.b16 %v1069
    %v1877 = vunpack.c.l.b16 %v1070
    %v1878 = vunpack.c.h.b16 %v1070
    %v1879 = vunpack.c.l.b16 %v1071
    %v1880 = vunpack.c.h.b16 %v1071
    %v1881 = vunpack.c.l.b16 %v1072
    %v1882 = vunpack.c.h.b16 %v1072
    %v1883 = vpack.c.b16 %v1379, %v1371
    %v1884 = vpack.c.b16 %v1380, %v1372
    %v1885 = vpack.c.b16 %v1381, %v1373
    %v1886 = vpack.c.b16 %v1382, %v1374
    %v1887 = vpack.c.b16 %v1383, %v1375
    %v1888 = vpack.c.b16 %v1384, %v1376
    %v1889 = vpack.c.b16 %v1385, %v1377
    %v1890 = vpack.c.b16 %v1386, %v1378
    %v1891 = vpack.c.b16 %v1395, %v1387
    %v1892 = vpack.c.b16 %v1396, %v1388
    %v1893 = vpack.c.b16 %v1397, %v1389
    %v1894 = vpack.c.b16 %v1398, %v1390
    %v1895 = vpack.c.b16 %v1399, %v1391
    %v1896 = vpack.c.b16 %v1400, %v1392
    %v1897 = vpack.c.b16 %v1401, %v1393
    %v1898 = vpack.c.b16 %v1402, %v1394
    %v1899 = vpack.c.b16 %v1411, %v1403
    %v1900 = vpack.c.b16 %v1412, %v1404
    %v1901 = vpack.c.b16 %v1413, %v1405
    %v1902 = vpack.c.b16 %v1414, %v1406
    %v1903 = vpack.c.b16 %v1415, %v1407
    %v1904 = vpack.c.b16 %v1416, %v1408
    %v1905 = vpack.c.b16 %v1417, %v1409
    %v1906 = vpack.c.b16 %v1418, %v1410
    %v1907 = vpack.c.b16 %v1427, %v1419
    %v1908 = vpack.c.b16 %v1428, %v1420
    %v1909 = vpack.c.b16 %v1429, %v1421
    %v1910 = vpack.c.b16 %v1430, %v1422
    %v1911 = vpack.c.b16 %v1431, %v1423
    %v1912 = vpack.c.b16 %v1432, %v1424
    %v1913 = vpack.c.b16 %v1433, %v1425
    %v1914 = vpack.c.b16 %v1434, %v1426
    %v1915 = vpack.c.b16 %v1443, %v1435
    %v1916 = vpack.c.b16 %v1444, %v1436
    %v1917 = vpack.c.b16 %v1445, %v1437
    %v1918 = vpack.c.b16 %v1446, %v1438
    %v1919 = vpack.c.b16 %v1447, %v1439
    %v1920 = vpack.c.b16 %v1448, %v1440
    %v1921 = vpack.c.b16 %v1449, %v1441
    %v1922 = vpack.c.b16 %v1450, %v1442
    %v1923 = vpack.c.b16 %v1459, %v1451
    %v1924 = vpack.c.b16 %v1460, %v1452
    %v1925 = vpack.c.b16 %v1461, %v1453
    %v1926 = vpack.c.b16 %v1462, %v1454
    %v1927 = vpack.c.b16 %v1463, %v1455
    %v1928 = vpack.c.b16 %v1464, %v1456
    %v1929 = vpack.c.b16 %v1465, %v1457
    %v1930 = vpack.c.b16 %v1466, %v1458
    %v1931 = vpack.c.b16 %v1475, %v1467
    %v1932 = vpack.c.b16 %v1476, %v1468
    %v1933 = vpack.c.b16 %v1477, %v1469
    %v1934 = vpack.c.b16 %v1478, %v1470
    %v1935 = vpack.c.b16 %v1479, %v1471
    %v1936 = vpack.c.b16 %v1480, %v1472
    %v1937 = vpack.c.b16 %v1481, %v1473
    %v1938 = vpack.c.b16 %v1482, %v1474
    %v1939 = vpack.c.b16 %v1491, %v1483
    %v1940 = vpack.c.b16 %v1492, %v1484
    %v1941 = vpack.c.b16 %v1493, %v1485
    %v1942 = vpack.c.b16 %v1494, %v1486
    %v1943 = vpack.c.b16 %v1495, %v1487
    %v1944 = vpack.c.b16 %v1496, %v1488
    %v1945 = vpack.c.b16 %v1497, %v1489
    %v1946 = vpack.c.b16 %v1498, %v1490
    %v1947 = vpack.c.b16 %v1507, %v1499
    %v1948 = vpack.c.b16 %v1508, %v1500
    %v1949 = vpack.c.b16 %v1509, %v1501
    %v1950 = vpack.c.b16 %v1510, %v1502
    %v1951 = vpack.c.b16 %v1511, %v1503
    %v1952 = vpack.c.b16 %v1512, %v1504
    %v1953 = vpack.c.b16 %v1513, %v1505
    %v1954 = vpack.c.b16 %v1514, %v1506
    %v1955 = vpack.c.b16 %v1523, %v1515
    %v1956 = vpack.c.b16 %v1524, %v1516
    %v1957 = vpack.c.b16 %v1525, %v1517
    %v1958 = vpack.c.b16 %v1526, %v1518
    %v1959 = vpack.c.b16 %v1527, %v1519
    %v1960 = vpack.c.b16 %v1528, %v1520
    %v1961 = vpack.c.b16 %v1529, %v1521
    %v1962 = vpack.c.b16 %v1530, %v1522
    %v1963 = vpack.c.b16 %v1539, %v1531
    %v1964 = vpack.c.b16 %v1540, %v1532
    %v1965 = vpack.c.b16 %v1541, %v1533
    %v1966 = vpack.c.b16 %v1542, %v1534
    %v1967 = vpack.c.b16 %v1543, %v1535
    %v1968 = vpack.c.b16 %v1544, %v1536
    %v1969 = vpack.c.b16 %v1545, %v1537
    %v1970 = vpack.c.b16 %v1546, %v1538
    %v1971 = vpack.c.b16 %v1555, %v1547
    %v1972 = vpack.c.b16 %v1556, %v1548
    %v1973 = vpack.c.b16 %v1557, %v1549
    %v1974 = vpack.c.b16 %v1558, %v1550
    %v1975 = vpack.c.b16 %v1559, %v1551
    %v1976 = vpack.c.b16 %v1560, %v1552
    %v1977 = vpack.c.b16 %v1561, %v1553
    %v1978 = vpack.c.b16 %v1562, %v1554
    %v1979 = vpack.c.b16 %v1571, %v1563
    %v1980 = vpack.c.b16 %v1572, %v1564
    %v1981 = vpack.c.b16 %v1573, %v1565
    %v1982 = vpack.c.b16 %v1574, %v1566
    %v1983 = vpack.c.b16 %v1575, %v1567
    %v1984 = vpack.c.b16 %v1576, %v1568
    %v1985 = vpack.c.b16 %v1577, %v1569
    %v1986 = vpack.c.b16 %v1578, %v1570
    %v1987 = vpack.c.b16 %v1587, %v1579
    %v1988 = vpack.c.b16 %v1588, %v1580
    %v1989 = vpack.c.b16 %v1589, %v1581
    %v1990 = vpack.c.b16 %v1590, %v1582
    %v1991 = vpack.c.b16 %v1591, %v1583
    %v1992 = vpack.c.b16 %v1592, %v1584
    %v1993 = vpack.c.b16 %v1593, %v1585
    %v1994 = vpack.c.b16 %v1594, %v1586
    %v1995 = vpack.c.b16 %v1603, %v1595
    %v1996 = vpack.c.b16 %v1604, %v1596
    %v1997 = vpack.c.b16 %v1605, %v1597
    %v1998 = vpack.c.b16 %v1606, %v1598
    %v1999 = vpack.c.b16 %v1607, %v1599
    %v2000 = vpack.c.b16 %v1608, %v1600
    %v2001 = vpack.c.b16 %v1609, %v1601
    %v2002 = vpack.c.b16 %v1610, %v1602
    %v2003 = vpack.c.b16 %v1619, %v1611
    %v2004 = vpack.c.b16 %v1620, %v1612
    %v2005 = vpack.c.b16 %v1621, %v1613
    %v2006 = vpack.c.b16 %v1622, %v1614
    %v2007 = vpack.c.b16 %v1623, %v1615
    %v2008 = vpack.c.b16 %v1624, %v1616
    %v2009 = vpack.c.b16 %v1625, %v1617
    %v2010 = vpack.c.b16 %v1626, %v1618
    %v2011 = vpack.c.b16 %v1635, %v1627
    %v2012 = vpack.c.b16 %v1636, %v1628
    %v2013 = vpack.c.b16 %v1637, %v1629
    %v2014 = vpack.c.b16 %v1638, %v1630
    %v2015 = vpack.c.b16 %v1639, %v1631
    %v2016 = vpack.c.b16 %v1640, %v1632
    %v2017 = vpack.c.b16 %v1641, %v1633
    %v2018 = vpack.c.b16 %v1642, %v1634
    %v2019 = vpack.c.b16 %v1651, %v1643
    %v2020 = vpack.c.b16 %v1652, %v1644
    %v2021 = vpack.c.b16 %v1653, %v1645
    %v2022 = vpack.c.b16 %v1654, %v1646
    %v2023 = vpack.c.b16 %v1655, %v1647
    %v2024 = vpack.c.b16 %v1656, %v1648
    %v2025 = vpack.c.b16 %v1657, %v1649
    %v2026 = vpack.c.b16 %v1658, %v1650
    %v2027 = vpack.c.b16 %v1667, %v1659
    %v2028 = vpack.c.b16 %v1668, %v1660
    %v2029 = vpack.c.b16 %v1669, %v1661
    %v2030 = vpack.c.b16 %v1670, %v1662
    %v2031 = vpack.c.b16 %v1671, %v1663
    %v2032 = vpack.c.b16 %v1672, %v1664
    %v2033 = vpack.c.b16 %v1673, %v1665
    %v2034 = vpack.c.b16 %v1674, %v1666
    %v2035 = vpack.c.b16 %v1683, %v1675
    %v2036 = vpack.c.b16 %v1684, %v1676
    %v2037 = vpack.c.b16 %v1685, %v1677
    %v2038 = vpack.c.b16 %v1686, %v1678
    %v2039 = vpack.c.b16 %v1687, %v1679
    %v2040 = vpack.c.b16 %v1688, %v1680
    %v2041 = vpack.c.b16 %v1689, %v1681
    %v2042 = vpack.c.b16 %v1690, %v1682
    %v2043 = vpack.c.b16 %v1699, %v1691
    %v2044 = vpack.c.b16 %v1700, %v1692
    %v2045 = vpack.c.b16 %v1701, %v1693
    %v2046 = vpack.c.b16 %v1702, %v1694
    %v2047 = vpack.c.b16 %v1703, %v1695
    %v2048 = vpack.c.b16 %v1704, %v1696
    %v2049 = vpack.c.b16 %v1705, %v1697
    %v2050 = vpack.c.b16 %v1706, %v1698
    %v2051 = vpack.c.b16 %v1715, %v1707
    %v2052 = vpack.c.b16 %v1716, %v1708
    %v2053 = vpack.c.b16 %v1717, %v1709
    %v2054 = vpack.c.b16 %v1718, %v1710
    %v2055 = vpack.c.b16 %v1719, %v1711
    %v2056 = vpack.c.b16 %v1720, %v1712
    %v2057 = vpack.c.b16 %v1721, %v1713
    %v2058 = vpack.c.b16 %v1722, %v1714
    %v2059 = vpack.c.b16 %v1731, %v1723
    %v2060 = vpack.c.b16 %v1732, %v1724
    %v2061 = vpack.c.b16 %v1733, %v1725
    %v2062 = vpack.c.b16 %v1734, %v1726
    %v2063 = vpack.c.b16 %v1735, %v1727
    %v2064 = vpack.c.b16 %v1736, %v1728
    %v2065 = vpack.c.b16 %v1737, %v1729
    %v2066 = vpack.c.b16 %v1738, %v1730
    %v2067 = vpack.c.b16 %v1747, %v1739
    %v2068 = vpack.c.b16 %v1748, %v1740
    %v2069 = vpack.c.b16 %v1749, %v1741
    %v2070 = vpack.c.b16 %v1750, %v1742
    %v2071 = vpack.c.b16 %v1751, %v1743
    %v2072 = vpack.c.b16 %v1752, %v1744
    %v2073 = vpack.c.b16 %v1753, %v1745
    %v2074 = vpack.c.b16 %v1754, %v1746
    %v2075 = vpack.c.b16 %v1763, %v1755
    %v2076 = vpack.c.b16 %v1764, %v1756
    %v2077 = vpack.c.b16 %v1765, %v1757
    %v2078 = vpack.c.b16 %v1766, %v1758
    %v2079 = vpack.c.b16 %v1767, %v1759
    %v2080 = vpack.c.b16 %v1768, %v1760
    %v2081 = vpack.c.b16 %v1769, %v1761
    %v2082 = vpack.c.b16 %v1770, %v1762
    %v2083 = vpack.c.b16 %v1779, %v1771
    %v2084 = vpack.c.b16 %v1780, %v1772
    %v2085 = vpack.c.b16 %v1781, %v1773
    %v2086 = vpack.c.b16 %v1782, %v1774
    %v2087 = vpack.c.b16 %v1783, %v1775
    %v2088 = vpack.c.b16 %v1784, %v1776
    %v2089 = vpack.c.b16 %v1785, %v1777
    %v2090 = vpack.c.b16 %v1786, %v1778
    %v2091 = vpack.c.b16 %v1795, %v1787
    %v2092 = vpack.c.b16 %v1796, %v1788
    %v2093 = vpack.c.b16 %v1797, %v1789
    %v2094 = vpack.c.b16 %v1798, %v1790
    %v2095 = vpack.c.b16 %v1799, %v1791
    %v2096 = vpack.c.b16 %v1800, %v1792
    %v2097 = vpack.c.b16 %v1801, %v1793
    %v2098 = vpack.c.b16 %v1802, %v1794
    %v2099 = vpack.c.b16 %v1811, %v1803
    %v2100 = vpack.c.b16 %v1812, %v1804
    %v2101 = vpack.c.b16 %v1813, %v1805
    %v2102 = vpack.c.b16 %v1814, %v1806
    %v2103 = vpack.c.b16 %v1815, %v1807
    %v2104 = vpack.c.b16 %v1816, %v1808
    %v2105 = vpack.c.b16 %v1817, %v1809
    %v2106 = vpack.c.b16 %v1818, %v1810
    %v2107 = vpack.c.b16 %v1827, %v1819
    %v2108 = vpack.c.b16 %v1828, %v1820
    %v2109 = vpack.c.b16 %v1829, %v1821
    %v2110 = vpack.c.b16 %v1830, %v1822
    %v2111 = vpack.c.b16 %v1831, %v1823
    %v2112 = vpack.c.b16 %v1832, %v1824
    %v2113 = vpack.c.b16 %v1833, %v1825
    %v2114 = vpack.c.b16 %v1834, %v1826
    %v2115 = vpack.c.b16 %v1843, %v1835
    %v2116 = vpack.c.b16 %v1844, %v1836
    %v2117 = vpack.c.b16 %v1845, %v1837
    %v2118 = vpack.c.b16 %v1846, %v1838
    %v2119 = vpack.c.b16 %v1847, %v1839
    %v2120 = vpack.c.b16 %v1848, %v1840
    %v2121 = vpack.c.b16 %v1849, %v1841
    %v2122 = vpack.c.b16 %v1850, %v1842
    %v2123 = vpack.c.b16 %v1859, %v1851
    %v2124 = vpack.c.b16 %v1860, %v1852
    %v2125 = vpack.c.b16 %v1861, %v1853
    %v2126 = vpack.c.b16 %v1862, %v1854
    %v2127 = vpack.c.b16 %v1863, %v1855
    %v2128 = vpack.c.b16 %v1864, %v1856
    %v2129 = vpack.c.b16 %v1865, %v1857
    %v2130 = vpack.c.b16 %v1866, %v1858
    %v2131 = vpack.c.b16 %v1875, %v1867
    %v2132 = vpack.c.b16 %v1876, %v1868
    %v2133 = vpack.c.b16 %v1877, %v1869
    %v2134 = vpack.c.b16 %v1878, %v1870
    %v2135 = vpack.c.b16 %v1879, %v1871
    %v2136 = vpack.c.b16 %v1880, %v1872
    %v2137 = vpack.c.b16 %v1881, %v1873
    %v2138 = vpack.c.b16 %v1882, %v1874
    %2395 = vmatprep.subr.bf16.mxu0 %v1940
    %2396 = vmatpush1.bf16.msra.mxu0 %v1939
    %2397 = vmatprep.subr.bf16.mxu0 %v1932
    %2398 = vmatpush1.bf16.msra.mxu0 %v1931
    %2399 = vmatprep.subr.bf16.mxu0 %v1924
    %2400 = vmatpush1.bf16.msra.mxu0 %v1923
    %2401 = vmatprep.subr.bf16.mxu0 %v1916
    %2402 = vmatpush1.bf16.msra.mxu0 %v1915
    %2403 = vmatprep.subr.bf16.mxu0 %v1908
    %2404 = vmatpush1.bf16.msra.mxu0 %v1907
    %2405 = vmatprep.subr.bf16.mxu0 %v1900
    %2406 = vmatpush1.bf16.msra.mxu0 %v1899
    %2407 = vmatprep.subr.bf16.mxu0 %v1892
    %2408 = vmatpush1.bf16.msra.mxu0 %v1891
    %2409 = vmatprep.subr.bf16.mxu0 %v1884
    %2410 = vmatpush1.bf16.msra.mxu0 %v1883
    %2411 = vmatprep.subr.bf16.mxu0 %v2004
    %2412 = vmatpush2.bf16.msra.mxu0 %v2003
    %2413 = vmatprep.subr.bf16.mxu0 %v1996
    %2414 = vmatpush2.bf16.msra.mxu0 %v1995
    %2415 = vmatprep.subr.bf16.mxu0 %v1988
    %2416 = vmatpush2.bf16.msra.mxu0 %v1987
    %2417 = vmatprep.subr.bf16.mxu0 %v1980
    %2418 = vmatpush2.bf16.msra.mxu0 %v1979
    %2419 = vmatprep.subr.bf16.mxu0 %v1972
    %2420 = vmatpush2.bf16.msra.mxu0 %v1971
    %2421 = vmatprep.subr.bf16.mxu0 %v1964
    %2422 = vmatpush2.bf16.msra.mxu0 %v1963
    %2423 = vmatprep.subr.bf16.mxu0 %v1956
    %2424 = vmatpush2.bf16.msra.mxu0 %v1955
    %2425 = vmatprep.subr.bf16.mxu0 %v1948
    %2426 = vmatpush2.bf16.msra.mxu0 %v1947
    %2427 = vmatprep.mubr.bf16.mxu0 %v814
    %2428 = vmatmul.mubr.bf16.gmra.mxu0 %v813
    %v2429 = vpop.f32.mrf.mxu0
    %v2430 = vadd.f32 %v1078, %v2429
    %v2431 = vpop.f32.mrf.mxu0
    %v2432 = vadd.f32 %v1082, %v2431
    %v2433 = vpop.f32.mrf.mxu0
    %v2434 = vadd.f32 %v1078, %v2433
    %v2435 = vpop.f32.mrf.mxu0
    %v2436 = vadd.f32 %v1082, %v2435
    %2437 = vdwg.mxu0
    %2438 = vmatprep.subr.bf16.mxu0 %v2068
    %2439 = vmatpush1.bf16.msra.mxu0 %v2067
    %2440 = vmatprep.subr.bf16.mxu0 %v2060
    %2441 = vmatpush1.bf16.msra.mxu0 %v2059
    %2442 = vmatprep.subr.bf16.mxu0 %v2052
    %2443 = vmatpush1.bf16.msra.mxu0 %v2051
    %2444 = vmatprep.subr.bf16.mxu0 %v2044
    %2445 = vmatpush1.bf16.msra.mxu0 %v2043
    %2446 = vmatprep.subr.bf16.mxu0 %v2036
    %2447 = vmatpush1.bf16.msra.mxu0 %v2035
    %2448 = vmatprep.subr.bf16.mxu0 %v2028
    %2449 = vmatpush1.bf16.msra.mxu0 %v2027
    %2450 = vmatprep.subr.bf16.mxu0 %v2020
    %2451 = vmatpush1.bf16.msra.mxu0 %v2019
    %2452 = vmatprep.subr.bf16.mxu0 %v2012
    %2453 = vmatpush1.bf16.msra.mxu0 %v2011
    %2454 = vmatprep.subr.bf16.mxu0 %v2132
    %2455 = vmatpush2.bf16.msra.mxu0 %v2131
    %2456 = vmatprep.subr.bf16.mxu0 %v2124
    %2457 = vmatpush2.bf16.msra.mxu0 %v2123
    %2458 = vmatprep.subr.bf16.mxu0 %v2116
    %2459 = vmatpush2.bf16.msra.mxu0 %v2115
    %2460 = vmatprep.subr.bf16.mxu0 %v2108
    %2461 = vmatpush2.bf16.msra.mxu0 %v2107
    %2462 = vmatprep.subr.bf16.mxu0 %v2100
    %2463 = vmatpush2.bf16.msra.mxu0 %v2099
    %2464 = vmatprep.subr.bf16.mxu0 %v2092
    %2465 = vmatpush2.bf16.msra.mxu0 %v2091
    %2466 = vmatprep.subr.bf16.mxu0 %v2084
    %2467 = vmatpush2.bf16.msra.mxu0 %v2083
    %2468 = vmatprep.subr.bf16.mxu0 %v2076
    %2469 = vmatpush2.bf16.msra.mxu0 %v2075
    %2470 = vmatprep.mubr.bf16.mxu0 %v816
    %2471 = vmatmul.mubr.bf16.gmra.mxu0 %v815
    %v2472 = vpop.f32.mrf.mxu0
    %v2473 = vadd.f32 %v2430, %v2472
    %v2474 = vpop.f32.mrf.mxu0
    %v2475 = vadd.f32 %v2432, %v2474
    %v2476 = vpop.f32.mrf.mxu0
    %v2477 = vadd.f32 %v2434, %v2476
    %v2478 = vpop.f32.mrf.mxu0
    %v2479 = vadd.f32 %v2436, %v2478
    %2480 = vdwg.mxu0
    %2481 = vmatprep.subr.bf16.mxu0 %v1942
    %2482 = vmatpush1.bf16.msra.mxu0 %v1941
    %2483 = vmatprep.subr.bf16.mxu0 %v1934
    %2484 = vmatpush1.bf16.msra.mxu0 %v1933
    %2485 = vmatprep.subr.bf16.mxu0 %v1926
    %2486 = vmatpush1.bf16.msra.mxu0 %v1925
    %2487 = vmatprep.subr.bf16.mxu0 %v1918
    %2488 = vmatpush1.bf16.msra.mxu0 %v1917
    %2489 = vmatprep.subr.bf16.mxu0 %v1910
    %2490 = vmatpush1.bf16.msra.mxu0 %v1909
    %2491 = vmatprep.subr.bf16.mxu0 %v1902
    %2492 = vmatpush1.bf16.msra.mxu0 %v1901
    %2493 = vmatprep.subr.bf16.mxu0 %v1894
    %2494 = vmatpush1.bf16.msra.mxu0 %v1893
    %2495 = vmatprep.subr.bf16.mxu0 %v1886
    %2496 = vmatpush1.bf16.msra.mxu0 %v1885
    %2497 = vmatprep.subr.bf16.mxu0 %v2006
    %2498 = vmatpush2.bf16.msra.mxu0 %v2005
    %2499 = vmatprep.subr.bf16.mxu0 %v1998
    %2500 = vmatpush2.bf16.msra.mxu0 %v1997
    %2501 = vmatprep.subr.bf16.mxu0 %v1990
    %2502 = vmatpush2.bf16.msra.mxu0 %v1989
    %2503 = vmatprep.subr.bf16.mxu0 %v1982
    %2504 = vmatpush2.bf16.msra.mxu0 %v1981
    %2505 = vmatprep.subr.bf16.mxu0 %v1974
    %2506 = vmatpush2.bf16.msra.mxu0 %v1973
    %2507 = vmatprep.subr.bf16.mxu0 %v1966
    %2508 = vmatpush2.bf16.msra.mxu0 %v1965
    %2509 = vmatprep.subr.bf16.mxu0 %v1958
    %2510 = vmatpush2.bf16.msra.mxu0 %v1957
    %2511 = vmatprep.subr.bf16.mxu0 %v1950
    %2512 = vmatpush2.bf16.msra.mxu0 %v1949
    %2513 = vmatprep.mubr.bf16.mxu0 %v814
    %2514 = vmatmul.mubr.bf16.gmra.mxu0 %v813
    %v2515 = vpop.f32.mrf.mxu0
    %v2516 = vadd.f32 %v1086, %v2515
    %v2517 = vpop.f32.mrf.mxu0
    %v2518 = vadd.f32 %v1090, %v2517
    %v2519 = vpop.f32.mrf.mxu0
    %v2520 = vadd.f32 %v1086, %v2519
    %v2521 = vpop.f32.mrf.mxu0
    %v2522 = vadd.f32 %v1090, %v2521
    %2523 = vdwg.mxu0
    %2524 = vmatprep.subr.bf16.mxu0 %v2070
    %2525 = vmatpush1.bf16.msra.mxu0 %v2069
    %2526 = vmatprep.subr.bf16.mxu0 %v2062
    %2527 = vmatpush1.bf16.msra.mxu0 %v2061
    %2528 = vmatprep.subr.bf16.mxu0 %v2054
    %2529 = vmatpush1.bf16.msra.mxu0 %v2053
    %2530 = vmatprep.subr.bf16.mxu0 %v2046
    %2531 = vmatpush1.bf16.msra.mxu0 %v2045
    %2532 = vmatprep.subr.bf16.mxu0 %v2038
    %2533 = vmatpush1.bf16.msra.mxu0 %v2037
    %2534 = vmatprep.subr.bf16.mxu0 %v2030
    %2535 = vmatpush1.bf16.msra.mxu0 %v2029
    %2536 = vmatprep.subr.bf16.mxu0 %v2022
    %2537 = vmatpush1.bf16.msra.mxu0 %v2021
    %2538 = vmatprep.subr.bf16.mxu0 %v2014
    %2539 = vmatpush1.bf16.msra.mxu0 %v2013
    %2540 = vmatprep.subr.bf16.mxu0 %v2134
    %2541 = vmatpush2.bf16.msra.mxu0 %v2133
    %2542 = vmatprep.subr.bf16.mxu0 %v2126
    %2543 = vmatpush2.bf16.msra.mxu0 %v2125
    %2544 = vmatprep.subr.bf16.mxu0 %v2118
    %2545 = vmatpush2.bf16.msra.mxu0 %v2117
    %2546 = vmatprep.subr.bf16.mxu0 %v2110
    %2547 = vmatpush2.bf16.msra.mxu0 %v2109
    %2548 = vmatprep.subr.bf16.mxu0 %v2102
    %2549 = vmatpush2.bf16.msra.mxu0 %v2101
    %2550 = vmatprep.subr.bf16.mxu0 %v2094
    %2551 = vmatpush2.bf16.msra.mxu0 %v2093
    %2552 = vmatprep.subr.bf16.mxu0 %v2086
    %2553 = vmatpush2.bf16.msra.mxu0 %v2085
    %2554 = vmatprep.subr.bf16.mxu0 %v2078
    %2555 = vmatpush2.bf16.msra.mxu0 %v2077
    %2556 = vmatprep.mubr.bf16.mxu0 %v816
    %2557 = vmatmul.mubr.bf16.gmra.mxu0 %v815
    %v2558 = vpop.f32.mrf.mxu0
    %v2559 = vadd.f32 %v2516, %v2558
    %v2560 = vpop.f32.mrf.mxu0
    %v2561 = vadd.f32 %v2518, %v2560
    %v2562 = vpop.f32.mrf.mxu0
    %v2563 = vadd.f32 %v2520, %v2562
    %v2564 = vpop.f32.mrf.mxu0
    %v2565 = vadd.f32 %v2522, %v2564
    %2566 = vdwg.mxu0
    %2567 = vmatprep.subr.bf16.mxu0 %v1944
    %2568 = vmatpush1.bf16.msra.mxu0 %v1943
    %2569 = vmatprep.subr.bf16.mxu0 %v1936
    %2570 = vmatpush1.bf16.msra.mxu0 %v1935
    %2571 = vmatprep.subr.bf16.mxu0 %v1928
    %2572 = vmatpush1.bf16.msra.mxu0 %v1927
    %2573 = vmatprep.subr.bf16.mxu0 %v1920
    %2574 = vmatpush1.bf16.msra.mxu0 %v1919
    %2575 = vmatprep.subr.bf16.mxu0 %v1912
    %2576 = vmatpush1.bf16.msra.mxu0 %v1911
    %2577 = vmatprep.subr.bf16.mxu0 %v1904
    %2578 = vmatpush1.bf16.msra.mxu0 %v1903
    %2579 = vmatprep.subr.bf16.mxu0 %v1896
    %2580 = vmatpush1.bf16.msra.mxu0 %v1895
    %2581 = vmatprep.subr.bf16.mxu0 %v1888
    %2582 = vmatpush1.bf16.msra.mxu0 %v1887
    %2583 = vmatprep.subr.bf16.mxu0 %v2008
    %2584 = vmatpush2.bf16.msra.mxu0 %v2007
    %2585 = vmatprep.subr.bf16.mxu0 %v2000
    %2586 = vmatpush2.bf16.msra.mxu0 %v1999
    %2587 = vmatprep.subr.bf16.mxu0 %v1992
    %2588 = vmatpush2.bf16.msra.mxu0 %v1991
    %2589 = vmatprep.subr.bf16.mxu0 %v1984
    %2590 = vmatpush2.bf16.msra.mxu0 %v1983
    %2591 = vmatprep.subr.bf16.mxu0 %v1976
    %2592 = vmatpush2.bf16.msra.mxu0 %v1975
    %2593 = vmatprep.subr.bf16.mxu0 %v1968
    %2594 = vmatpush2.bf16.msra.mxu0 %v1967
    %2595 = vmatprep.subr.bf16.mxu0 %v1960
    %2596 = vmatpush2.bf16.msra.mxu0 %v1959
    %2597 = vmatprep.subr.bf16.mxu0 %v1952
    %2598 = vmatpush2.bf16.msra.mxu0 %v1951
    %2599 = vmatprep.mubr.bf16.mxu0 %v814
    %2600 = vmatmul.mubr.bf16.gmra.mxu0 %v813
    %v2601 = vpop.f32.mrf.mxu0
    %v2602 = vadd.f32 %v1094, %v2601
    %v2603 = vpop.f32.mrf.mxu0
    %v2604 = vadd.f32 %v1098, %v2603
    %v2605 = vpop.f32.mrf.mxu0
    %v2606 = vadd.f32 %v1094, %v2605
    %v2607 = vpop.f32.mrf.mxu0
    %v2608 = vadd.f32 %v1098, %v2607
    %2609 = vdwg.mxu0
    %2610 = vmatprep.subr.bf16.mxu0 %v2072
    %2611 = vmatpush1.bf16.msra.mxu0 %v2071
    %2612 = vmatprep.subr.bf16.mxu0 %v2064
    %2613 = vmatpush1.bf16.msra.mxu0 %v2063
    %2614 = vmatprep.subr.bf16.mxu0 %v2056
    %2615 = vmatpush1.bf16.msra.mxu0 %v2055
    %2616 = vmatprep.subr.bf16.mxu0 %v2048
    %2617 = vmatpush1.bf16.msra.mxu0 %v2047
    %2618 = vmatprep.subr.bf16.mxu0 %v2040
    %2619 = vmatpush1.bf16.msra.mxu0 %v2039
    %2620 = vmatprep.subr.bf16.mxu0 %v2032
    %2621 = vmatpush1.bf16.msra.mxu0 %v2031
    %2622 = vmatprep.subr.bf16.mxu0 %v2024
    %2623 = vmatpush1.bf16.msra.mxu0 %v2023
    %2624 = vmatprep.subr.bf16.mxu0 %v2016
    %2625 = vmatpush1.bf16.msra.mxu0 %v2015
    %2626 = vmatprep.subr.bf16.mxu0 %v2136
    %2627 = vmatpush2.bf16.msra.mxu0 %v2135
    %2628 = vmatprep.subr.bf16.mxu0 %v2128
    %2629 = vmatpush2.bf16.msra.mxu0 %v2127
    %2630 = vmatprep.subr.bf16.mxu0 %v2120
    %2631 = vmatpush2.bf16.msra.mxu0 %v2119
    %2632 = vmatprep.subr.bf16.mxu0 %v2112
    %2633 = vmatpush2.bf16.msra.mxu0 %v2111
    %2634 = vmatprep.subr.bf16.mxu0 %v2104
    %2635 = vmatpush2.bf16.msra.mxu0 %v2103
    %2636 = vmatprep.subr.bf16.mxu0 %v2096
    %2637 = vmatpush2.bf16.msra.mxu0 %v2095
    %2638 = vmatprep.subr.bf16.mxu0 %v2088
    %2639 = vmatpush2.bf16.msra.mxu0 %v2087
    %2640 = vmatprep.subr.bf16.mxu0 %v2080
    %2641 = vmatpush2.bf16.msra.mxu0 %v2079
    %2642 = vmatprep.mubr.bf16.mxu0 %v816
    %2643 = vmatmul.mubr.bf16.gmra.mxu0 %v815
    %v2644 = vpop.f32.mrf.mxu0
    %v2645 = vadd.f32 %v2602, %v2644
    %v2646 = vpop.f32.mrf.mxu0
    %v2647 = vadd.f32 %v2604, %v2646
    %v2648 = vpop.f32.mrf.mxu0
    %v2649 = vadd.f32 %v2606, %v2648
    %v2650 = vpop.f32.mrf.mxu0
    %v2651 = vadd.f32 %v2608, %v2650
    %2652 = vdwg.mxu0
    %2653 = vmatprep.subr.bf16.mxu0 %v1946
    %2654 = vmatpush1.bf16.msra.mxu0 %v1945
    %2655 = vmatprep.subr.bf16.mxu0 %v1938
    %2656 = vmatpush1.bf16.msra.mxu0 %v1937
    %2657 = vmatprep.subr.bf16.mxu0 %v1930
    %2658 = vmatpush1.bf16.msra.mxu0 %v1929
    %2659 = vmatprep.subr.bf16.mxu0 %v1922
    %2660 = vmatpush1.bf16.msra.mxu0 %v1921
    %2661 = vmatprep.subr.bf16.mxu0 %v1914
    %2662 = vmatpush1.bf16.msra.mxu0 %v1913
    %2663 = vmatprep.subr.bf16.mxu0 %v1906
    %2664 = vmatpush1.bf16.msra.mxu0 %v1905
    %2665 = vmatprep.subr.bf16.mxu0 %v1898
    %2666 = vmatpush1.bf16.msra.mxu0 %v1897
    %2667 = vmatprep.subr.bf16.mxu0 %v1890
    %2668 = vmatpush1.bf16.msra.mxu0 %v1889
    %2669 = vmatprep.subr.bf16.mxu0 %v2010
    %2670 = vmatpush2.bf16.msra.mxu0 %v2009
    %2671 = vmatprep.subr.bf16.mxu0 %v2002
    %2672 = vmatpush2.bf16.msra.mxu0 %v2001
    %2673 = vmatprep.subr.bf16.mxu0 %v1994
    %2674 = vmatpush2.bf16.msra.mxu0 %v1993
    %2675 = vmatprep.subr.bf16.mxu0 %v1986
    %2676 = vmatpush2.bf16.msra.mxu0 %v1985
    %2677 = vmatprep.subr.bf16.mxu0 %v1978
    %2678 = vmatpush2.bf16.msra.mxu0 %v1977
    %2679 = vmatprep.subr.bf16.mxu0 %v1970
    %2680 = vmatpush2.bf16.msra.mxu0 %v1969
    %2681 = vmatprep.subr.bf16.mxu0 %v1962
    %2682 = vmatpush2.bf16.msra.mxu0 %v1961
    %2683 = vmatprep.subr.bf16.mxu0 %v1954
    %2684 = vmatpush2.bf16.msra.mxu0 %v1953
    %2685 = vmatprep.mubr.bf16.mxu0 %v814
    %2686 = vmatmul.mubr.bf16.gmra.mxu0 %v813
    %v2687 = vpop.f32.mrf.mxu0
    %v2688 = vadd.f32 %v1102, %v2687
    %v2689 = vpop.f32.mrf.mxu0
    %v2690 = vadd.f32 %v1106, %v2689
    %v2691 = vpop.f32.mrf.mxu0
    %v2692 = vadd.f32 %v1102, %v2691
    %v2693 = vpop.f32.mrf.mxu0
    %v2694 = vadd.f32 %v1106, %v2693
    %2695 = vdwg.mxu0
    %2696 = vmatprep.subr.bf16.mxu0 %v2074
    %2697 = vmatpush1.bf16.msra.mxu0 %v2073
    %2698 = vmatprep.subr.bf16.mxu0 %v2066
    %2699 = vmatpush1.bf16.msra.mxu0 %v2065
    %2700 = vmatprep.subr.bf16.mxu0 %v2058
    %2701 = vmatpush1.bf16.msra.mxu0 %v2057
    %2702 = vmatprep.subr.bf16.mxu0 %v2050
    %2703 = vmatpush1.bf16.msra.mxu0 %v2049
    %2704 = vmatprep.subr.bf16.mxu0 %v2042
    %2705 = vmatpush1.bf16.msra.mxu0 %v2041
    %2706 = vmatprep.subr.bf16.mxu0 %v2034
    %2707 = vmatpush1.bf16.msra.mxu0 %v2033
    %2708 = vmatprep.subr.bf16.mxu0 %v2026
    %2709 = vmatpush1.bf16.msra.mxu0 %v2025
    %2710 = vmatprep.subr.bf16.mxu0 %v2018
    %2711 = vmatpush1.bf16.msra.mxu0 %v2017
    %2712 = vmatprep.subr.bf16.mxu0 %v2138
    %2713 = vmatpush2.bf16.msra.mxu0 %v2137
    %2714 = vmatprep.subr.bf16.mxu0 %v2130
    %2715 = vmatpush2.bf16.msra.mxu0 %v2129
    %2716 = vmatprep.subr.bf16.mxu0 %v2122
    %2717 = vmatpush2.bf16.msra.mxu0 %v2121
    %2718 = vmatprep.subr.bf16.mxu0 %v2114
    %2719 = vmatpush2.bf16.msra.mxu0 %v2113
    %2720 = vmatprep.subr.bf16.mxu0 %v2106
    %2721 = vmatpush2.bf16.msra.mxu0 %v2105
    %2722 = vmatprep.subr.bf16.mxu0 %v2098
    %2723 = vmatpush2.bf16.msra.mxu0 %v2097
    %2724 = vmatprep.subr.bf16.mxu0 %v2090
    %2725 = vmatpush2.bf16.msra.mxu0 %v2089
    %2726 = vmatprep.subr.bf16.mxu0 %v2082
    %2727 = vmatpush2.bf16.msra.mxu0 %v2081
    %2728 = vmatprep.mubr.bf16.mxu0 %v816
    %2729 = vmatmul.mubr.bf16.gmra.mxu0 %v815
    %v2730 = vpop.f32.mrf.mxu0
    %v2731 = vadd.f32 %v2688, %v2730
    %v2732 = vpop.f32.mrf.mxu0
    %v2733 = vadd.f32 %v2690, %v2732
    %v2734 = vpop.f32.mrf.mxu0
    %v2735 = vadd.f32 %v2692, %v2734
    %v2736 = vpop.f32.mrf.mxu0
    %v2737 = vadd.f32 %v2694, %v2736
    %2738 = vdwg.mxu0
    %v2739 = vmax.f32 %v2473, 0.0
    %v2740 = vmax.f32 %v2475, 0.0
    %v2741 = vmax.f32 %v2559, 0.0
    %v2742 = vmax.f32 %v2561, 0.0
    %v2743 = vmax.f32 %v2645, 0.0
    %v2744 = vmax.f32 %v2647, 0.0
    %v2745 = vmax.f32 %v2731, 0.0
    %v2746 = vmax.f32 %v2733, 0.0
    %v2747 = vmax.f32 %v2477, 0.0
    %v2748 = vmax.f32 %v2479, 0.0
    %v2749 = vmax.f32 %v2563, 0.0
    %v2750 = vmax.f32 %v2565, 0.0
    %v2751 = vmax.f32 %v2649, 0.0
    %v2752 = vmax.f32 %v2651, 0.0
    %v2753 = vmax.f32 %v2735, 0.0
    %v2754 = vmax.f32 %v2737, 0.0
    %v2755 = vpack.c.bf16 %v2747, %v2739
    %v2756 = vpack.c.bf16 %v2748, %v2740
    %v2757 = vpack.c.bf16 %v2749, %v2741
    %v2758 = vpack.c.bf16 %v2750, %v2742
    %v2759 = vpack.c.bf16 %v2751, %v2743
    %v2760 = vpack.c.bf16 %v2752, %v2744
    %v2761 = vpack.c.bf16 %v2753, %v2745
    %v2762 = vpack.c.bf16 %v2754, %v2746
    %v2763 = vld [vmem:[#allocation14] sm:$0xff]
    %v2764 = vld [vmem:[#allocation14 + $0x8] sm:$0xff]
    %v2765 = vld [vmem:[#allocation14 + $0x10] sm:$0xff]
    %v2766 = vld [vmem:[#allocation14 + $0x18] sm:$0xf]
    %v2767 = vld [vmem:[#allocation14 + $0x1c] sm:$0xff]
    %v2768 = vld [vmem:[#allocation14 + $0x24] sm:$0xff]
    %v2769 = vld [vmem:[#allocation14 + $0x2c] sm:$0xff]
    %v2770 = vld [vmem:[#allocation14 + $0x34] sm:$0xf]
    %v2771 = vld [vmem:[#allocation14 + $0x38] sm:$0xff]
    %v2772 = vld [vmem:[#allocation14 + $0x40] sm:$0xff]
    %v2773 = vld [vmem:[#allocation14 + $0x48] sm:$0xff]
    %v2774 = vld [vmem:[#allocation14 + $0x50] sm:$0xf]
    %v2775 = vld [vmem:[#allocation14 + $0x54] sm:$0xff]
    %v2776 = vld [vmem:[#allocation14 + $0x5c] sm:$0xff]
    %v2777 = vld [vmem:[#allocation14 + $0x64] sm:$0xff]
    %v2778 = vld [vmem:[#allocation14 + $0x6c] sm:$0xf]
    %v2779 = vld [vmem:[#allocation14 + $0x70] sm:$0xff]
    %v2780 = vld [vmem:[#allocation14 + $0x78] sm:$0xff]
    %v2781 = vld [vmem:[#allocation14 + $0x80] sm:$0xff]
    %v2782 = vld [vmem:[#allocation14 + $0x88] sm:$0xf]
    %v2783 = vld [vmem:[#allocation14 + $0x8c] sm:$0xff]
    %v2784 = vld [vmem:[#allocation14 + $0x94] sm:$0xff]
    %v2785 = vld [vmem:[#allocation14 + $0x9c] sm:$0xff]
    %v2786 = vld [vmem:[#allocation14 + $0xa4] sm:$0xf]
    %v2787 = vld [vmem:[#allocation14 + $0xa8] sm:$0xff]
    %v2788 = vld [vmem:[#allocation14 + $0xb0] sm:$0xff]
    %v2789 = vld [vmem:[#allocation14 + $0xb8] sm:$0xff]
    %v2790 = vld [vmem:[#allocation14 + $0xc0] sm:$0xf]
    %v2791 = vld [vmem:[#allocation14 + $0xc4] sm:$0xff]
    %v2792 = vld [vmem:[#allocation14 + $0xcc] sm:$0xff]
    %v2793 = vld [vmem:[#allocation14 + $0xd4] sm:$0xff]
    %v2794 = vld [vmem:[#allocation14 + $0xdc] sm:$0xf]
    %v2795 = vld [vmem:[#allocation14 + $0xe0] sm:$0xff]
    %v2796 = vld [vmem:[#allocation14 + $0xe8] sm:$0xff]
    %v2797 = vld [vmem:[#allocation14 + $0xf0] sm:$0xff]
    %v2798 = vld [vmem:[#allocation14 + $0xf8] sm:$0xf]
    %v2799 = vld [vmem:[#allocation14 + $0xfc] sm:$0xff]
    %v2800 = vld [vmem:[#allocation14 + $0x104] sm:$0xff]
    %v2801 = vld [vmem:[#allocation14 + $0x10c] sm:$0xff]
    %v2802 = vld [vmem:[#allocation14 + $0x114] sm:$0xf]
    %v2803 = vld [vmem:[#allocation14 + $0x118] sm:$0xff]
    %v2804 = vld [vmem:[#allocation14 + $0x120] sm:$0xff]
    %v2805 = vld [vmem:[#allocation14 + $0x128] sm:$0xff]
    %v2806 = vld [vmem:[#allocation14 + $0x130] sm:$0xf]
    %v2807 = vld [vmem:[#allocation14 + $0x134] sm:$0xff]
    %v2808 = vld [vmem:[#allocation14 + $0x13c] sm:$0xff]
    %v2809 = vld [vmem:[#allocation14 + $0x144] sm:$0xff]
    %v2810 = vld [vmem:[#allocation14 + $0x14c] sm:$0xf]
    %v2811 = vld [vmem:[#allocation14 + $0x150] sm:$0xff]
    %v2812 = vld [vmem:[#allocation14 + $0x158] sm:$0xff]
    %v2813 = vld [vmem:[#allocation14 + $0x160] sm:$0xff]
    %v2814 = vld [vmem:[#allocation14 + $0x168] sm:$0xf]
    %v2815 = vld [vmem:[#allocation14 + $0x16c] sm:$0xff]
    %v2816 = vld [vmem:[#allocation14 + $0x174] sm:$0xff]
    %v2817 = vld [vmem:[#allocation14 + $0x17c] sm:$0xff]
    %v2818 = vld [vmem:[#allocation14 + $0x184] sm:$0xf]
    %v2819 = vld [vmem:[#allocation14 + $0x188] sm:$0xff]
    %v2820 = vld [vmem:[#allocation14 + $0x190] sm:$0xff]
    %v2821 = vld [vmem:[#allocation14 + $0x198] sm:$0xff]
    %v2822 = vld [vmem:[#allocation14 + $0x1a0] sm:$0xf]
    %v2823 = vld [vmem:[#allocation14 + $0x1a4] sm:$0xff]
    %v2824 = vld [vmem:[#allocation14 + $0x1ac] sm:$0xff]
    %v2825 = vld [vmem:[#allocation14 + $0x1b4] sm:$0xff]
    %v2826 = vld [vmem:[#allocation14 + $0x1bc] sm:$0xf]
    %v2827 = vld [vmem:[#allocation14 + $0x1c0] sm:$0xff]
    %v2828 = vld [vmem:[#allocation14 + $0x1c8] sm:$0xff]
    %v2829 = vld [vmem:[#allocation14 + $0x1d0] sm:$0xff]
    %v2830 = vld [vmem:[#allocation14 + $0x1d8] sm:$0xf]
    %v2831 = vld [vmem:[#allocation14 + $0x1dc] sm:$0xff]
    %v2832 = vld [vmem:[#allocation14 + $0x1e4] sm:$0xff]
    %v2833 = vld [vmem:[#allocation14 + $0x1ec] sm:$0xff]
    %v2834 = vld [vmem:[#allocation14 + $0x1f4] sm:$0xf]
    %v2835 = vld [vmem:[#allocation14 + $0x1f8] sm:$0xff]
    %v2836 = vld [vmem:[#allocation14 + $0x200] sm:$0xff]
    %v2837 = vld [vmem:[#allocation14 + $0x208] sm:$0xff]
    %v2838 = vld [vmem:[#allocation14 + $0x210] sm:$0xf]
    %v2839 = vld [vmem:[#allocation14 + $0x214] sm:$0xff]
    %v2840 = vld [vmem:[#allocation14 + $0x21c] sm:$0xff]
    %v2841 = vld [vmem:[#allocation14 + $0x224] sm:$0xff]
    %v2842 = vld [vmem:[#allocation14 + $0x22c] sm:$0xf]
    %v2843 = vld [vmem:[#allocation14 + $0x230] sm:$0xff]
    %v2844 = vld [vmem:[#allocation14 + $0x238] sm:$0xff]
    %v2845 = vld [vmem:[#allocation14 + $0x240] sm:$0xff]
    %v2846 = vld [vmem:[#allocation14 + $0x248] sm:$0xf]
    %v2847 = vld [vmem:[#allocation14 + $0x24c] sm:$0xff]
    %v2848 = vld [vmem:[#allocation14 + $0x254] sm:$0xff]
    %v2849 = vld [vmem:[#allocation14 + $0x25c] sm:$0xff]
    %v2850 = vld [vmem:[#allocation14 + $0x264] sm:$0xf]
    %v2851 = vld [vmem:[#allocation14 + $0x268] sm:$0xff]
    %v2852 = vld [vmem:[#allocation14 + $0x270] sm:$0xff]
    %v2853 = vld [vmem:[#allocation14 + $0x278] sm:$0xff]
    %v2854 = vld [vmem:[#allocation14 + $0x280] sm:$0xf]
    %v2855 = vld [vmem:[#allocation14 + $0x284] sm:$0xff]
    %v2856 = vld [vmem:[#allocation14 + $0x28c] sm:$0xff]
    %v2857 = vld [vmem:[#allocation14 + $0x294] sm:$0xff]
    %v2858 = vld [vmem:[#allocation14 + $0x29c] sm:$0xf]
    %v2859 = vld [vmem:[#allocation14 + $0x2a0] sm:$0xff]
    %v2860 = vld [vmem:[#allocation14 + $0x2a8] sm:$0xff]
    %v2861 = vld [vmem:[#allocation14 + $0x2b0] sm:$0xff]
    %v2862 = vld [vmem:[#allocation14 + $0x2b8] sm:$0xf]
    %v2863 = vld [vmem:[#allocation14 + $0x2bc] sm:$0xff]
    %v2864 = vld [vmem:[#allocation14 + $0x2c4] sm:$0xff]
    %v2865 = vld [vmem:[#allocation14 + $0x2cc] sm:$0xff]
    %v2866 = vld [vmem:[#allocation14 + $0x2d4] sm:$0xf]
    %v2867 = vld [vmem:[#allocation14 + $0x2d8] sm:$0xff]
    %v2868 = vld [vmem:[#allocation14 + $0x2e0] sm:$0xff]
    %v2869 = vld [vmem:[#allocation14 + $0x2e8] sm:$0xff]
    %v2870 = vld [vmem:[#allocation14 + $0x2f0] sm:$0xf]
    %v2871 = vld [vmem:[#allocation14 + $0x2f4] sm:$0xff]
    %v2872 = vld [vmem:[#allocation14 + $0x2fc] sm:$0xff]
    %v2873 = vld [vmem:[#allocation14 + $0x304] sm:$0xff]
    %v2874 = vld [vmem:[#allocation14 + $0x30c] sm:$0xf]
    %v2875 = vld [vmem:[#allocation14 + $0x310] sm:$0xff]
    %v2876 = vld [vmem:[#allocation14 + $0x318] sm:$0xff]
    %v2877 = vld [vmem:[#allocation14 + $0x320] sm:$0xff]
    %v2878 = vld [vmem:[#allocation14 + $0x328] sm:$0xf]
    %v2879 = vld [vmem:[#allocation14 + $0x32c] sm:$0xff]
    %v2880 = vld [vmem:[#allocation14 + $0x334] sm:$0xff]
    %v2881 = vld [vmem:[#allocation14 + $0x33c] sm:$0xff]
    %v2882 = vld [vmem:[#allocation14 + $0x344] sm:$0xf]
    %v2883 = vld [vmem:[#allocation14 + $0x348] sm:$0xff]
    %v2884 = vld [vmem:[#allocation14 + $0x350] sm:$0xff]
    %v2885 = vld [vmem:[#allocation14 + $0x358] sm:$0xff]
    %v2886 = vld [vmem:[#allocation14 + $0x360] sm:$0xf]
    %v2887 = vld [vmem:[#allocation14 + $0x364] sm:$0xff]
    %v2888 = vld [vmem:[#allocation14 + $0x36c] sm:$0xff]
    %v2889 = vld [vmem:[#allocation14 + $0x374] sm:$0xff]
    %v2890 = vld [vmem:[#allocation14 + $0x37c] sm:$0xf]
    %v2891 = vld [vmem:[#allocation14 + $0x380] sm:$0xff]
    %v2892 = vld [vmem:[#allocation14 + $0x388] sm:$0xff]
    %v2893 = vld [vmem:[#allocation14 + $0x390] sm:$0xff]
    %v2894 = vld [vmem:[#allocation14 + $0x398] sm:$0xf]
    %v2895 = vld [vmem:[#allocation14 + $0x39c] sm:$0xff]
    %v2896 = vld [vmem:[#allocation14 + $0x3a4] sm:$0xff]
    %v2897 = vld [vmem:[#allocation14 + $0x3ac] sm:$0xff]
    %v2898 = vld [vmem:[#allocation14 + $0x3b4] sm:$0xf]
    %v2899 = vld [vmem:[#allocation14 + $0x3b8] sm:$0xff]
    %v2900 = vld [vmem:[#allocation14 + $0x3c0] sm:$0xff]
    %v2901 = vld [vmem:[#allocation14 + $0x3c8] sm:$0xff]
    %v2902 = vld [vmem:[#allocation14 + $0x3d0] sm:$0xf]
    %v2903 = vld [vmem:[#allocation14 + $0x3d4] sm:$0xff]
    %v2904 = vld [vmem:[#allocation14 + $0x3dc] sm:$0xff]
    %v2905 = vld [vmem:[#allocation14 + $0x3e4] sm:$0xff]
    %v2906 = vld [vmem:[#allocation14 + $0x3ec] sm:$0xf]
    %v2907 = vld [vmem:[#allocation14 + $0x3f0] sm:$0xff]
    %v2908 = vld [vmem:[#allocation14 + $0x3f8] sm:$0xff]
    %v2909 = vld [vmem:[#allocation14 + $0x400] sm:$0xff]
    %v2910 = vld [vmem:[#allocation14 + $0x408] sm:$0xf]
    %v2911 = vld [vmem:[#allocation14 + $0x40c] sm:$0xff]
    %v2912 = vld [vmem:[#allocation14 + $0x414] sm:$0xff]
    %v2913 = vld [vmem:[#allocation14 + $0x41c] sm:$0xff]
    %v2914 = vld [vmem:[#allocation14 + $0x424] sm:$0xf]
    %v2915 = vld [vmem:[#allocation14 + $0x428] sm:$0xff]
    %v2916 = vld [vmem:[#allocation14 + $0x430] sm:$0xff]
    %v2917 = vld [vmem:[#allocation14 + $0x438] sm:$0xff]
    %v2918 = vld [vmem:[#allocation14 + $0x440] sm:$0xf]
    %v2919 = vld [vmem:[#allocation14 + $0x444] sm:$0xff]
    %v2920 = vld [vmem:[#allocation14 + $0x44c] sm:$0xff]
    %v2921 = vld [vmem:[#allocation14 + $0x454] sm:$0xff]
    %v2922 = vld [vmem:[#allocation14 + $0x45c] sm:$0xf]
    %v2923 = vld [vmem:[#allocation14 + $0x460] sm:$0xff]
    %v2924 = vld [vmem:[#allocation14 + $0x468] sm:$0xff]
    %v2925 = vld [vmem:[#allocation14 + $0x470] sm:$0xff]
    %v2926 = vld [vmem:[#allocation14 + $0x478] sm:$0xf]
    %v2927 = vld [vmem:[#allocation14 + $0x47c] sm:$0xff]
    %v2928 = vld [vmem:[#allocation14 + $0x484] sm:$0xff]
    %v2929 = vld [vmem:[#allocation14 + $0x48c] sm:$0xff]
    %v2930 = vld [vmem:[#allocation14 + $0x494] sm:$0xf]
    %v2931 = vld [vmem:[#allocation14 + $0x498] sm:$0xff]
    %v2932 = vld [vmem:[#allocation14 + $0x4a0] sm:$0xff]
    %v2933 = vld [vmem:[#allocation14 + $0x4a8] sm:$0xff]
    %v2934 = vld [vmem:[#allocation14 + $0x4b0] sm:$0xf]
    %v2935 = vld [vmem:[#allocation14 + $0x4b4] sm:$0xff]
    %v2936 = vld [vmem:[#allocation14 + $0x4bc] sm:$0xff]
    %v2937 = vld [vmem:[#allocation14 + $0x4c4] sm:$0xff]
    %v2938 = vld [vmem:[#allocation14 + $0x4cc] sm:$0xf]
    %v2939 = vld [vmem:[#allocation14 + $0x4d0] sm:$0xff]
    %v2940 = vld [vmem:[#allocation14 + $0x4d8] sm:$0xff]
    %v2941 = vld [vmem:[#allocation14 + $0x4e0] sm:$0xff]
    %v2942 = vld [vmem:[#allocation14 + $0x4e8] sm:$0xf]
    %v2943 = vld [vmem:[#allocation14 + $0x4ec] sm:$0xff]
    %v2944 = vld [vmem:[#allocation14 + $0x4f4] sm:$0xff]
    %v2945 = vld [vmem:[#allocation14 + $0x4fc] sm:$0xff]
    %v2946 = vld [vmem:[#allocation14 + $0x504] sm:$0xf]
    %v2947 = vld [vmem:[#allocation14 + $0x508] sm:$0xff]
    %v2948 = vld [vmem:[#allocation14 + $0x510] sm:$0xff]
    %v2949 = vld [vmem:[#allocation14 + $0x518] sm:$0xff]
    %v2950 = vld [vmem:[#allocation14 + $0x520] sm:$0xf]
    %v2951 = vld [vmem:[#allocation14 + $0x524] sm:$0xff]
    %v2952 = vld [vmem:[#allocation14 + $0x52c] sm:$0xff]
    %v2953 = vld [vmem:[#allocation14 + $0x534] sm:$0xff]
    %v2954 = vld [vmem:[#allocation14 + $0x53c] sm:$0xf]
    %v2955 = vld [vmem:[#allocation14 + $0x540] sm:$0xff]
    %v2956 = vld [vmem:[#allocation14 + $0x548] sm:$0xff]
    %v2957 = vld [vmem:[#allocation14 + $0x550] sm:$0xff]
    %v2958 = vld [vmem:[#allocation14 + $0x558] sm:$0xf]
    %v2959 = vld [vmem:[#allocation14 + $0x55c] sm:$0xff]
    %v2960 = vld [vmem:[#allocation14 + $0x564] sm:$0xff]
    %v2961 = vld [vmem:[#allocation14 + $0x56c] sm:$0xff]
    %v2962 = vld [vmem:[#allocation14 + $0x574] sm:$0xf]
    %v2963 = vld [vmem:[#allocation14 + $0x578] sm:$0xff]
    %v2964 = vld [vmem:[#allocation14 + $0x580] sm:$0xff]
    %v2965 = vld [vmem:[#allocation14 + $0x588] sm:$0xff]
    %v2966 = vld [vmem:[#allocation14 + $0x590] sm:$0xf]
    %v2967 = vld [vmem:[#allocation14 + $0x594] sm:$0xff]
    %v2968 = vld [vmem:[#allocation14 + $0x59c] sm:$0xff]
    %v2969 = vld [vmem:[#allocation14 + $0x5a4] sm:$0xff]
    %v2970 = vld [vmem:[#allocation14 + $0x5ac] sm:$0xf]
    %v2971 = vld [vmem:[#allocation14 + $0x5b0] sm:$0xff]
    %v2972 = vld [vmem:[#allocation14 + $0x5b8] sm:$0xff]
    %v2973 = vld [vmem:[#allocation14 + $0x5c0] sm:$0xff]
    %v2974 = vld [vmem:[#allocation14 + $0x5c8] sm:$0xf]
    %v2975 = vld [vmem:[#allocation14 + $0x5cc] sm:$0xff]
    %v2976 = vld [vmem:[#allocation14 + $0x5d4] sm:$0xff]
    %v2977 = vld [vmem:[#allocation14 + $0x5dc] sm:$0xff]
    %v2978 = vld [vmem:[#allocation14 + $0x5e4] sm:$0xf]
    %v2979 = vld [vmem:[#allocation14 + $0x5e8] sm:$0xff]
    %v2980 = vld [vmem:[#allocation14 + $0x5f0] sm:$0xff]
    %v2981 = vld [vmem:[#allocation14 + $0x5f8] sm:$0xff]
    %v2982 = vld [vmem:[#allocation14 + $0x600] sm:$0xf]
    %v2983 = vld [vmem:[#allocation14 + $0x604] sm:$0xff]
    %v2984 = vld [vmem:[#allocation14 + $0x60c] sm:$0xff]
    %v2985 = vld [vmem:[#allocation14 + $0x614] sm:$0xff]
    %v2986 = vld [vmem:[#allocation14 + $0x61c] sm:$0xf]
    %v2987 = vld [vmem:[#allocation14 + $0x620] sm:$0xff]
    %v2988 = vld [vmem:[#allocation14 + $0x628] sm:$0xff]
    %v2989 = vld [vmem:[#allocation14 + $0x630] sm:$0xff]
    %v2990 = vld [vmem:[#allocation14 + $0x638] sm:$0xf]
    %v2991 = vld [vmem:[#allocation14 + $0x63c] sm:$0xff]
    %v2992 = vld [vmem:[#allocation14 + $0x644] sm:$0xff]
    %v2993 = vld [vmem:[#allocation14 + $0x64c] sm:$0xff]
    %v2994 = vld [vmem:[#allocation14 + $0x654] sm:$0xf]
    %v2995 = vld [vmem:[#allocation14 + $0x658] sm:$0xff]
    %v2996 = vld [vmem:[#allocation14 + $0x660] sm:$0xff]
    %v2997 = vld [vmem:[#allocation14 + $0x668] sm:$0xff]
    %v2998 = vld [vmem:[#allocation14 + $0x670] sm:$0xf]
    %v2999 = vld [vmem:[#allocation14 + $0x674] sm:$0xff]
    %v3000 = vld [vmem:[#allocation14 + $0x67c] sm:$0xff]
    %v3001 = vld [vmem:[#allocation14 + $0x684] sm:$0xff]
    %v3002 = vld [vmem:[#allocation14 + $0x68c] sm:$0xf]
    %v3003 = vld [vmem:[#allocation14 + $0x690] sm:$0xff]
    %v3004 = vld [vmem:[#allocation14 + $0x698] sm:$0xff]
    %v3005 = vld [vmem:[#allocation14 + $0x6a0] sm:$0xff]
    %v3006 = vld [vmem:[#allocation14 + $0x6a8] sm:$0xf]
    %v3007 = vld [vmem:[#allocation14 + $0x6ac] sm:$0xff]
    %v3008 = vld [vmem:[#allocation14 + $0x6b4] sm:$0xff]
    %v3009 = vld [vmem:[#allocation14 + $0x6bc] sm:$0xff]
    %v3010 = vld [vmem:[#allocation14 + $0x6c4] sm:$0xf]
    %v3011 = vld [vmem:[#allocation14 + $0x6c8] sm:$0xff]
    %v3012 = vld [vmem:[#allocation14 + $0x6d0] sm:$0xff]
    %v3013 = vld [vmem:[#allocation14 + $0x6d8] sm:$0xff]
    %v3014 = vld [vmem:[#allocation14 + $0x6e0] sm:$0xf]
    %v3015 = vld [vmem:[#allocation14 + $0x6e4] sm:$0xff]
    %v3016 = vld [vmem:[#allocation14 + $0x6ec] sm:$0xff]
    %v3017 = vld [vmem:[#allocation14 + $0x6f4] sm:$0xff]
    %v3018 = vld [vmem:[#allocation14 + $0x6fc] sm:$0xf]
    %v3019 = vld [vmem:[#allocation14 + $0x700] sm:$0xff]
    %v3020 = vld [vmem:[#allocation14 + $0x708] sm:$0xff]
    %v3021 = vld [vmem:[#allocation14 + $0x710] sm:$0xff]
    %v3022 = vld [vmem:[#allocation14 + $0x718] sm:$0xf]
    %v3023 = vld [vmem:[#allocation14 + $0x71c] sm:$0xff]
    %v3024 = vld [vmem:[#allocation14 + $0x724] sm:$0xff]
    %v3025 = vld [vmem:[#allocation14 + $0x72c] sm:$0xff]
    %v3026 = vld [vmem:[#allocation14 + $0x734] sm:$0xf]
    %v3027 = vld [vmem:[#allocation14 + $0x738] sm:$0xff]
    %v3028 = vld [vmem:[#allocation14 + $0x740] sm:$0xff]
    %v3029 = vld [vmem:[#allocation14 + $0x748] sm:$0xff]
    %v3030 = vld [vmem:[#allocation14 + $0x750] sm:$0xf]
    %v3031 = vld [vmem:[#allocation14 + $0x754] sm:$0xff]
    %v3032 = vld [vmem:[#allocation14 + $0x75c] sm:$0xff]
    %v3033 = vld [vmem:[#allocation14 + $0x764] sm:$0xff]
    %v3034 = vld [vmem:[#allocation14 + $0x76c] sm:$0xf]
    %v3035 = vld [vmem:[#allocation14 + $0x770] sm:$0xff]
    %v3036 = vld [vmem:[#allocation14 + $0x778] sm:$0xff]
    %v3037 = vld [vmem:[#allocation14 + $0x780] sm:$0xff]
    %v3038 = vld [vmem:[#allocation14 + $0x788] sm:$0xf]
    %v3039 = vld [vmem:[#allocation14 + $0x78c] sm:$0xff]
    %v3040 = vld [vmem:[#allocation14 + $0x794] sm:$0xff]
    %v3041 = vld [vmem:[#allocation14 + $0x79c] sm:$0xff]
    %v3042 = vld [vmem:[#allocation14 + $0x7a4] sm:$0xf]
    %v3043 = vld [vmem:[#allocation14 + $0x7a8] sm:$0xff]
    %v3044 = vld [vmem:[#allocation14 + $0x7b0] sm:$0xff]
    %v3045 = vld [vmem:[#allocation14 + $0x7b8] sm:$0xff]
    %v3046 = vld [vmem:[#allocation14 + $0x7c0] sm:$0xf]
    %v3047 = vld [vmem:[#allocation14 + $0x7c4] sm:$0xff]
    %v3048 = vld [vmem:[#allocation14 + $0x7cc] sm:$0xff]
    %v3049 = vld [vmem:[#allocation14 + $0x7d4] sm:$0xff]
    %v3050 = vld [vmem:[#allocation14 + $0x7dc] sm:$0xf]
    %v3051 = vld [vmem:[#allocation14 + $0x7e0] sm:$0xff]
    %v3052 = vld [vmem:[#allocation14 + $0x7e8] sm:$0xff]
    %v3053 = vld [vmem:[#allocation14 + $0x7f0] sm:$0xff]
    %v3054 = vld [vmem:[#allocation14 + $0x7f8] sm:$0xf]
    %v3055 = vld [vmem:[#allocation14 + $0x7fc] sm:$0xff]
    %v3056 = vld [vmem:[#allocation14 + $0x804] sm:$0xff]
    %v3057 = vld [vmem:[#allocation14 + $0x80c] sm:$0xff]
    %v3058 = vld [vmem:[#allocation14 + $0x814] sm:$0xf]
    %v3059 = vld [vmem:[#allocation14 + $0x818] sm:$0xff]
    %v3060 = vld [vmem:[#allocation14 + $0x820] sm:$0xff]
    %v3061 = vld [vmem:[#allocation14 + $0x828] sm:$0xff]
    %v3062 = vld [vmem:[#allocation14 + $0x830] sm:$0xf]
    %v3063 = vld [vmem:[#allocation14 + $0x834] sm:$0xff]
    %v3064 = vld [vmem:[#allocation14 + $0x83c] sm:$0xff]
    %v3065 = vld [vmem:[#allocation14 + $0x844] sm:$0xff]
    %v3066 = vld [vmem:[#allocation14 + $0x84c] sm:$0xf]
    %v3067 = vld [vmem:[#allocation14 + $0x850] sm:$0xff]
    %v3068 = vld [vmem:[#allocation14 + $0x858] sm:$0xff]
    %v3069 = vld [vmem:[#allocation14 + $0x860] sm:$0xff]
    %v3070 = vld [vmem:[#allocation14 + $0x868] sm:$0xf]
    %v3071 = vld [vmem:[#allocation14 + $0x86c] sm:$0xff]
    %v3072 = vld [vmem:[#allocation14 + $0x874] sm:$0xff]
    %v3073 = vld [vmem:[#allocation14 + $0x87c] sm:$0xff]
    %v3074 = vld [vmem:[#allocation14 + $0x884] sm:$0xf]
    %v3075 = vld [vmem:[#allocation14 + $0x888] sm:$0xff]
    %v3076 = vld [vmem:[#allocation14 + $0x890] sm:$0xff]
    %v3077 = vld [vmem:[#allocation14 + $0x898] sm:$0xff]
    %v3078 = vld [vmem:[#allocation14 + $0x8a0] sm:$0xf]
    %v3079 = vld [vmem:[#allocation14 + $0x8a4] sm:$0xff]
    %v3080 = vld [vmem:[#allocation14 + $0x8ac] sm:$0xff]
    %v3081 = vld [vmem:[#allocation14 + $0x8b4] sm:$0xff]
    %v3082 = vld [vmem:[#allocation14 + $0x8bc] sm:$0xf]
    %v3083 = vld [vmem:[#allocation14 + $0x8c0] sm:$0xff]
    %v3084 = vld [vmem:[#allocation14 + $0x8c8] sm:$0xff]
    %v3085 = vld [vmem:[#allocation14 + $0x8d0] sm:$0xff]
    %v3086 = vld [vmem:[#allocation14 + $0x8d8] sm:$0xf]
    %v3087 = vld [vmem:[#allocation14 + $0x8dc] sm:$0xff]
    %v3088 = vld [vmem:[#allocation14 + $0x8e4] sm:$0xff]
    %v3089 = vld [vmem:[#allocation14 + $0x8ec] sm:$0xff]
    %v3090 = vld [vmem:[#allocation14 + $0x8f4] sm:$0xf]
    %v3091 = vld [vmem:[#allocation14 + $0x8f8] sm:$0xff]
    %v3092 = vld [vmem:[#allocation14 + $0x900] sm:$0xff]
    %v3093 = vld [vmem:[#allocation14 + $0x908] sm:$0xff]
    %v3094 = vld [vmem:[#allocation14 + $0x910] sm:$0xf]
    %v3095 = vld [vmem:[#allocation14 + $0x914] sm:$0xff]
    %v3096 = vld [vmem:[#allocation14 + $0x91c] sm:$0xff]
    %v3097 = vld [vmem:[#allocation14 + $0x924] sm:$0xff]
    %v3098 = vld [vmem:[#allocation14 + $0x92c] sm:$0xf]
    %v3099 = vld [vmem:[#allocation14 + $0x930] sm:$0xff]
    %v3100 = vld [vmem:[#allocation14 + $0x938] sm:$0xff]
    %v3101 = vld [vmem:[#allocation14 + $0x940] sm:$0xff]
    %v3102 = vld [vmem:[#allocation14 + $0x948] sm:$0xf]
    %v3103 = vld [vmem:[#allocation14 + $0x94c] sm:$0xff]
    %v3104 = vld [vmem:[#allocation14 + $0x954] sm:$0xff]
    %v3105 = vld [vmem:[#allocation14 + $0x95c] sm:$0xff]
    %v3106 = vld [vmem:[#allocation14 + $0x964] sm:$0xf]
    %v3107 = vld [vmem:[#allocation14 + $0x968] sm:$0xff]
    %v3108 = vld [vmem:[#allocation14 + $0x970] sm:$0xff]
    %v3109 = vld [vmem:[#allocation14 + $0x978] sm:$0xff]
    %v3110 = vld [vmem:[#allocation14 + $0x980] sm:$0xf]
    %v3111 = vld [vmem:[#allocation14 + $0x984] sm:$0xff]
    %v3112 = vld [vmem:[#allocation14 + $0x98c] sm:$0xff]
    %v3113 = vld [vmem:[#allocation14 + $0x994] sm:$0xff]
    %v3114 = vld [vmem:[#allocation14 + $0x99c] sm:$0xf]
    %v3115 = vld [vmem:[#allocation14 + $0x9a0] sm:$0xff]
    %v3116 = vld [vmem:[#allocation14 + $0x9a8] sm:$0xff]
    %v3117 = vld [vmem:[#allocation14 + $0x9b0] sm:$0xff]
    %v3118 = vld [vmem:[#allocation14 + $0x9b8] sm:$0xf]
    %v3119 = vld [vmem:[#allocation14 + $0x9bc] sm:$0xff]
    %v3120 = vld [vmem:[#allocation14 + $0x9c4] sm:$0xff]
    %v3121 = vld [vmem:[#allocation14 + $0x9cc] sm:$0xff]
    %v3122 = vld [vmem:[#allocation14 + $0x9d4] sm:$0xf]
    %v3123 = vld [vmem:[#allocation14 + $0x9d8] sm:$0xff]
    %v3124 = vld [vmem:[#allocation14 + $0x9e0] sm:$0xff]
    %v3125 = vld [vmem:[#allocation14 + $0x9e8] sm:$0xff]
    %v3126 = vld [vmem:[#allocation14 + $0x9f0] sm:$0xf]
    %v3127 = vld [vmem:[#allocation14 + $0x9f4] sm:$0xff]
    %v3128 = vld [vmem:[#allocation14 + $0x9fc] sm:$0xff]
    %v3129 = vld [vmem:[#allocation14 + $0xa04] sm:$0xff]
    %v3130 = vld [vmem:[#allocation14 + $0xa0c] sm:$0xf]
    %v3131 = vld [vmem:[#allocation14 + $0xa10] sm:$0xff]
    %v3132 = vld [vmem:[#allocation14 + $0xa18] sm:$0xff]
    %v3133 = vld [vmem:[#allocation14 + $0xa20] sm:$0xff]
    %v3134 = vld [vmem:[#allocation14 + $0xa28] sm:$0xf]
    %v3135 = vld [vmem:[#allocation14 + $0xa2c] sm:$0xff]
    %v3136 = vld [vmem:[#allocation14 + $0xa34] sm:$0xff]
    %v3137 = vld [vmem:[#allocation14 + $0xa3c] sm:$0xff]
    %v3138 = vld [vmem:[#allocation14 + $0xa44] sm:$0xf]
    %v3139 = vld [vmem:[#allocation14 + $0xa48] sm:$0xff]
    %v3140 = vld [vmem:[#allocation14 + $0xa50] sm:$0xff]
    %v3141 = vld [vmem:[#allocation14 + $0xa58] sm:$0xff]
    %v3142 = vld [vmem:[#allocation14 + $0xa60] sm:$0xf]
    %v3143 = vld [vmem:[#allocation14 + $0xa64] sm:$0xff]
    %v3144 = vld [vmem:[#allocation14 + $0xa6c] sm:$0xff]
    %v3145 = vld [vmem:[#allocation14 + $0xa74] sm:$0xff]
    %v3146 = vld [vmem:[#allocation14 + $0xa7c] sm:$0xf]
    %v3147 = vld [vmem:[#allocation14 + $0xa80] sm:$0xff]
    %v3148 = vld [vmem:[#allocation14 + $0xa88] sm:$0xff]
    %v3149 = vld [vmem:[#allocation14 + $0xa90] sm:$0xff]
    %v3150 = vld [vmem:[#allocation14 + $0xa98] sm:$0xf]
    %v3151 = vld [vmem:[#allocation14 + $0xa9c] sm:$0xff]
    %v3152 = vld [vmem:[#allocation14 + $0xaa4] sm:$0xff]
    %v3153 = vld [vmem:[#allocation14 + $0xaac] sm:$0xff]
    %v3154 = vld [vmem:[#allocation14 + $0xab4] sm:$0xf]
    %v3155 = vld [vmem:[#allocation14 + $0xab8] sm:$0xff]
    %v3156 = vld [vmem:[#allocation14 + $0xac0] sm:$0xff]
    %v3157 = vld [vmem:[#allocation14 + $0xac8] sm:$0xff]
    %v3158 = vld [vmem:[#allocation14 + $0xad0] sm:$0xf]
    %v3159 = vld [vmem:[#allocation14 + $0xad4] sm:$0xff]
    %v3160 = vld [vmem:[#allocation14 + $0xadc] sm:$0xff]
    %v3161 = vld [vmem:[#allocation14 + $0xae4] sm:$0xff]
    %v3162 = vld [vmem:[#allocation14 + $0xaec] sm:$0xf]
    %v3163 = vld [vmem:[#allocation14 + $0xaf0] sm:$0xff]
    %v3164 = vld [vmem:[#allocation14 + $0xaf8] sm:$0xff]
    %v3165 = vld [vmem:[#allocation14 + $0xb00] sm:$0xff]
    %v3166 = vld [vmem:[#allocation14 + $0xb08] sm:$0xf]
    %v3167 = vld [vmem:[#allocation14 + $0xb0c] sm:$0xff]
    %v3168 = vld [vmem:[#allocation14 + $0xb14] sm:$0xff]
    %v3169 = vld [vmem:[#allocation14 + $0xb1c] sm:$0xff]
    %v3170 = vld [vmem:[#allocation14 + $0xb24] sm:$0xf]
    %v3171 = vld [vmem:[#allocation14 + $0xb28] sm:$0xff]
    %v3172 = vld [vmem:[#allocation14 + $0xb30] sm:$0xff]
    %v3173 = vld [vmem:[#allocation14 + $0xb38] sm:$0xff]
    %v3174 = vld [vmem:[#allocation14 + $0xb40] sm:$0xf]
    %v3175 = vld [vmem:[#allocation14 + $0xb44] sm:$0xff]
    %v3176 = vld [vmem:[#allocation14 + $0xb4c] sm:$0xff]
    %v3177 = vld [vmem:[#allocation14 + $0xb54] sm:$0xff]
    %v3178 = vld [vmem:[#allocation14 + $0xb5c] sm:$0xf]
    %v3179 = vld [vmem:[#allocation14 + $0xb60] sm:$0xff]
    %v3180 = vld [vmem:[#allocation14 + $0xb68] sm:$0xff]
    %v3181 = vld [vmem:[#allocation14 + $0xb70] sm:$0xff]
    %v3182 = vld [vmem:[#allocation14 + $0xb78] sm:$0xf]
    %v3183 = vld [vmem:[#allocation14 + $0xb7c] sm:$0xff]
    %v3184 = vld [vmem:[#allocation14 + $0xb84] sm:$0xff]
    %v3185 = vld [vmem:[#allocation14 + $0xb8c] sm:$0xff]
    %v3186 = vld [vmem:[#allocation14 + $0xb94] sm:$0xf]
    %v3187 = vld [vmem:[#allocation14 + $0xb98] sm:$0xff]
    %v3188 = vld [vmem:[#allocation14 + $0xba0] sm:$0xff]
    %v3189 = vld [vmem:[#allocation14 + $0xba8] sm:$0xff]
    %v3190 = vld [vmem:[#allocation14 + $0xbb0] sm:$0xf]
    %v3191 = vld [vmem:[#allocation14 + $0xbb4] sm:$0xff]
    %v3192 = vld [vmem:[#allocation14 + $0xbbc] sm:$0xff]
    %v3193 = vld [vmem:[#allocation14 + $0xbc4] sm:$0xff]
    %v3194 = vld [vmem:[#allocation14 + $0xbcc] sm:$0xf]
    %v3195 = vld [vmem:[#allocation14 + $0xbd0] sm:$0xff]
    %v3196 = vld [vmem:[#allocation14 + $0xbd8] sm:$0xff]
    %v3197 = vld [vmem:[#allocation14 + $0xbe0] sm:$0xff]
    %v3198 = vld [vmem:[#allocation14 + $0xbe8] sm:$0xf]
    %v3199 = vld [vmem:[#allocation14 + $0xbec] sm:$0xff]
    %v3200 = vld [vmem:[#allocation14 + $0xbf4] sm:$0xff]
    %v3201 = vld [vmem:[#allocation14 + $0xbfc] sm:$0xff]
    %v3202 = vld [vmem:[#allocation14 + $0xc04] sm:$0xf]
    %v3203 = vld [vmem:[#allocation14 + $0xc08] sm:$0xff]
    %v3204 = vld [vmem:[#allocation14 + $0xc10] sm:$0xff]
    %v3205 = vld [vmem:[#allocation14 + $0xc18] sm:$0xff]
    %v3206 = vld [vmem:[#allocation14 + $0xc20] sm:$0xf]
    %v3207 = vld [vmem:[#allocation14 + $0xc24] sm:$0xff]
    %v3208 = vld [vmem:[#allocation14 + $0xc2c] sm:$0xff]
    %v3209 = vld [vmem:[#allocation14 + $0xc34] sm:$0xff]
    %v3210 = vld [vmem:[#allocation14 + $0xc3c] sm:$0xf]
    %v3211 = vld [vmem:[#allocation14 + $0xc40] sm:$0xff]
    %v3212 = vld [vmem:[#allocation14 + $0xc48] sm:$0xff]
    %v3213 = vld [vmem:[#allocation14 + $0xc50] sm:$0xff]
    %v3214 = vld [vmem:[#allocation14 + $0xc58] sm:$0xf]
    %v3215 = vld [vmem:[#allocation14 + $0xc5c] sm:$0xff]
    %v3216 = vld [vmem:[#allocation14 + $0xc64] sm:$0xff]
    %v3217 = vld [vmem:[#allocation14 + $0xc6c] sm:$0xff]
    %v3218 = vld [vmem:[#allocation14 + $0xc74] sm:$0xf]
    %v3219 = vld [vmem:[#allocation14 + $0xc78] sm:$0xff]
    %v3220 = vld [vmem:[#allocation14 + $0xc80] sm:$0xff]
    %v3221 = vld [vmem:[#allocation14 + $0xc88] sm:$0xff]
    %v3222 = vld [vmem:[#allocation14 + $0xc90] sm:$0xf]
    %v3223 = vld [vmem:[#allocation14 + $0xc94] sm:$0xff]
    %v3224 = vld [vmem:[#allocation14 + $0xc9c] sm:$0xff]
    %v3225 = vld [vmem:[#allocation14 + $0xca4] sm:$0xff]
    %v3226 = vld [vmem:[#allocation14 + $0xcac] sm:$0xf]
    %v3227 = vld [vmem:[#allocation14 + $0xcb0] sm:$0xff]
    %v3228 = vld [vmem:[#allocation14 + $0xcb8] sm:$0xff]
    %v3229 = vld [vmem:[#allocation14 + $0xcc0] sm:$0xff]
    %v3230 = vld [vmem:[#allocation14 + $0xcc8] sm:$0xf]
    %v3231 = vld [vmem:[#allocation14 + $0xccc] sm:$0xff]
    %v3232 = vld [vmem:[#allocation14 + $0xcd4] sm:$0xff]
    %v3233 = vld [vmem:[#allocation14 + $0xcdc] sm:$0xff]
    %v3234 = vld [vmem:[#allocation14 + $0xce4] sm:$0xf]
    %v3235 = vld [vmem:[#allocation14 + $0xce8] sm:$0xff]
    %v3236 = vld [vmem:[#allocation14 + $0xcf0] sm:$0xff]
    %v3237 = vld [vmem:[#allocation14 + $0xcf8] sm:$0xff]
    %v3238 = vld [vmem:[#allocation14 + $0xd00] sm:$0xf]
    %v3239 = vld [vmem:[#allocation14 + $0xd04] sm:$0xff]
    %v3240 = vld [vmem:[#allocation14 + $0xd0c] sm:$0xff]
    %v3241 = vld [vmem:[#allocation14 + $0xd14] sm:$0xff]
    %v3242 = vld [vmem:[#allocation14 + $0xd1c] sm:$0xf]
    %v3243 = vld [vmem:[#allocation14 + $0xd20] sm:$0xff]
    %v3244 = vld [vmem:[#allocation14 + $0xd28] sm:$0xff]
    %v3245 = vld [vmem:[#allocation14 + $0xd30] sm:$0xff]
    %v3246 = vld [vmem:[#allocation14 + $0xd38] sm:$0xf]
    %v3247 = vld [vmem:[#allocation14 + $0xd3c] sm:$0xff]
    %v3248 = vld [vmem:[#allocation14 + $0xd44] sm:$0xff]
    %v3249 = vld [vmem:[#allocation14 + $0xd4c] sm:$0xff]
    %v3250 = vld [vmem:[#allocation14 + $0xd54] sm:$0xf]
    %v3251 = vld [vmem:[#allocation14 + $0xd58] sm:$0xff]
    %v3252 = vld [vmem:[#allocation14 + $0xd60] sm:$0xff]
    %v3253 = vld [vmem:[#allocation14 + $0xd68] sm:$0xff]
    %v3254 = vld [vmem:[#allocation14 + $0xd70] sm:$0xf]
    %v3255 = vld [vmem:[#allocation14 + $0xd74] sm:$0xff]
    %v3256 = vld [vmem:[#allocation14 + $0xd7c] sm:$0xff]
    %v3257 = vld [vmem:[#allocation14 + $0xd84] sm:$0xff]
    %v3258 = vld [vmem:[#allocation14 + $0xd8c] sm:$0xf]
    %v3259 = vld [vmem:[#allocation14 + $0xd90] sm:$0xff]
    %v3260 = vld [vmem:[#allocation14 + $0xd98] sm:$0xff]
    %v3261 = vld [vmem:[#allocation14 + $0xda0] sm:$0xff]
    %v3262 = vld [vmem:[#allocation14 + $0xda8] sm:$0xf]
    %v3263 = vld [vmem:[#allocation14 + $0xdac] sm:$0xff]
    %v3264 = vld [vmem:[#allocation14 + $0xdb4] sm:$0xff]
    %v3265 = vld [vmem:[#allocation14 + $0xdbc] sm:$0xff]
    %v3266 = vld [vmem:[#allocation14 + $0xdc4] sm:$0xf]
    %v3267 = vld [vmem:[#allocation14 + $0xdc8] sm:$0xff]
    %v3268 = vld [vmem:[#allocation14 + $0xdd0] sm:$0xff]
    %v3269 = vld [vmem:[#allocation14 + $0xdd8] sm:$0xff]
    %v3270 = vld [vmem:[#allocation14 + $0xde0] sm:$0xf]
    %v3271 = vld [vmem:[#allocation14 + $0xde4] sm:$0xff]
    %v3272 = vld [vmem:[#allocation14 + $0xdec] sm:$0xff]
    %v3273 = vld [vmem:[#allocation14 + $0xdf4] sm:$0xff]
    %v3274 = vld [vmem:[#allocation14 + $0xdfc] sm:$0xf]
    %v3275 = vld [vmem:[#allocation16] sm:$0xff]
    %v3277 = vlaneseq
    %v3278 = vshrl.u32 %v3277, 7
    %v3279 = vsub.s32 0, %v3278
    %v3280 = vrot.slane %v3275, %v3279
    %v3281 = vlaneseq
    %v3282 = vshrl.u32 %v3281, 7
    %v3283 = vsub.s32 1, %v3282
    %v3284 = vrot.slane %v3275, %v3283
    %v3285 = vlaneseq
    %v3286 = vshrl.u32 %v3285, 7
    %v3287 = vsub.s32 2, %v3286
    %v3288 = vrot.slane %v3275, %v3287
    %v3289 = vlaneseq
    %v3290 = vshrl.u32 %v3289, 7
    %v3291 = vsub.s32 3, %v3290
    %v3292 = vrot.slane %v3275, %v3291
    %v3293 = vlaneseq
    %v3294 = vshrl.u32 %v3293, 7
    %v3295 = vsub.s32 4, %v3294
    %v3296 = vrot.slane %v3275, %v3295
    %v3297 = vlaneseq
    %v3298 = vshrl.u32 %v3297, 7
    %v3299 = vsub.s32 5, %v3298
    %v3300 = vrot.slane %v3275, %v3299
    %v3301 = vlaneseq
    %v3302 = vshrl.u32 %v3301, 7
    %v3303 = vsub.s32 6, %v3302
    %v3304 = vrot.slane %v3275, %v3303
    %v3824 = vunpack.c.l.b16 %v2763
    %v3825 = vunpack.c.h.b16 %v2763
    %v3826 = vunpack.c.l.b16 %v2764
    %v3827 = vunpack.c.h.b16 %v2764
    %v3828 = vunpack.c.l.b16 %v2765
    %v3829 = vunpack.c.h.b16 %v2765
    %v3830 = vunpack.c.l.b16 %v2766
    %v3831 = vunpack.c.l.b16 %v2767
    %v3832 = vunpack.c.h.b16 %v2767
    %v3833 = vunpack.c.l.b16 %v2768
    %v3834 = vunpack.c.h.b16 %v2768
    %v3835 = vunpack.c.l.b16 %v2769
    %v3836 = vunpack.c.h.b16 %v2769
    %v3837 = vunpack.c.l.b16 %v2770
    %v3838 = vunpack.c.l.b16 %v2771
    %v3839 = vunpack.c.h.b16 %v2771
    %v3840 = vunpack.c.l.b16 %v2772
    %v3841 = vunpack.c.h.b16 %v2772
    %v3842 = vunpack.c.l.b16 %v2773
    %v3843 = vunpack.c.h.b16 %v2773
    %v3844 = vunpack.c.l.b16 %v2774
    %v3845 = vunpack.c.l.b16 %v2775
    %v3846 = vunpack.c.h.b16 %v2775
    %v3847 = vunpack.c.l.b16 %v2776
    %v3848 = vunpack.c.h.b16 %v2776
    %v3849 = vunpack.c.l.b16 %v2777
    %v3850 = vunpack.c.h.b16 %v2777
    %v3851 = vunpack.c.l.b16 %v2778
    %v3852 = vunpack.c.l.b16 %v2779
    %v3853 = vunpack.c.h.b16 %v2779
    %v3854 = vunpack.c.l.b16 %v2780
    %v3855 = vunpack.c.h.b16 %v2780
    %v3856 = vunpack.c.l.b16 %v2781
    %v3857 = vunpack.c.h.b16 %v2781
    %v3858 = vunpack.c.l.b16 %v2782
    %v3859 = vunpack.c.l.b16 %v2783
    %v3860 = vunpack.c.h.b16 %v2783
    %v3861 = vunpack.c.l.b16 %v2784
    %v3862 = vunpack.c.h.b16 %v2784
    %v3863 = vunpack.c.l.b16 %v2785
    %v3864 = vunpack.c.h.b16 %v2785
    %v3865 = vunpack.c.l.b16 %v2786
    %v3866 = vunpack.c.l.b16 %v2787
    %v3867 = vunpack.c.h.b16 %v2787
    %v3868 = vunpack.c.l.b16 %v2788
    %v3869 = vunpack.c.h.b16 %v2788
    %v3870 = vunpack.c.l.b16 %v2789
    %v3871 = vunpack.c.h.b16 %v2789
    %v3872 = vunpack.c.l.b16 %v2790
    %v3873 = vunpack.c.l.b16 %v2791
    %v3874 = vunpack.c.h.b16 %v2791
    %v3875 = vunpack.c.l.b16 %v2792
    %v3876 = vunpack.c.h.b16 %v2792
    %v3877 = vunpack.c.l.b16 %v2793
    %v3878 = vunpack.c.h.b16 %v2793
    %v3879 = vunpack.c.l.b16 %v2794
    %v3880 = vunpack.c.l.b16 %v2795
    %v3881 = vunpack.c.h.b16 %v2795
    %v3882 = vunpack.c.l.b16 %v2796
    %v3883 = vunpack.c.h.b16 %v2796
    %v3884 = vunpack.c.l.b16 %v2797
    %v3885 = vunpack.c.h.b16 %v2797
    %v3886 = vunpack.c.l.b16 %v2798
    %v3887 = vunpack.c.l.b16 %v2799
    %v3888 = vunpack.c.h.b16 %v2799
    %v3889 = vunpack.c.l.b16 %v2800
    %v3890 = vunpack.c.h.b16 %v2800
    %v3891 = vunpack.c.l.b16 %v2801
    %v3892 = vunpack.c.h.b16 %v2801
    %v3893 = vunpack.c.l.b16 %v2802
    %v3894 = vunpack.c.l.b16 %v2803
    %v3895 = vunpack.c.h.b16 %v2803
    %v3896 = vunpack.c.l.b16 %v2804
    %v3897 = vunpack.c.h.b16 %v2804
    %v3898 = vunpack.c.l.b16 %v2805
    %v3899 = vunpack.c.h.b16 %v2805
    %v3900 = vunpack.c.l.b16 %v2806
    %v3901 = vunpack.c.l.b16 %v2807
    %v3902 = vunpack.c.h.b16 %v2807
    %v3903 = vunpack.c.l.b16 %v2808
    %v3904 = vunpack.c.h.b16 %v2808
    %v3905 = vunpack.c.l.b16 %v2809
    %v3906 = vunpack.c.h.b16 %v2809
    %v3907 = vunpack.c.l.b16 %v2810
    %v3908 = vunpack.c.l.b16 %v2811
    %v3909 = vunpack.c.h.b16 %v2811
    %v3910 = vunpack.c.l.b16 %v2812
    %v3911 = vunpack.c.h.b16 %v2812
    %v3912 = vunpack.c.l.b16 %v2813
    %v3913 = vunpack.c.h.b16 %v2813
    %v3914 = vunpack.c.l.b16 %v2814
    %v3915 = vunpack.c.l.b16 %v2815
    %v3916 = vunpack.c.h.b16 %v2815
    %v3917 = vunpack.c.l.b16 %v2816
    %v3918 = vunpack.c.h.b16 %v2816
    %v3919 = vunpack.c.l.b16 %v2817
    %v3920 = vunpack.c.h.b16 %v2817
    %v3921 = vunpack.c.l.b16 %v2818
    %v3922 = vunpack.c.l.b16 %v2819
    %v3923 = vunpack.c.h.b16 %v2819
    %v3924 = vunpack.c.l.b16 %v2820
    %v3925 = vunpack.c.h.b16 %v2820
    %v3926 = vunpack.c.l.b16 %v2821
    %v3927 = vunpack.c.h.b16 %v2821
    %v3928 = vunpack.c.l.b16 %v2822
    %v3929 = vunpack.c.l.b16 %v2823
    %v3930 = vunpack.c.h.b16 %v2823
    %v3931 = vunpack.c.l.b16 %v2824
    %v3932 = vunpack.c.h.b16 %v2824
    %v3933 = vunpack.c.l.b16 %v2825
    %v3934 = vunpack.c.h.b16 %v2825
    %v3935 = vunpack.c.l.b16 %v2826
    %v3936 = vunpack.c.l.b16 %v2827
    %v3937 = vunpack.c.h.b16 %v2827
    %v3938 = vunpack.c.l.b16 %v2828
    %v3939 = vunpack.c.h.b16 %v2828
    %v3940 = vunpack.c.l.b16 %v2829
    %v3941 = vunpack.c.h.b16 %v2829
    %v3942 = vunpack.c.l.b16 %v2830
    %v3943 = vunpack.c.l.b16 %v2831
    %v3944 = vunpack.c.h.b16 %v2831
    %v3945 = vunpack.c.l.b16 %v2832
    %v3946 = vunpack.c.h.b16 %v2832
    %v3947 = vunpack.c.l.b16 %v2833
    %v3948 = vunpack.c.h.b16 %v2833
    %v3949 = vunpack.c.l.b16 %v2834
    %v3950 = vunpack.c.l.b16 %v2835
    %v3951 = vunpack.c.h.b16 %v2835
    %v3952 = vunpack.c.l.b16 %v2836
    %v3953 = vunpack.c.h.b16 %v2836
    %v3954 = vunpack.c.l.b16 %v2837
    %v3955 = vunpack.c.h.b16 %v2837
    %v3956 = vunpack.c.l.b16 %v2838
    %v3957 = vunpack.c.l.b16 %v2839
    %v3958 = vunpack.c.h.b16 %v2839
    %v3959 = vunpack.c.l.b16 %v2840
    %v3960 = vunpack.c.h.b16 %v2840
    %v3961 = vunpack.c.l.b16 %v2841
    %v3962 = vunpack.c.h.b16 %v2841
    %v3963 = vunpack.c.l.b16 %v2842
    %v3964 = vunpack.c.l.b16 %v2843
    %v3965 = vunpack.c.h.b16 %v2843
    %v3966 = vunpack.c.l.b16 %v2844
    %v3967 = vunpack.c.h.b16 %v2844
    %v3968 = vunpack.c.l.b16 %v2845
    %v3969 = vunpack.c.h.b16 %v2845
    %v3970 = vunpack.c.l.b16 %v2846
    %v3971 = vunpack.c.l.b16 %v2847
    %v3972 = vunpack.c.h.b16 %v2847
    %v3973 = vunpack.c.l.b16 %v2848
    %v3974 = vunpack.c.h.b16 %v2848
    %v3975 = vunpack.c.l.b16 %v2849
    %v3976 = vunpack.c.h.b16 %v2849
    %v3977 = vunpack.c.l.b16 %v2850
    %v3978 = vunpack.c.l.b16 %v2851
    %v3979 = vunpack.c.h.b16 %v2851
    %v3980 = vunpack.c.l.b16 %v2852
    %v3981 = vunpack.c.h.b16 %v2852
    %v3982 = vunpack.c.l.b16 %v2853
    %v3983 = vunpack.c.h.b16 %v2853
    %v3984 = vunpack.c.l.b16 %v2854
    %v3985 = vunpack.c.l.b16 %v2855
    %v3986 = vunpack.c.h.b16 %v2855
    %v3987 = vunpack.c.l.b16 %v2856
    %v3988 = vunpack.c.h.b16 %v2856
    %v3989 = vunpack.c.l.b16 %v2857
    %v3990 = vunpack.c.h.b16 %v2857
    %v3991 = vunpack.c.l.b16 %v2858
    %v3992 = vunpack.c.l.b16 %v2859
    %v3993 = vunpack.c.h.b16 %v2859
    %v3994 = vunpack.c.l.b16 %v2860
    %v3995 = vunpack.c.h.b16 %v2860
    %v3996 = vunpack.c.l.b16 %v2861
    %v3997 = vunpack.c.h.b16 %v2861
    %v3998 = vunpack.c.l.b16 %v2862
    %v3999 = vunpack.c.l.b16 %v2863
    %v4000 = vunpack.c.h.b16 %v2863
    %v4001 = vunpack.c.l.b16 %v2864
    %v4002 = vunpack.c.h.b16 %v2864
    %v4003 = vunpack.c.l.b16 %v2865
    %v4004 = vunpack.c.h.b16 %v2865
    %v4005 = vunpack.c.l.b16 %v2866
    %v4006 = vunpack.c.l.b16 %v2867
    %v4007 = vunpack.c.h.b16 %v2867
    %v4008 = vunpack.c.l.b16 %v2868
    %v4009 = vunpack.c.h.b16 %v2868
    %v4010 = vunpack.c.l.b16 %v2869
    %v4011 = vunpack.c.h.b16 %v2869
    %v4012 = vunpack.c.l.b16 %v2870
    %v4013 = vunpack.c.l.b16 %v2871
    %v4014 = vunpack.c.h.b16 %v2871
    %v4015 = vunpack.c.l.b16 %v2872
    %v4016 = vunpack.c.h.b16 %v2872
    %v4017 = vunpack.c.l.b16 %v2873
    %v4018 = vunpack.c.h.b16 %v2873
    %v4019 = vunpack.c.l.b16 %v2874
    %v4020 = vunpack.c.l.b16 %v2875
    %v4021 = vunpack.c.h.b16 %v2875
    %v4022 = vunpack.c.l.b16 %v2876
    %v4023 = vunpack.c.h.b16 %v2876
    %v4024 = vunpack.c.l.b16 %v2877
    %v4025 = vunpack.c.h.b16 %v2877
    %v4026 = vunpack.c.l.b16 %v2878
    %v4027 = vunpack.c.l.b16 %v2879
    %v4028 = vunpack.c.h.b16 %v2879
    %v4029 = vunpack.c.l.b16 %v2880
    %v4030 = vunpack.c.h.b16 %v2880
    %v4031 = vunpack.c.l.b16 %v2881
    %v4032 = vunpack.c.h.b16 %v2881
    %v4033 = vunpack.c.l.b16 %v2882
    %v4034 = vunpack.c.l.b16 %v2883
    %v4035 = vunpack.c.h.b16 %v2883
    %v4036 = vunpack.c.l.b16 %v2884
    %v4037 = vunpack.c.h.b16 %v2884
    %v4038 = vunpack.c.l.b16 %v2885
    %v4039 = vunpack.c.h.b16 %v2885
    %v4040 = vunpack.c.l.b16 %v2886
    %v4041 = vunpack.c.l.b16 %v2887
    %v4042 = vunpack.c.h.b16 %v2887
    %v4043 = vunpack.c.l.b16 %v2888
    %v4044 = vunpack.c.h.b16 %v2888
    %v4045 = vunpack.c.l.b16 %v2889
    %v4046 = vunpack.c.h.b16 %v2889
    %v4047 = vunpack.c.l.b16 %v2890
    %v4048 = vunpack.c.l.b16 %v2891
    %v4049 = vunpack.c.h.b16 %v2891
    %v4050 = vunpack.c.l.b16 %v2892
    %v4051 = vunpack.c.h.b16 %v2892
    %v4052 = vunpack.c.l.b16 %v2893
    %v4053 = vunpack.c.h.b16 %v2893
    %v4054 = vunpack.c.l.b16 %v2894
    %v4055 = vunpack.c.l.b16 %v2895
    %v4056 = vunpack.c.h.b16 %v2895
    %v4057 = vunpack.c.l.b16 %v2896
    %v4058 = vunpack.c.h.b16 %v2896
    %v4059 = vunpack.c.l.b16 %v2897
    %v4060 = vunpack.c.h.b16 %v2897
    %v4061 = vunpack.c.l.b16 %v2898
    %v4062 = vunpack.c.l.b16 %v2899
    %v4063 = vunpack.c.h.b16 %v2899
    %v4064 = vunpack.c.l.b16 %v2900
    %v4065 = vunpack.c.h.b16 %v2900
    %v4066 = vunpack.c.l.b16 %v2901
    %v4067 = vunpack.c.h.b16 %v2901
    %v4068 = vunpack.c.l.b16 %v2902
    %v4069 = vunpack.c.l.b16 %v2903
    %v4070 = vunpack.c.h.b16 %v2903
    %v4071 = vunpack.c.l.b16 %v2904
    %v4072 = vunpack.c.h.b16 %v2904
    %v4073 = vunpack.c.l.b16 %v2905
    %v4074 = vunpack.c.h.b16 %v2905
    %v4075 = vunpack.c.l.b16 %v2906
    %v4076 = vunpack.c.l.b16 %v2907
    %v4077 = vunpack.c.h.b16 %v2907
    %v4078 = vunpack.c.l.b16 %v2908
    %v4079 = vunpack.c.h.b16 %v2908
    %v4080 = vunpack.c.l.b16 %v2909
    %v4081 = vunpack.c.h.b16 %v2909
    %v4082 = vunpack.c.l.b16 %v2910
    %v4083 = vunpack.c.l.b16 %v2911
    %v4084 = vunpack.c.h.b16 %v2911
    %v4085 = vunpack.c.l.b16 %v2912
    %v4086 = vunpack.c.h.b16 %v2912
    %v4087 = vunpack.c.l.b16 %v2913
    %v4088 = vunpack.c.h.b16 %v2913
    %v4089 = vunpack.c.l.b16 %v2914
    %v4090 = vunpack.c.l.b16 %v2915
    %v4091 = vunpack.c.h.b16 %v2915
    %v4092 = vunpack.c.l.b16 %v2916
    %v4093 = vunpack.c.h.b16 %v2916
    %v4094 = vunpack.c.l.b16 %v2917
    %v4095 = vunpack.c.h.b16 %v2917
    %v4096 = vunpack.c.l.b16 %v2918
    %v4097 = vunpack.c.l.b16 %v2919
    %v4098 = vunpack.c.h.b16 %v2919
    %v4099 = vunpack.c.l.b16 %v2920
    %v4100 = vunpack.c.h.b16 %v2920
    %v4101 = vunpack.c.l.b16 %v2921
    %v4102 = vunpack.c.h.b16 %v2921
    %v4103 = vunpack.c.l.b16 %v2922
    %v4104 = vunpack.c.l.b16 %v2923
    %v4105 = vunpack.c.h.b16 %v2923
    %v4106 = vunpack.c.l.b16 %v2924
    %v4107 = vunpack.c.h.b16 %v2924
    %v4108 = vunpack.c.l.b16 %v2925
    %v4109 = vunpack.c.h.b16 %v2925
    %v4110 = vunpack.c.l.b16 %v2926
    %v4111 = vunpack.c.l.b16 %v2927
    %v4112 = vunpack.c.h.b16 %v2927
    %v4113 = vunpack.c.l.b16 %v2928
    %v4114 = vunpack.c.h.b16 %v2928
    %v4115 = vunpack.c.l.b16 %v2929
    %v4116 = vunpack.c.h.b16 %v2929
    %v4117 = vunpack.c.l.b16 %v2930
    %v4118 = vunpack.c.l.b16 %v2931
    %v4119 = vunpack.c.h.b16 %v2931
    %v4120 = vunpack.c.l.b16 %v2932
    %v4121 = vunpack.c.h.b16 %v2932
    %v4122 = vunpack.c.l.b16 %v2933
    %v4123 = vunpack.c.h.b16 %v2933
    %v4124 = vunpack.c.l.b16 %v2934
    %v4125 = vunpack.c.l.b16 %v2935
    %v4126 = vunpack.c.h.b16 %v2935
    %v4127 = vunpack.c.l.b16 %v2936
    %v4128 = vunpack.c.h.b16 %v2936
    %v4129 = vunpack.c.l.b16 %v2937
    %v4130 = vunpack.c.h.b16 %v2937
    %v4131 = vunpack.c.l.b16 %v2938
    %v4132 = vunpack.c.l.b16 %v2939
    %v4133 = vunpack.c.h.b16 %v2939
    %v4134 = vunpack.c.l.b16 %v2940
    %v4135 = vunpack.c.h.b16 %v2940
    %v4136 = vunpack.c.l.b16 %v2941
    %v4137 = vunpack.c.h.b16 %v2941
    %v4138 = vunpack.c.l.b16 %v2942
    %v4139 = vunpack.c.l.b16 %v2943
    %v4140 = vunpack.c.h.b16 %v2943
    %v4141 = vunpack.c.l.b16 %v2944
    %v4142 = vunpack.c.h.b16 %v2944
    %v4143 = vunpack.c.l.b16 %v2945
    %v4144 = vunpack.c.h.b16 %v2945
    %v4145 = vunpack.c.l.b16 %v2946
    %v4146 = vunpack.c.l.b16 %v2947
    %v4147 = vunpack.c.h.b16 %v2947
    %v4148 = vunpack.c.l.b16 %v2948
    %v4149 = vunpack.c.h.b16 %v2948
    %v4150 = vunpack.c.l.b16 %v2949
    %v4151 = vunpack.c.h.b16 %v2949
    %v4152 = vunpack.c.l.b16 %v2950
    %v4153 = vunpack.c.l.b16 %v2951
    %v4154 = vunpack.c.h.b16 %v2951
    %v4155 = vunpack.c.l.b16 %v2952
    %v4156 = vunpack.c.h.b16 %v2952
    %v4157 = vunpack.c.l.b16 %v2953
    %v4158 = vunpack.c.h.b16 %v2953
    %v4159 = vunpack.c.l.b16 %v2954
    %v4160 = vunpack.c.l.b16 %v2955
    %v4161 = vunpack.c.h.b16 %v2955
    %v4162 = vunpack.c.l.b16 %v2956
    %v4163 = vunpack.c.h.b16 %v2956
    %v4164 = vunpack.c.l.b16 %v2957
    %v4165 = vunpack.c.h.b16 %v2957
    %v4166 = vunpack.c.l.b16 %v2958
    %v4167 = vunpack.c.l.b16 %v2959
    %v4168 = vunpack.c.h.b16 %v2959
    %v4169 = vunpack.c.l.b16 %v2960
    %v4170 = vunpack.c.h.b16 %v2960
    %v4171 = vunpack.c.l.b16 %v2961
    %v4172 = vunpack.c.h.b16 %v2961
    %v4173 = vunpack.c.l.b16 %v2962
    %v4174 = vunpack.c.l.b16 %v2963
    %v4175 = vunpack.c.h.b16 %v2963
    %v4176 = vunpack.c.l.b16 %v2964
    %v4177 = vunpack.c.h.b16 %v2964
    %v4178 = vunpack.c.l.b16 %v2965
    %v4179 = vunpack.c.h.b16 %v2965
    %v4180 = vunpack.c.l.b16 %v2966
    %v4181 = vunpack.c.l.b16 %v2967
    %v4182 = vunpack.c.h.b16 %v2967
    %v4183 = vunpack.c.l.b16 %v2968
    %v4184 = vunpack.c.h.b16 %v2968
    %v4185 = vunpack.c.l.b16 %v2969
    %v4186 = vunpack.c.h.b16 %v2969
    %v4187 = vunpack.c.l.b16 %v2970
    %v4188 = vunpack.c.l.b16 %v2971
    %v4189 = vunpack.c.h.b16 %v2971
    %v4190 = vunpack.c.l.b16 %v2972
    %v4191 = vunpack.c.h.b16 %v2972
    %v4192 = vunpack.c.l.b16 %v2973
    %v4193 = vunpack.c.h.b16 %v2973
    %v4194 = vunpack.c.l.b16 %v2974
    %v4195 = vunpack.c.l.b16 %v2975
    %v4196 = vunpack.c.h.b16 %v2975
    %v4197 = vunpack.c.l.b16 %v2976
    %v4198 = vunpack.c.h.b16 %v2976
    %v4199 = vunpack.c.l.b16 %v2977
    %v4200 = vunpack.c.h.b16 %v2977
    %v4201 = vunpack.c.l.b16 %v2978
    %v4202 = vunpack.c.l.b16 %v2979
    %v4203 = vunpack.c.h.b16 %v2979
    %v4204 = vunpack.c.l.b16 %v2980
    %v4205 = vunpack.c.h.b16 %v2980
    %v4206 = vunpack.c.l.b16 %v2981
    %v4207 = vunpack.c.h.b16 %v2981
    %v4208 = vunpack.c.l.b16 %v2982
    %v4209 = vunpack.c.l.b16 %v2983
    %v4210 = vunpack.c.h.b16 %v2983
    %v4211 = vunpack.c.l.b16 %v2984
    %v4212 = vunpack.c.h.b16 %v2984
    %v4213 = vunpack.c.l.b16 %v2985
    %v4214 = vunpack.c.h.b16 %v2985
    %v4215 = vunpack.c.l.b16 %v2986
    %v4216 = vunpack.c.l.b16 %v2987
    %v4217 = vunpack.c.h.b16 %v2987
    %v4218 = vunpack.c.l.b16 %v2988
    %v4219 = vunpack.c.h.b16 %v2988
    %v4220 = vunpack.c.l.b16 %v2989
    %v4221 = vunpack.c.h.b16 %v2989
    %v4222 = vunpack.c.l.b16 %v2990
    %v4223 = vunpack.c.l.b16 %v2991
    %v4224 = vunpack.c.h.b16 %v2991
    %v4225 = vunpack.c.l.b16 %v2992
    %v4226 = vunpack.c.h.b16 %v2992
    %v4227 = vunpack.c.l.b16 %v2993
    %v4228 = vunpack.c.h.b16 %v2993
    %v4229 = vunpack.c.l.b16 %v2994
    %v4230 = vunpack.c.l.b16 %v2995
    %v4231 = vunpack.c.h.b16 %v2995
    %v4232 = vunpack.c.l.b16 %v2996
    %v4233 = vunpack.c.h.b16 %v2996
    %v4234 = vunpack.c.l.b16 %v2997
    %v4235 = vunpack.c.h.b16 %v2997
    %v4236 = vunpack.c.l.b16 %v2998
    %v4237 = vunpack.c.l.b16 %v2999
    %v4238 = vunpack.c.h.b16 %v2999
    %v4239 = vunpack.c.l.b16 %v3000
    %v4240 = vunpack.c.h.b16 %v3000
    %v4241 = vunpack.c.l.b16 %v3001
    %v4242 = vunpack.c.h.b16 %v3001
    %v4243 = vunpack.c.l.b16 %v3002
    %v4244 = vunpack.c.l.b16 %v3003
    %v4245 = vunpack.c.h.b16 %v3003
    %v4246 = vunpack.c.l.b16 %v3004
    %v4247 = vunpack.c.h.b16 %v3004
    %v4248 = vunpack.c.l.b16 %v3005
    %v4249 = vunpack.c.h.b16 %v3005
    %v4250 = vunpack.c.l.b16 %v3006
    %v4251 = vunpack.c.l.b16 %v3007
    %v4252 = vunpack.c.h.b16 %v3007
    %v4253 = vunpack.c.l.b16 %v3008
    %v4254 = vunpack.c.h.b16 %v3008
    %v4255 = vunpack.c.l.b16 %v3009
    %v4256 = vunpack.c.h.b16 %v3009
    %v4257 = vunpack.c.l.b16 %v3010
    %v4258 = vunpack.c.l.b16 %v3011
    %v4259 = vunpack.c.h.b16 %v3011
    %v4260 = vunpack.c.l.b16 %v3012
    %v4261 = vunpack.c.h.b16 %v3012
    %v4262 = vunpack.c.l.b16 %v3013
    %v4263 = vunpack.c.h.b16 %v3013
    %v4264 = vunpack.c.l.b16 %v3014
    %v4265 = vunpack.c.l.b16 %v3015
    %v4266 = vunpack.c.h.b16 %v3015
    %v4267 = vunpack.c.l.b16 %v3016
    %v4268 = vunpack.c.h.b16 %v3016
    %v4269 = vunpack.c.l.b16 %v3017
    %v4270 = vunpack.c.h.b16 %v3017
    %v4271 = vunpack.c.l.b16 %v3018
    %v4272 = vunpack.c.l.b16 %v3019
    %v4273 = vunpack.c.h.b16 %v3019
    %v4274 = vunpack.c.l.b16 %v3020
    %v4275 = vunpack.c.h.b16 %v3020
    %v4276 = vunpack.c.l.b16 %v3021
    %v4277 = vunpack.c.h.b16 %v3021
    %v4278 = vunpack.c.l.b16 %v3022
    %v4279 = vunpack.c.l.b16 %v3023
    %v4280 = vunpack.c.h.b16 %v3023
    %v4281 = vunpack.c.l.b16 %v3024
    %v4282 = vunpack.c.h.b16 %v3024
    %v4283 = vunpack.c.l.b16 %v3025
    %v4284 = vunpack.c.h.b16 %v3025
    %v4285 = vunpack.c.l.b16 %v3026
    %v4286 = vunpack.c.l.b16 %v3027
    %v4287 = vunpack.c.h.b16 %v3027
    %v4288 = vunpack.c.l.b16 %v3028
    %v4289 = vunpack.c.h.b16 %v3028
    %v4290 = vunpack.c.l.b16 %v3029
    %v4291 = vunpack.c.h.b16 %v3029
    %v4292 = vunpack.c.l.b16 %v3030
    %v4293 = vunpack.c.l.b16 %v3031
    %v4294 = vunpack.c.h.b16 %v3031
    %v4295 = vunpack.c.l.b16 %v3032
    %v4296 = vunpack.c.h.b16 %v3032
    %v4297 = vunpack.c.l.b16 %v3033
    %v4298 = vunpack.c.h.b16 %v3033
    %v4299 = vunpack.c.l.b16 %v3034
    %v4300 = vunpack.c.l.b16 %v3035
    %v4301 = vunpack.c.h.b16 %v3035
    %v4302 = vunpack.c.l.b16 %v3036
    %v4303 = vunpack.c.h.b16 %v3036
    %v4304 = vunpack.c.l.b16 %v3037
    %v4305 = vunpack.c.h.b16 %v3037
    %v4306 = vunpack.c.l.b16 %v3038
    %v4307 = vunpack.c.l.b16 %v3039
    %v4308 = vunpack.c.h.b16 %v3039
    %v4309 = vunpack.c.l.b16 %v3040
    %v4310 = vunpack.c.h.b16 %v3040
    %v4311 = vunpack.c.l.b16 %v3041
    %v4312 = vunpack.c.h.b16 %v3041
    %v4313 = vunpack.c.l.b16 %v3042
    %v4314 = vunpack.c.l.b16 %v3043
    %v4315 = vunpack.c.h.b16 %v3043
    %v4316 = vunpack.c.l.b16 %v3044
    %v4317 = vunpack.c.h.b16 %v3044
    %v4318 = vunpack.c.l.b16 %v3045
    %v4319 = vunpack.c.h.b16 %v3045
    %v4320 = vunpack.c.l.b16 %v3046
    %v4321 = vunpack.c.l.b16 %v3047
    %v4322 = vunpack.c.h.b16 %v3047
    %v4323 = vunpack.c.l.b16 %v3048
    %v4324 = vunpack.c.h.b16 %v3048
    %v4325 = vunpack.c.l.b16 %v3049
    %v4326 = vunpack.c.h.b16 %v3049
    %v4327 = vunpack.c.l.b16 %v3050
    %v4328 = vunpack.c.l.b16 %v3051
    %v4329 = vunpack.c.h.b16 %v3051
    %v4330 = vunpack.c.l.b16 %v3052
    %v4331 = vunpack.c.h.b16 %v3052
    %v4332 = vunpack.c.l.b16 %v3053
    %v4333 = vunpack.c.h.b16 %v3053
    %v4334 = vunpack.c.l.b16 %v3054
    %v4335 = vunpack.c.l.b16 %v3055
    %v4336 = vunpack.c.h.b16 %v3055
    %v4337 = vunpack.c.l.b16 %v3056
    %v4338 = vunpack.c.h.b16 %v3056
    %v4339 = vunpack.c.l.b16 %v3057
    %v4340 = vunpack.c.h.b16 %v3057
    %v4341 = vunpack.c.l.b16 %v3058
    %v4342 = vunpack.c.l.b16 %v3059
    %v4343 = vunpack.c.h.b16 %v3059
    %v4344 = vunpack.c.l.b16 %v3060
    %v4345 = vunpack.c.h.b16 %v3060
    %v4346 = vunpack.c.l.b16 %v3061
    %v4347 = vunpack.c.h.b16 %v3061
    %v4348 = vunpack.c.l.b16 %v3062
    %v4349 = vunpack.c.l.b16 %v3063
    %v4350 = vunpack.c.h.b16 %v3063
    %v4351 = vunpack.c.l.b16 %v3064
    %v4352 = vunpack.c.h.b16 %v3064
    %v4353 = vunpack.c.l.b16 %v3065
    %v4354 = vunpack.c.h.b16 %v3065
    %v4355 = vunpack.c.l.b16 %v3066
    %v4356 = vunpack.c.l.b16 %v3067
    %v4357 = vunpack.c.h.b16 %v3067
    %v4358 = vunpack.c.l.b16 %v3068
    %v4359 = vunpack.c.h.b16 %v3068
    %v4360 = vunpack.c.l.b16 %v3069
    %v4361 = vunpack.c.h.b16 %v3069
    %v4362 = vunpack.c.l.b16 %v3070
    %v4363 = vunpack.c.l.b16 %v3071
    %v4364 = vunpack.c.h.b16 %v3071
    %v4365 = vunpack.c.l.b16 %v3072
    %v4366 = vunpack.c.h.b16 %v3072
    %v4367 = vunpack.c.l.b16 %v3073
    %v4368 = vunpack.c.h.b16 %v3073
    %v4369 = vunpack.c.l.b16 %v3074
    %v4370 = vunpack.c.l.b16 %v3075
    %v4371 = vunpack.c.h.b16 %v3075
    %v4372 = vunpack.c.l.b16 %v3076
    %v4373 = vunpack.c.h.b16 %v3076
    %v4374 = vunpack.c.l.b16 %v3077
    %v4375 = vunpack.c.h.b16 %v3077
    %v4376 = vunpack.c.l.b16 %v3078
    %v4377 = vunpack.c.l.b16 %v3079
    %v4378 = vunpack.c.h.b16 %v3079
    %v4379 = vunpack.c.l.b16 %v3080
    %v4380 = vunpack.c.h.b16 %v3080
    %v4381 = vunpack.c.l.b16 %v3081
    %v4382 = vunpack.c.h.b16 %v3081
    %v4383 = vunpack.c.l.b16 %v3082
    %v4384 = vunpack.c.l.b16 %v3083
    %v4385 = vunpack.c.h.b16 %v3083
    %v4386 = vunpack.c.l.b16 %v3084
    %v4387 = vunpack.c.h.b16 %v3084
    %v4388 = vunpack.c.l.b16 %v3085
    %v4389 = vunpack.c.h.b16 %v3085
    %v4390 = vunpack.c.l.b16 %v3086
    %v4391 = vunpack.c.l.b16 %v3087
    %v4392 = vunpack.c.h.b16 %v3087
    %v4393 = vunpack.c.l.b16 %v3088
    %v4394 = vunpack.c.h.b16 %v3088
    %v4395 = vunpack.c.l.b16 %v3089
    %v4396 = vunpack.c.h.b16 %v3089
    %v4397 = vunpack.c.l.b16 %v3090
    %v4398 = vunpack.c.l.b16 %v3091
    %v4399 = vunpack.c.h.b16 %v3091
    %v4400 = vunpack.c.l.b16 %v3092
    %v4401 = vunpack.c.h.b16 %v3092
    %v4402 = vunpack.c.l.b16 %v3093
    %v4403 = vunpack.c.h.b16 %v3093
    %v4404 = vunpack.c.l.b16 %v3094
    %v4405 = vunpack.c.l.b16 %v3095
    %v4406 = vunpack.c.h.b16 %v3095
    %v4407 = vunpack.c.l.b16 %v3096
    %v4408 = vunpack.c.h.b16 %v3096
    %v4409 = vunpack.c.l.b16 %v3097
    %v4410 = vunpack.c.h.b16 %v3097
    %v4411 = vunpack.c.l.b16 %v3098
    %v4412 = vunpack.c.l.b16 %v3099
    %v4413 = vunpack.c.h.b16 %v3099
    %v4414 = vunpack.c.l.b16 %v3100
    %v4415 = vunpack.c.h.b16 %v3100
    %v4416 = vunpack.c.l.b16 %v3101
    %v4417 = vunpack.c.h.b16 %v3101
    %v4418 = vunpack.c.l.b16 %v3102
    %v4419 = vunpack.c.l.b16 %v3103
    %v4420 = vunpack.c.h.b16 %v3103
    %v4421 = vunpack.c.l.b16 %v3104
    %v4422 = vunpack.c.h.b16 %v3104
    %v4423 = vunpack.c.l.b16 %v3105
    %v4424 = vunpack.c.h.b16 %v3105
    %v4425 = vunpack.c.l.b16 %v3106
    %v4426 = vunpack.c.l.b16 %v3107
    %v4427 = vunpack.c.h.b16 %v3107
    %v4428 = vunpack.c.l.b16 %v3108
    %v4429 = vunpack.c.h.b16 %v3108
    %v4430 = vunpack.c.l.b16 %v3109
    %v4431 = vunpack.c.h.b16 %v3109
    %v4432 = vunpack.c.l.b16 %v3110
    %v4433 = vunpack.c.l.b16 %v3111
    %v4434 = vunpack.c.h.b16 %v3111
    %v4435 = vunpack.c.l.b16 %v3112
    %v4436 = vunpack.c.h.b16 %v3112
    %v4437 = vunpack.c.l.b16 %v3113
    %v4438 = vunpack.c.h.b16 %v3113
    %v4439 = vunpack.c.l.b16 %v3114
    %v4440 = vunpack.c.l.b16 %v3115
    %v4441 = vunpack.c.h.b16 %v3115
    %v4442 = vunpack.c.l.b16 %v3116
    %v4443 = vunpack.c.h.b16 %v3116
    %v4444 = vunpack.c.l.b16 %v3117
    %v4445 = vunpack.c.h.b16 %v3117
    %v4446 = vunpack.c.l.b16 %v3118
    %v4447 = vunpack.c.l.b16 %v3119
    %v4448 = vunpack.c.h.b16 %v3119
    %v4449 = vunpack.c.l.b16 %v3120
    %v4450 = vunpack.c.h.b16 %v3120
    %v4451 = vunpack.c.l.b16 %v3121
    %v4452 = vunpack.c.h.b16 %v3121
    %v4453 = vunpack.c.l.b16 %v3122
    %v4454 = vunpack.c.l.b16 %v3123
    %v4455 = vunpack.c.h.b16 %v3123
    %v4456 = vunpack.c.l.b16 %v3124
    %v4457 = vunpack.c.h.b16 %v3124
    %v4458 = vunpack.c.l.b16 %v3125
    %v4459 = vunpack.c.h.b16 %v3125
    %v4460 = vunpack.c.l.b16 %v3126
    %v4461 = vunpack.c.l.b16 %v3127
    %v4462 = vunpack.c.h.b16 %v3127
    %v4463 = vunpack.c.l.b16 %v3128
    %v4464 = vunpack.c.h.b16 %v3128
    %v4465 = vunpack.c.l.b16 %v3129
    %v4466 = vunpack.c.h.b16 %v3129
    %v4467 = vunpack.c.l.b16 %v3130
    %v4468 = vunpack.c.l.b16 %v3131
    %v4469 = vunpack.c.h.b16 %v3131
    %v4470 = vunpack.c.l.b16 %v3132
    %v4471 = vunpack.c.h.b16 %v3132
    %v4472 = vunpack.c.l.b16 %v3133
    %v4473 = vunpack.c.h.b16 %v3133
    %v4474 = vunpack.c.l.b16 %v3134
    %v4475 = vunpack.c.l.b16 %v3135
    %v4476 = vunpack.c.h.b16 %v3135
    %v4477 = vunpack.c.l.b16 %v3136
    %v4478 = vunpack.c.h.b16 %v3136
    %v4479 = vunpack.c.l.b16 %v3137
    %v4480 = vunpack.c.h.b16 %v3137
    %v4481 = vunpack.c.l.b16 %v3138
    %v4482 = vunpack.c.l.b16 %v3139
    %v4483 = vunpack.c.h.b16 %v3139
    %v4484 = vunpack.c.l.b16 %v3140
    %v4485 = vunpack.c.h.b16 %v3140
    %v4486 = vunpack.c.l.b16 %v3141
    %v4487 = vunpack.c.h.b16 %v3141
    %v4488 = vunpack.c.l.b16 %v3142
    %v4489 = vunpack.c.l.b16 %v3143
    %v4490 = vunpack.c.h.b16 %v3143
    %v4491 = vunpack.c.l.b16 %v3144
    %v4492 = vunpack.c.h.b16 %v3144
    %v4493 = vunpack.c.l.b16 %v3145
    %v4494 = vunpack.c.h.b16 %v3145
    %v4495 = vunpack.c.l.b16 %v3146
    %v4496 = vunpack.c.l.b16 %v3147
    %v4497 = vunpack.c.h.b16 %v3147
    %v4498 = vunpack.c.l.b16 %v3148
    %v4499 = vunpack.c.h.b16 %v3148
    %v4500 = vunpack.c.l.b16 %v3149
    %v4501 = vunpack.c.h.b16 %v3149
    %v4502 = vunpack.c.l.b16 %v3150
    %v4503 = vunpack.c.l.b16 %v3151
    %v4504 = vunpack.c.h.b16 %v3151
    %v4505 = vunpack.c.l.b16 %v3152
    %v4506 = vunpack.c.h.b16 %v3152
    %v4507 = vunpack.c.l.b16 %v3153
    %v4508 = vunpack.c.h.b16 %v3153
    %v4509 = vunpack.c.l.b16 %v3154
    %v4510 = vunpack.c.l.b16 %v3155
    %v4511 = vunpack.c.h.b16 %v3155
    %v4512 = vunpack.c.l.b16 %v3156
    %v4513 = vunpack.c.h.b16 %v3156
    %v4514 = vunpack.c.l.b16 %v3157
    %v4515 = vunpack.c.h.b16 %v3157
    %v4516 = vunpack.c.l.b16 %v3158
    %v4517 = vunpack.c.l.b16 %v3159
    %v4518 = vunpack.c.h.b16 %v3159
    %v4519 = vunpack.c.l.b16 %v3160
    %v4520 = vunpack.c.h.b16 %v3160
    %v4521 = vunpack.c.l.b16 %v3161
    %v4522 = vunpack.c.h.b16 %v3161
    %v4523 = vunpack.c.l.b16 %v3162
    %v4524 = vunpack.c.l.b16 %v3163
    %v4525 = vunpack.c.h.b16 %v3163
    %v4526 = vunpack.c.l.b16 %v3164
    %v4527 = vunpack.c.h.b16 %v3164
    %v4528 = vunpack.c.l.b16 %v3165
    %v4529 = vunpack.c.h.b16 %v3165
    %v4530 = vunpack.c.l.b16 %v3166
    %v4531 = vunpack.c.l.b16 %v3167
    %v4532 = vunpack.c.h.b16 %v3167
    %v4533 = vunpack.c.l.b16 %v3168
    %v4534 = vunpack.c.h.b16 %v3168
    %v4535 = vunpack.c.l.b16 %v3169
    %v4536 = vunpack.c.h.b16 %v3169
    %v4537 = vunpack.c.l.b16 %v3170
    %v4538 = vunpack.c.l.b16 %v3171
    %v4539 = vunpack.c.h.b16 %v3171
    %v4540 = vunpack.c.l.b16 %v3172
    %v4541 = vunpack.c.h.b16 %v3172
    %v4542 = vunpack.c.l.b16 %v3173
    %v4543 = vunpack.c.h.b16 %v3173
    %v4544 = vunpack.c.l.b16 %v3174
    %v4545 = vunpack.c.l.b16 %v3175
    %v4546 = vunpack.c.h.b16 %v3175
    %v4547 = vunpack.c.l.b16 %v3176
    %v4548 = vunpack.c.h.b16 %v3176
    %v4549 = vunpack.c.l.b16 %v3177
    %v4550 = vunpack.c.h.b16 %v3177
    %v4551 = vunpack.c.l.b16 %v3178
    %v4552 = vunpack.c.l.b16 %v3179
    %v4553 = vunpack.c.h.b16 %v3179
    %v4554 = vunpack.c.l.b16 %v3180
    %v4555 = vunpack.c.h.b16 %v3180
    %v4556 = vunpack.c.l.b16 %v3181
    %v4557 = vunpack.c.h.b16 %v3181
    %v4558 = vunpack.c.l.b16 %v3182
    %v4559 = vunpack.c.l.b16 %v3183
    %v4560 = vunpack.c.h.b16 %v3183
    %v4561 = vunpack.c.l.b16 %v3184
    %v4562 = vunpack.c.h.b16 %v3184
    %v4563 = vunpack.c.l.b16 %v3185
    %v4564 = vunpack.c.h.b16 %v3185
    %v4565 = vunpack.c.l.b16 %v3186
    %v4566 = vunpack.c.l.b16 %v3187
    %v4567 = vunpack.c.h.b16 %v3187
    %v4568 = vunpack.c.l.b16 %v3188
    %v4569 = vunpack.c.h.b16 %v3188
    %v4570 = vunpack.c.l.b16 %v3189
    %v4571 = vunpack.c.h.b16 %v3189
    %v4572 = vunpack.c.l.b16 %v3190
    %v4573 = vunpack.c.l.b16 %v3191
    %v4574 = vunpack.c.h.b16 %v3191
    %v4575 = vunpack.c.l.b16 %v3192
    %v4576 = vunpack.c.h.b16 %v3192
    %v4577 = vunpack.c.l.b16 %v3193
    %v4578 = vunpack.c.h.b16 %v3193
    %v4579 = vunpack.c.l.b16 %v3194
    %v4580 = vunpack.c.l.b16 %v3195
    %v4581 = vunpack.c.h.b16 %v3195
    %v4582 = vunpack.c.l.b16 %v3196
    %v4583 = vunpack.c.h.b16 %v3196
    %v4584 = vunpack.c.l.b16 %v3197
    %v4585 = vunpack.c.h.b16 %v3197
    %v4586 = vunpack.c.l.b16 %v3198
    %v4587 = vunpack.c.l.b16 %v3199
    %v4588 = vunpack.c.h.b16 %v3199
    %v4589 = vunpack.c.l.b16 %v3200
    %v4590 = vunpack.c.h.b16 %v3200
    %v4591 = vunpack.c.l.b16 %v3201
    %v4592 = vunpack.c.h.b16 %v3201
    %v4593 = vunpack.c.l.b16 %v3202
    %v4594 = vunpack.c.l.b16 %v3203
    %v4595 = vunpack.c.h.b16 %v3203
    %v4596 = vunpack.c.l.b16 %v3204
    %v4597 = vunpack.c.h.b16 %v3204
    %v4598 = vunpack.c.l.b16 %v3205
    %v4599 = vunpack.c.h.b16 %v3205
    %v4600 = vunpack.c.l.b16 %v3206
    %v4601 = vunpack.c.l.b16 %v3207
    %v4602 = vunpack.c.h.b16 %v3207
    %v4603 = vunpack.c.l.b16 %v3208
    %v4604 = vunpack.c.h.b16 %v3208
    %v4605 = vunpack.c.l.b16 %v3209
    %v4606 = vunpack.c.h.b16 %v3209
    %v4607 = vunpack.c.l.b16 %v3210
    %v4608 = vunpack.c.l.b16 %v3211
    %v4609 = vunpack.c.h.b16 %v3211
    %v4610 = vunpack.c.l.b16 %v3212
    %v4611 = vunpack.c.h.b16 %v3212
    %v4612 = vunpack.c.l.b16 %v3213
    %v4613 = vunpack.c.h.b16 %v3213
    %v4614 = vunpack.c.l.b16 %v3214
    %v4615 = vunpack.c.l.b16 %v3215
    %v4616 = vunpack.c.h.b16 %v3215
    %v4617 = vunpack.c.l.b16 %v3216
    %v4618 = vunpack.c.h.b16 %v3216
    %v4619 = vunpack.c.l.b16 %v3217
    %v4620 = vunpack.c.h.b16 %v3217
    %v4621 = vunpack.c.l.b16 %v3218
    %v4622 = vunpack.c.l.b16 %v3219
    %v4623 = vunpack.c.h.b16 %v3219
    %v4624 = vunpack.c.l.b16 %v3220
    %v4625 = vunpack.c.h.b16 %v3220
    %v4626 = vunpack.c.l.b16 %v3221
    %v4627 = vunpack.c.h.b16 %v3221
    %v4628 = vunpack.c.l.b16 %v3222
    %v4629 = vunpack.c.l.b16 %v3223
    %v4630 = vunpack.c.h.b16 %v3223
    %v4631 = vunpack.c.l.b16 %v3224
    %v4632 = vunpack.c.h.b16 %v3224
    %v4633 = vunpack.c.l.b16 %v3225
    %v4634 = vunpack.c.h.b16 %v3225
    %v4635 = vunpack.c.l.b16 %v3226
    %v4636 = vunpack.c.l.b16 %v3227
    %v4637 = vunpack.c.h.b16 %v3227
    %v4638 = vunpack.c.l.b16 %v3228
    %v4639 = vunpack.c.h.b16 %v3228
    %v4640 = vunpack.c.l.b16 %v3229
    %v4641 = vunpack.c.h.b16 %v3229
    %v4642 = vunpack.c.l.b16 %v3230
    %v4643 = vunpack.c.l.b16 %v3231
    %v4644 = vunpack.c.h.b16 %v3231
    %v4645 = vunpack.c.l.b16 %v3232
    %v4646 = vunpack.c.h.b16 %v3232
    %v4647 = vunpack.c.l.b16 %v3233
    %v4648 = vunpack.c.h.b16 %v3233
    %v4649 = vunpack.c.l.b16 %v3234
    %v4650 = vunpack.c.l.b16 %v3235
    %v4651 = vunpack.c.h.b16 %v3235
    %v4652 = vunpack.c.l.b16 %v3236
    %v4653 = vunpack.c.h.b16 %v3236
    %v4654 = vunpack.c.l.b16 %v3237
    %v4655 = vunpack.c.h.b16 %v3237
    %v4656 = vunpack.c.l.b16 %v3238
    %v4657 = vunpack.c.l.b16 %v3239
    %v4658 = vunpack.c.h.b16 %v3239
    %v4659 = vunpack.c.l.b16 %v3240
    %v4660 = vunpack.c.h.b16 %v3240
    %v4661 = vunpack.c.l.b16 %v3241
    %v4662 = vunpack.c.h.b16 %v3241
    %v4663 = vunpack.c.l.b16 %v3242
    %v4664 = vunpack.c.l.b16 %v3243
    %v4665 = vunpack.c.h.b16 %v3243
    %v4666 = vunpack.c.l.b16 %v3244
    %v4667 = vunpack.c.h.b16 %v3244
    %v4668 = vunpack.c.l.b16 %v3245
    %v4669 = vunpack.c.h.b16 %v3245
    %v4670 = vunpack.c.l.b16 %v3246
    %v4671 = vunpack.c.l.b16 %v3247
    %v4672 = vunpack.c.h.b16 %v3247
    %v4673 = vunpack.c.l.b16 %v3248
    %v4674 = vunpack.c.h.b16 %v3248
    %v4675 = vunpack.c.l.b16 %v3249
    %v4676 = vunpack.c.h.b16 %v3249
    %v4677 = vunpack.c.l.b16 %v3250
    %v4678 = vunpack.c.l.b16 %v3251
    %v4679 = vunpack.c.h.b16 %v3251
    %v4680 = vunpack.c.l.b16 %v3252
    %v4681 = vunpack.c.h.b16 %v3252
    %v4682 = vunpack.c.l.b16 %v3253
    %v4683 = vunpack.c.h.b16 %v3253
    %v4684 = vunpack.c.l.b16 %v3254
    %v4685 = vunpack.c.l.b16 %v3255
    %v4686 = vunpack.c.h.b16 %v3255
    %v4687 = vunpack.c.l.b16 %v3256
    %v4688 = vunpack.c.h.b16 %v3256
    %v4689 = vunpack.c.l.b16 %v3257
    %v4690 = vunpack.c.h.b16 %v3257
    %v4691 = vunpack.c.l.b16 %v3258
    %v4692 = vunpack.c.l.b16 %v3259
    %v4693 = vunpack.c.h.b16 %v3259
    %v4694 = vunpack.c.l.b16 %v3260
    %v4695 = vunpack.c.h.b16 %v3260
    %v4696 = vunpack.c.l.b16 %v3261
    %v4697 = vunpack.c.h.b16 %v3261
    %v4698 = vunpack.c.l.b16 %v3262
    %v4699 = vunpack.c.l.b16 %v3263
    %v4700 = vunpack.c.h.b16 %v3263
    %v4701 = vunpack.c.l.b16 %v3264
    %v4702 = vunpack.c.h.b16 %v3264
    %v4703 = vunpack.c.l.b16 %v3265
    %v4704 = vunpack.c.h.b16 %v3265
    %v4705 = vunpack.c.l.b16 %v3266
    %v4706 = vunpack.c.l.b16 %v3267
    %v4707 = vunpack.c.h.b16 %v3267
    %v4708 = vunpack.c.l.b16 %v3268
    %v4709 = vunpack.c.h.b16 %v3268
    %v4710 = vunpack.c.l.b16 %v3269
    %v4711 = vunpack.c.h.b16 %v3269
    %v4712 = vunpack.c.l.b16 %v3270
    %v4713 = vunpack.c.l.b16 %v3271
    %v4714 = vunpack.c.h.b16 %v3271
    %v4715 = vunpack.c.l.b16 %v3272
    %v4716 = vunpack.c.h.b16 %v3272
    %v4717 = vunpack.c.l.b16 %v3273
    %v4718 = vunpack.c.h.b16 %v3273
    %v4719 = vunpack.c.l.b16 %v3274
    %v4720 = vpack.c.b16 %v3831, %v3824
    %v4721 = vpack.c.b16 %v3832, %v3825
    %v4722 = vpack.c.b16 %v3833, %v3826
    %v4723 = vpack.c.b16 %v3834, %v3827
    %v4724 = vpack.c.b16 %v3835, %v3828
    %v4725 = vpack.c.b16 %v3836, %v3829
    %v4726 = vpack.c.b16 %v3837, %v3830
    %v4727 = vpack.c.b16 %v3845, %v3838
    %v4728 = vpack.c.b16 %v3846, %v3839
    %v4729 = vpack.c.b16 %v3847, %v3840
    %v4730 = vpack.c.b16 %v3848, %v3841
    %v4731 = vpack.c.b16 %v3849, %v3842
    %v4732 = vpack.c.b16 %v3850, %v3843
    %v4733 = vpack.c.b16 %v3851, %v3844
    %v4734 = vpack.c.b16 %v3859, %v3852
    %v4735 = vpack.c.b16 %v3860, %v3853
    %v4736 = vpack.c.b16 %v3861, %v3854
    %v4737 = vpack.c.b16 %v3862, %v3855
    %v4738 = vpack.c.b16 %v3863, %v3856
    %v4739 = vpack.c.b16 %v3864, %v3857
    %v4740 = vpack.c.b16 %v3865, %v3858
    %v4741 = vpack.c.b16 %v3873, %v3866
    %v4742 = vpack.c.b16 %v3874, %v3867
    %v4743 = vpack.c.b16 %v3875, %v3868
    %v4744 = vpack.c.b16 %v3876, %v3869
    %v4745 = vpack.c.b16 %v3877, %v3870
    %v4746 = vpack.c.b16 %v3878, %v3871
    %v4747 = vpack.c.b16 %v3879, %v3872
    %v4748 = vpack.c.b16 %v3887, %v3880
    %v4749 = vpack.c.b16 %v3888, %v3881
    %v4750 = vpack.c.b16 %v3889, %v3882
    %v4751 = vpack.c.b16 %v3890, %v3883
    %v4752 = vpack.c.b16 %v3891, %v3884
    %v4753 = vpack.c.b16 %v3892, %v3885
    %v4754 = vpack.c.b16 %v3893, %v3886
    %v4755 = vpack.c.b16 %v3901, %v3894
    %v4756 = vpack.c.b16 %v3902, %v3895
    %v4757 = vpack.c.b16 %v3903, %v3896
    %v4758 = vpack.c.b16 %v3904, %v3897
    %v4759 = vpack.c.b16 %v3905, %v3898
    %v4760 = vpack.c.b16 %v3906, %v3899
    %v4761 = vpack.c.b16 %v3907, %v3900
    %v4762 = vpack.c.b16 %v3915, %v3908
    %v4763 = vpack.c.b16 %v3916, %v3909
    %v4764 = vpack.c.b16 %v3917, %v3910
    %v4765 = vpack.c.b16 %v3918, %v3911
    %v4766 = vpack.c.b16 %v3919, %v3912
    %v4767 = vpack.c.b16 %v3920, %v3913
    %v4768 = vpack.c.b16 %v3921, %v3914
    %v4769 = vpack.c.b16 %v3929, %v3922
    %v4770 = vpack.c.b16 %v3930, %v3923
    %v4771 = vpack.c.b16 %v3931, %v3924
    %v4772 = vpack.c.b16 %v3932, %v3925
    %v4773 = vpack.c.b16 %v3933, %v3926
    %v4774 = vpack.c.b16 %v3934, %v3927
    %v4775 = vpack.c.b16 %v3935, %v3928
    %v4776 = vpack.c.b16 %v3943, %v3936
    %v4777 = vpack.c.b16 %v3944, %v3937
    %v4778 = vpack.c.b16 %v3945, %v3938
    %v4779 = vpack.c.b16 %v3946, %v3939
    %v4780 = vpack.c.b16 %v3947, %v3940
    %v4781 = vpack.c.b16 %v3948, %v3941
    %v4782 = vpack.c.b16 %v3949, %v3942
    %v4783 = vpack.c.b16 %v3957, %v3950
    %v4784 = vpack.c.b16 %v3958, %v3951
    %v4785 = vpack.c.b16 %v3959, %v3952
    %v4786 = vpack.c.b16 %v3960, %v3953
    %v4787 = vpack.c.b16 %v3961, %v3954
    %v4788 = vpack.c.b16 %v3962, %v3955
    %v4789 = vpack.c.b16 %v3963, %v3956
    %v4790 = vpack.c.b16 %v3971, %v3964
    %v4791 = vpack.c.b16 %v3972, %v3965
    %v4792 = vpack.c.b16 %v3973, %v3966
    %v4793 = vpack.c.b16 %v3974, %v3967
    %v4794 = vpack.c.b16 %v3975, %v3968
    %v4795 = vpack.c.b16 %v3976, %v3969
    %v4796 = vpack.c.b16 %v3977, %v3970
    %v4797 = vpack.c.b16 %v3985, %v3978
    %v4798 = vpack.c.b16 %v3986, %v3979
    %v4799 = vpack.c.b16 %v3987, %v3980
    %v4800 = vpack.c.b16 %v3988, %v3981
    %v4801 = vpack.c.b16 %v3989, %v3982
    %v4802 = vpack.c.b16 %v3990, %v3983
    %v4803 = vpack.c.b16 %v3991, %v3984
    %v4804 = vpack.c.b16 %v3999, %v3992
    %v4805 = vpack.c.b16 %v4000, %v3993
    %v4806 = vpack.c.b16 %v4001, %v3994
    %v4807 = vpack.c.b16 %v4002, %v3995
    %v4808 = vpack.c.b16 %v4003, %v3996
    %v4809 = vpack.c.b16 %v4004, %v3997
    %v4810 = vpack.c.b16 %v4005, %v3998
    %v4811 = vpack.c.b16 %v4013, %v4006
    %v4812 = vpack.c.b16 %v4014, %v4007
    %v4813 = vpack.c.b16 %v4015, %v4008
    %v4814 = vpack.c.b16 %v4016, %v4009
    %v4815 = vpack.c.b16 %v4017, %v4010
    %v4816 = vpack.c.b16 %v4018, %v4011
    %v4817 = vpack.c.b16 %v4019, %v4012
    %v4818 = vpack.c.b16 %v4027, %v4020
    %v4819 = vpack.c.b16 %v4028, %v4021
    %v4820 = vpack.c.b16 %v4029, %v4022
    %v4821 = vpack.c.b16 %v4030, %v4023
    %v4822 = vpack.c.b16 %v4031, %v4024
    %v4823 = vpack.c.b16 %v4032, %v4025
    %v4824 = vpack.c.b16 %v4033, %v4026
    %v4825 = vpack.c.b16 %v4041, %v4034
    %v4826 = vpack.c.b16 %v4042, %v4035
    %v4827 = vpack.c.b16 %v4043, %v4036
    %v4828 = vpack.c.b16 %v4044, %v4037
    %v4829 = vpack.c.b16 %v4045, %v4038
    %v4830 = vpack.c.b16 %v4046, %v4039
    %v4831 = vpack.c.b16 %v4047, %v4040
    %v4832 = vpack.c.b16 %v4055, %v4048
    %v4833 = vpack.c.b16 %v4056, %v4049
    %v4834 = vpack.c.b16 %v4057, %v4050
    %v4835 = vpack.c.b16 %v4058, %v4051
    %v4836 = vpack.c.b16 %v4059, %v4052
    %v4837 = vpack.c.b16 %v4060, %v4053
    %v4838 = vpack.c.b16 %v4061, %v4054
    %v4839 = vpack.c.b16 %v4069, %v4062
    %v4840 = vpack.c.b16 %v4070, %v4063
    %v4841 = vpack.c.b16 %v4071, %v4064
    %v4842 = vpack.c.b16 %v4072, %v4065
    %v4843 = vpack.c.b16 %v4073, %v4066
    %v4844 = vpack.c.b16 %v4074, %v4067
    %v4845 = vpack.c.b16 %v4075, %v4068
    %v4846 = vpack.c.b16 %v4083, %v4076
    %v4847 = vpack.c.b16 %v4084, %v4077
    %v4848 = vpack.c.b16 %v4085, %v4078
    %v4849 = vpack.c.b16 %v4086, %v4079
    %v4850 = vpack.c.b16 %v4087, %v4080
    %v4851 = vpack.c.b16 %v4088, %v4081
    %v4852 = vpack.c.b16 %v4089, %v4082
    %v4853 = vpack.c.b16 %v4097, %v4090
    %v4854 = vpack.c.b16 %v4098, %v4091
    %v4855 = vpack.c.b16 %v4099, %v4092
    %v4856 = vpack.c.b16 %v4100, %v4093
    %v4857 = vpack.c.b16 %v4101, %v4094
    %v4858 = vpack.c.b16 %v4102, %v4095
    %v4859 = vpack.c.b16 %v4103, %v4096
    %v4860 = vpack.c.b16 %v4111, %v4104
    %v4861 = vpack.c.b16 %v4112, %v4105
    %v4862 = vpack.c.b16 %v4113, %v4106
    %v4863 = vpack.c.b16 %v4114, %v4107
    %v4864 = vpack.c.b16 %v4115, %v4108
    %v4865 = vpack.c.b16 %v4116, %v4109
    %v4866 = vpack.c.b16 %v4117, %v4110
    %v4867 = vpack.c.b16 %v4125, %v4118
    %v4868 = vpack.c.b16 %v4126, %v4119
    %v4869 = vpack.c.b16 %v4127, %v4120
    %v4870 = vpack.c.b16 %v4128, %v4121
    %v4871 = vpack.c.b16 %v4129, %v4122
    %v4872 = vpack.c.b16 %v4130, %v4123
    %v4873 = vpack.c.b16 %v4131, %v4124
    %v4874 = vpack.c.b16 %v4139, %v4132
    %v4875 = vpack.c.b16 %v4140, %v4133
    %v4876 = vpack.c.b16 %v4141, %v4134
    %v4877 = vpack.c.b16 %v4142, %v4135
    %v4878 = vpack.c.b16 %v4143, %v4136
    %v4879 = vpack.c.b16 %v4144, %v4137
    %v4880 = vpack.c.b16 %v4145, %v4138
    %v4881 = vpack.c.b16 %v4153, %v4146
    %v4882 = vpack.c.b16 %v4154, %v4147
    %v4883 = vpack.c.b16 %v4155, %v4148
    %v4884 = vpack.c.b16 %v4156, %v4149
    %v4885 = vpack.c.b16 %v4157, %v4150
    %v4886 = vpack.c.b16 %v4158, %v4151
    %v4887 = vpack.c.b16 %v4159, %v4152
    %v4888 = vpack.c.b16 %v4167, %v4160
    %v4889 = vpack.c.b16 %v4168, %v4161
    %v4890 = vpack.c.b16 %v4169, %v4162
    %v4891 = vpack.c.b16 %v4170, %v4163
    %v4892 = vpack.c.b16 %v4171, %v4164
    %v4893 = vpack.c.b16 %v4172, %v4165
    %v4894 = vpack.c.b16 %v4173, %v4166
    %v4895 = vpack.c.b16 %v4181, %v4174
    %v4896 = vpack.c.b16 %v4182, %v4175
    %v4897 = vpack.c.b16 %v4183, %v4176
    %v4898 = vpack.c.b16 %v4184, %v4177
    %v4899 = vpack.c.b16 %v4185, %v4178
    %v4900 = vpack.c.b16 %v4186, %v4179
    %v4901 = vpack.c.b16 %v4187, %v4180
    %v4902 = vpack.c.b16 %v4195, %v4188
    %v4903 = vpack.c.b16 %v4196, %v4189
    %v4904 = vpack.c.b16 %v4197, %v4190
    %v4905 = vpack.c.b16 %v4198, %v4191
    %v4906 = vpack.c.b16 %v4199, %v4192
    %v4907 = vpack.c.b16 %v4200, %v4193
    %v4908 = vpack.c.b16 %v4201, %v4194
    %v4909 = vpack.c.b16 %v4209, %v4202
    %v4910 = vpack.c.b16 %v4210, %v4203
    %v4911 = vpack.c.b16 %v4211, %v4204
    %v4912 = vpack.c.b16 %v4212, %v4205
    %v4913 = vpack.c.b16 %v4213, %v4206
    %v4914 = vpack.c.b16 %v4214, %v4207
    %v4915 = vpack.c.b16 %v4215, %v4208
    %v4916 = vpack.c.b16 %v4223, %v4216
    %v4917 = vpack.c.b16 %v4224, %v4217
    %v4918 = vpack.c.b16 %v4225, %v4218
    %v4919 = vpack.c.b16 %v4226, %v4219
    %v4920 = vpack.c.b16 %v4227, %v4220
    %v4921 = vpack.c.b16 %v4228, %v4221
    %v4922 = vpack.c.b16 %v4229, %v4222
    %v4923 = vpack.c.b16 %v4237, %v4230
    %v4924 = vpack.c.b16 %v4238, %v4231
    %v4925 = vpack.c.b16 %v4239, %v4232
    %v4926 = vpack.c.b16 %v4240, %v4233
    %v4927 = vpack.c.b16 %v4241, %v4234
    %v4928 = vpack.c.b16 %v4242, %v4235
    %v4929 = vpack.c.b16 %v4243, %v4236
    %v4930 = vpack.c.b16 %v4251, %v4244
    %v4931 = vpack.c.b16 %v4252, %v4245
    %v4932 = vpack.c.b16 %v4253, %v4246
    %v4933 = vpack.c.b16 %v4254, %v4247
    %v4934 = vpack.c.b16 %v4255, %v4248
    %v4935 = vpack.c.b16 %v4256, %v4249
    %v4936 = vpack.c.b16 %v4257, %v4250
    %v4937 = vpack.c.b16 %v4265, %v4258
    %v4938 = vpack.c.b16 %v4266, %v4259
    %v4939 = vpack.c.b16 %v4267, %v4260
    %v4940 = vpack.c.b16 %v4268, %v4261
    %v4941 = vpack.c.b16 %v4269, %v4262
    %v4942 = vpack.c.b16 %v4270, %v4263
    %v4943 = vpack.c.b16 %v4271, %v4264
    %v4944 = vpack.c.b16 %v4279, %v4272
    %v4945 = vpack.c.b16 %v4280, %v4273
    %v4946 = vpack.c.b16 %v4281, %v4274
    %v4947 = vpack.c.b16 %v4282, %v4275
    %v4948 = vpack.c.b16 %v4283, %v4276
    %v4949 = vpack.c.b16 %v4284, %v4277
    %v4950 = vpack.c.b16 %v4285, %v4278
    %v4951 = vpack.c.b16 %v4293, %v4286
    %v4952 = vpack.c.b16 %v4294, %v4287
    %v4953 = vpack.c.b16 %v4295, %v4288
    %v4954 = vpack.c.b16 %v4296, %v4289
    %v4955 = vpack.c.b16 %v4297, %v4290
    %v4956 = vpack.c.b16 %v4298, %v4291
    %v4957 = vpack.c.b16 %v4299, %v4292
    %v4958 = vpack.c.b16 %v4307, %v4300
    %v4959 = vpack.c.b16 %v4308, %v4301
    %v4960 = vpack.c.b16 %v4309, %v4302
    %v4961 = vpack.c.b16 %v4310, %v4303
    %v4962 = vpack.c.b16 %v4311, %v4304
    %v4963 = vpack.c.b16 %v4312, %v4305
    %v4964 = vpack.c.b16 %v4313, %v4306
    %v4965 = vpack.c.b16 %v4321, %v4314
    %v4966 = vpack.c.b16 %v4322, %v4315
    %v4967 = vpack.c.b16 %v4323, %v4316
    %v4968 = vpack.c.b16 %v4324, %v4317
    %v4969 = vpack.c.b16 %v4325, %v4318
    %v4970 = vpack.c.b16 %v4326, %v4319
    %v4971 = vpack.c.b16 %v4327, %v4320
    %v4972 = vpack.c.b16 %v4335, %v4328
    %v4973 = vpack.c.b16 %v4336, %v4329
    %v4974 = vpack.c.b16 %v4337, %v4330
    %v4975 = vpack.c.b16 %v4338, %v4331
    %v4976 = vpack.c.b16 %v4339, %v4332
    %v4977 = vpack.c.b16 %v4340, %v4333
    %v4978 = vpack.c.b16 %v4341, %v4334
    %v4979 = vpack.c.b16 %v4349, %v4342
    %v4980 = vpack.c.b16 %v4350, %v4343
    %v4981 = vpack.c.b16 %v4351, %v4344
    %v4982 = vpack.c.b16 %v4352, %v4345
    %v4983 = vpack.c.b16 %v4353, %v4346
    %v4984 = vpack.c.b16 %v4354, %v4347
    %v4985 = vpack.c.b16 %v4355, %v4348
    %v4986 = vpack.c.b16 %v4363, %v4356
    %v4987 = vpack.c.b16 %v4364, %v4357
    %v4988 = vpack.c.b16 %v4365, %v4358
    %v4989 = vpack.c.b16 %v4366, %v4359
    %v4990 = vpack.c.b16 %v4367, %v4360
    %v4991 = vpack.c.b16 %v4368, %v4361
    %v4992 = vpack.c.b16 %v4369, %v4362
    %v4993 = vpack.c.b16 %v4377, %v4370
    %v4994 = vpack.c.b16 %v4378, %v4371
    %v4995 = vpack.c.b16 %v4379, %v4372
    %v4996 = vpack.c.b16 %v4380, %v4373
    %v4997 = vpack.c.b16 %v4381, %v4374
    %v4998 = vpack.c.b16 %v4382, %v4375
    %v4999 = vpack.c.b16 %v4383, %v4376
    %v5000 = vpack.c.b16 %v4391, %v4384
    %v5001 = vpack.c.b16 %v4392, %v4385
    %v5002 = vpack.c.b16 %v4393, %v4386
    %v5003 = vpack.c.b16 %v4394, %v4387
    %v5004 = vpack.c.b16 %v4395, %v4388
    %v5005 = vpack.c.b16 %v4396, %v4389
    %v5006 = vpack.c.b16 %v4397, %v4390
    %v5007 = vpack.c.b16 %v4405, %v4398
    %v5008 = vpack.c.b16 %v4406, %v4399
    %v5009 = vpack.c.b16 %v4407, %v4400
    %v5010 = vpack.c.b16 %v4408, %v4401
    %v5011 = vpack.c.b16 %v4409, %v4402
    %v5012 = vpack.c.b16 %v4410, %v4403
    %v5013 = vpack.c.b16 %v4411, %v4404
    %v5014 = vpack.c.b16 %v4419, %v4412
    %v5015 = vpack.c.b16 %v4420, %v4413
    %v5016 = vpack.c.b16 %v4421, %v4414
    %v5017 = vpack.c.b16 %v4422, %v4415
    %v5018 = vpack.c.b16 %v4423, %v4416
    %v5019 = vpack.c.b16 %v4424, %v4417
    %v5020 = vpack.c.b16 %v4425, %v4418
    %v5021 = vpack.c.b16 %v4433, %v4426
    %v5022 = vpack.c.b16 %v4434, %v4427
    %v5023 = vpack.c.b16 %v4435, %v4428
    %v5024 = vpack.c.b16 %v4436, %v4429
    %v5025 = vpack.c.b16 %v4437, %v4430
    %v5026 = vpack.c.b16 %v4438, %v4431
    %v5027 = vpack.c.b16 %v4439, %v4432
    %v5028 = vpack.c.b16 %v4447, %v4440
    %v5029 = vpack.c.b16 %v4448, %v4441
    %v5030 = vpack.c.b16 %v4449, %v4442
    %v5031 = vpack.c.b16 %v4450, %v4443
    %v5032 = vpack.c.b16 %v4451, %v4444
    %v5033 = vpack.c.b16 %v4452, %v4445
    %v5034 = vpack.c.b16 %v4453, %v4446
    %v5035 = vpack.c.b16 %v4461, %v4454
    %v5036 = vpack.c.b16 %v4462, %v4455
    %v5037 = vpack.c.b16 %v4463, %v4456
    %v5038 = vpack.c.b16 %v4464, %v4457
    %v5039 = vpack.c.b16 %v4465, %v4458
    %v5040 = vpack.c.b16 %v4466, %v4459
    %v5041 = vpack.c.b16 %v4467, %v4460
    %v5042 = vpack.c.b16 %v4475, %v4468
    %v5043 = vpack.c.b16 %v4476, %v4469
    %v5044 = vpack.c.b16 %v4477, %v4470
    %v5045 = vpack.c.b16 %v4478, %v4471
    %v5046 = vpack.c.b16 %v4479, %v4472
    %v5047 = vpack.c.b16 %v4480, %v4473
    %v5048 = vpack.c.b16 %v4481, %v4474
    %v5049 = vpack.c.b16 %v4489, %v4482
    %v5050 = vpack.c.b16 %v4490, %v4483
    %v5051 = vpack.c.b16 %v4491, %v4484
    %v5052 = vpack.c.b16 %v4492, %v4485
    %v5053 = vpack.c.b16 %v4493, %v4486
    %v5054 = vpack.c.b16 %v4494, %v4487
    %v5055 = vpack.c.b16 %v4495, %v4488
    %v5056 = vpack.c.b16 %v4503, %v4496
    %v5057 = vpack.c.b16 %v4504, %v4497
    %v5058 = vpack.c.b16 %v4505, %v4498
    %v5059 = vpack.c.b16 %v4506, %v4499
    %v5060 = vpack.c.b16 %v4507, %v4500
    %v5061 = vpack.c.b16 %v4508, %v4501
    %v5062 = vpack.c.b16 %v4509, %v4502
    %v5063 = vpack.c.b16 %v4517, %v4510
    %v5064 = vpack.c.b16 %v4518, %v4511
    %v5065 = vpack.c.b16 %v4519, %v4512
    %v5066 = vpack.c.b16 %v4520, %v4513
    %v5067 = vpack.c.b16 %v4521, %v4514
    %v5068 = vpack.c.b16 %v4522, %v4515
    %v5069 = vpack.c.b16 %v4523, %v4516
    %v5070 = vpack.c.b16 %v4531, %v4524
    %v5071 = vpack.c.b16 %v4532, %v4525
    %v5072 = vpack.c.b16 %v4533, %v4526
    %v5073 = vpack.c.b16 %v4534, %v4527
    %v5074 = vpack.c.b16 %v4535, %v4528
    %v5075 = vpack.c.b16 %v4536, %v4529
    %v5076 = vpack.c.b16 %v4537, %v4530
    %v5077 = vpack.c.b16 %v4545, %v4538
    %v5078 = vpack.c.b16 %v4546, %v4539
    %v5079 = vpack.c.b16 %v4547, %v4540
    %v5080 = vpack.c.b16 %v4548, %v4541
    %v5081 = vpack.c.b16 %v4549, %v4542
    %v5082 = vpack.c.b16 %v4550, %v4543
    %v5083 = vpack.c.b16 %v4551, %v4544
    %v5084 = vpack.c.b16 %v4559, %v4552
    %v5085 = vpack.c.b16 %v4560, %v4553
    %v5086 = vpack.c.b16 %v4561, %v4554
    %v5087 = vpack.c.b16 %v4562, %v4555
    %v5088 = vpack.c.b16 %v4563, %v4556
    %v5089 = vpack.c.b16 %v4564, %v4557
    %v5090 = vpack.c.b16 %v4565, %v4558
    %v5091 = vpack.c.b16 %v4573, %v4566
    %v5092 = vpack.c.b16 %v4574, %v4567
    %v5093 = vpack.c.b16 %v4575, %v4568
    %v5094 = vpack.c.b16 %v4576, %v4569
    %v5095 = vpack.c.b16 %v4577, %v4570
    %v5096 = vpack.c.b16 %v4578, %v4571
    %v5097 = vpack.c.b16 %v4579, %v4572
    %v5098 = vpack.c.b16 %v4587, %v4580
    %v5099 = vpack.c.b16 %v4588, %v4581
    %v5100 = vpack.c.b16 %v4589, %v4582
    %v5101 = vpack.c.b16 %v4590, %v4583
    %v5102 = vpack.c.b16 %v4591, %v4584
    %v5103 = vpack.c.b16 %v4592, %v4585
    %v5104 = vpack.c.b16 %v4593, %v4586
    %v5105 = vpack.c.b16 %v4601, %v4594
    %v5106 = vpack.c.b16 %v4602, %v4595
    %v5107 = vpack.c.b16 %v4603, %v4596
    %v5108 = vpack.c.b16 %v4604, %v4597
    %v5109 = vpack.c.b16 %v4605, %v4598
    %v5110 = vpack.c.b16 %v4606, %v4599
    %v5111 = vpack.c.b16 %v4607, %v4600
    %v5112 = vpack.c.b16 %v4615, %v4608
    %v5113 = vpack.c.b16 %v4616, %v4609
    %v5114 = vpack.c.b16 %v4617, %v4610
    %v5115 = vpack.c.b16 %v4618, %v4611
    %v5116 = vpack.c.b16 %v4619, %v4612
    %v5117 = vpack.c.b16 %v4620, %v4613
    %v5118 = vpack.c.b16 %v4621, %v4614
    %v5119 = vpack.c.b16 %v4629, %v4622
    %v5120 = vpack.c.b16 %v4630, %v4623
    %v5121 = vpack.c.b16 %v4631, %v4624
    %v5122 = vpack.c.b16 %v4632, %v4625
    %v5123 = vpack.c.b16 %v4633, %v4626
    %v5124 = vpack.c.b16 %v4634, %v4627
    %v5125 = vpack.c.b16 %v4635, %v4628
    %v5126 = vpack.c.b16 %v4643, %v4636
    %v5127 = vpack.c.b16 %v4644, %v4637
    %v5128 = vpack.c.b16 %v4645, %v4638
    %v5129 = vpack.c.b16 %v4646, %v4639
    %v5130 = vpack.c.b16 %v4647, %v4640
    %v5131 = vpack.c.b16 %v4648, %v4641
    %v5132 = vpack.c.b16 %v4649, %v4642
    %v5133 = vpack.c.b16 %v4657, %v4650
    %v5134 = vpack.c.b16 %v4658, %v4651
    %v5135 = vpack.c.b16 %v4659, %v4652
    %v5136 = vpack.c.b16 %v4660, %v4653
    %v5137 = vpack.c.b16 %v4661, %v4654
    %v5138 = vpack.c.b16 %v4662, %v4655
    %v5139 = vpack.c.b16 %v4663, %v4656
    %v5140 = vpack.c.b16 %v4671, %v4664
    %v5141 = vpack.c.b16 %v4672, %v4665
    %v5142 = vpack.c.b16 %v4673, %v4666
    %v5143 = vpack.c.b16 %v4674, %v4667
    %v5144 = vpack.c.b16 %v4675, %v4668
    %v5145 = vpack.c.b16 %v4676, %v4669
    %v5146 = vpack.c.b16 %v4677, %v4670
    %v5147 = vpack.c.b16 %v4685, %v4678
    %v5148 = vpack.c.b16 %v4686, %v4679
    %v5149 = vpack.c.b16 %v4687, %v4680
    %v5150 = vpack.c.b16 %v4688, %v4681
    %v5151 = vpack.c.b16 %v4689, %v4682
    %v5152 = vpack.c.b16 %v4690, %v4683
    %v5153 = vpack.c.b16 %v4691, %v4684
    %v5154 = vpack.c.b16 %v4699, %v4692
    %v5155 = vpack.c.b16 %v4700, %v4693
    %v5156 = vpack.c.b16 %v4701, %v4694
    %v5157 = vpack.c.b16 %v4702, %v4695
    %v5158 = vpack.c.b16 %v4703, %v4696
    %v5159 = vpack.c.b16 %v4704, %v4697
    %v5160 = vpack.c.b16 %v4705, %v4698
    %v5161 = vpack.c.b16 %v4713, %v4706
    %v5162 = vpack.c.b16 %v4714, %v4707
    %v5163 = vpack.c.b16 %v4715, %v4708
    %v5164 = vpack.c.b16 %v4716, %v4709
    %v5165 = vpack.c.b16 %v4717, %v4710
    %v5166 = vpack.c.b16 %v4718, %v4711
    %v5167 = vpack.c.b16 %v4719, %v4712
    %5616 = vmatprep.subr.bf16.mxu0 %v4770
    %5617 = vmatpush1.bf16.msra.mxu0 %v4769
    %5618 = vmatprep.subr.bf16.mxu0 %v4763
    %5619 = vmatpush1.bf16.msra.mxu0 %v4762
    %5620 = vmatprep.subr.bf16.mxu0 %v4756
    %5621 = vmatpush1.bf16.msra.mxu0 %v4755
    %5622 = vmatprep.subr.bf16.mxu0 %v4749
    %5623 = vmatpush1.bf16.msra.mxu0 %v4748
    %5624 = vmatprep.subr.bf16.mxu0 %v4742
    %5625 = vmatpush1.bf16.msra.mxu0 %v4741
    %5626 = vmatprep.subr.bf16.mxu0 %v4735
    %5627 = vmatpush1.bf16.msra.mxu0 %v4734
    %5628 = vmatprep.subr.bf16.mxu0 %v4728
    %5629 = vmatpush1.bf16.msra.mxu0 %v4727
    %5630 = vmatprep.subr.bf16.mxu0 %v4721
    %5631 = vmatpush1.bf16.msra.mxu0 %v4720
    %5632 = vmatprep.subr.bf16.mxu0 %v4826
    %5633 = vmatpush2.bf16.msra.mxu0 %v4825
    %5634 = vmatprep.subr.bf16.mxu0 %v4819
    %5635 = vmatpush2.bf16.msra.mxu0 %v4818
    %5636 = vmatprep.subr.bf16.mxu0 %v4812
    %5637 = vmatpush2.bf16.msra.mxu0 %v4811
    %5638 = vmatprep.subr.bf16.mxu0 %v4805
    %5639 = vmatpush2.bf16.msra.mxu0 %v4804
    %5640 = vmatprep.subr.bf16.mxu0 %v4798
    %5641 = vmatpush2.bf16.msra.mxu0 %v4797
    %5642 = vmatprep.subr.bf16.mxu0 %v4791
    %5643 = vmatpush2.bf16.msra.mxu0 %v4790
    %5644 = vmatprep.subr.bf16.mxu0 %v4784
    %5645 = vmatpush2.bf16.msra.mxu0 %v4783
    %5646 = vmatprep.subr.bf16.mxu0 %v4777
    %5647 = vmatpush2.bf16.msra.mxu0 %v4776
    %5648 = vmatprep.mubr.bf16.mxu0 %v2756
    %5649 = vmatmul.mubr.bf16.gmra.mxu0 %v2755
    %v5650 = vpop.f32.mrf.mxu0
    %v5651 = vadd.f32 %v3280, %v5650
    %v5652 = vpop.f32.mrf.mxu0
    %v5653 = vadd.f32 %v3284, %v5652
    %v5654 = vpop.f32.mrf.mxu0
    %v5655 = vadd.f32 %v3280, %v5654
    %v5656 = vpop.f32.mrf.mxu0
    %v5657 = vadd.f32 %v3284, %v5656
    %5658 = vdwg.mxu0
    %5659 = vmatprep.subr.bf16.mxu0 %v4882
    %5660 = vmatpush1.bf16.msra.mxu0 %v4881
    %5661 = vmatprep.subr.bf16.mxu0 %v4875
    %5662 = vmatpush1.bf16.msra.mxu0 %v4874
    %5663 = vmatprep.subr.bf16.mxu0 %v4868
    %5664 = vmatpush1.bf16.msra.mxu0 %v4867
    %5665 = vmatprep.subr.bf16.mxu0 %v4861
    %5666 = vmatpush1.bf16.msra.mxu0 %v4860
    %5667 = vmatprep.subr.bf16.mxu0 %v4854
    %5668 = vmatpush1.bf16.msra.mxu0 %v4853
    %5669 = vmatprep.subr.bf16.mxu0 %v4847
    %5670 = vmatpush1.bf16.msra.mxu0 %v4846
    %5671 = vmatprep.subr.bf16.mxu0 %v4840
    %5672 = vmatpush1.bf16.msra.mxu0 %v4839
    %5673 = vmatprep.subr.bf16.mxu0 %v4833
    %5674 = vmatpush1.bf16.msra.mxu0 %v4832
    %5675 = vmatprep.subr.bf16.mxu0 %v4938
    %5676 = vmatpush2.bf16.msra.mxu0 %v4937
    %5677 = vmatprep.subr.bf16.mxu0 %v4931
    %5678 = vmatpush2.bf16.msra.mxu0 %v4930
    %5679 = vmatprep.subr.bf16.mxu0 %v4924
    %5680 = vmatpush2.bf16.msra.mxu0 %v4923
    %5681 = vmatprep.subr.bf16.mxu0 %v4917
    %5682 = vmatpush2.bf16.msra.mxu0 %v4916
    %5683 = vmatprep.subr.bf16.mxu0 %v4910
    %5684 = vmatpush2.bf16.msra.mxu0 %v4909
    %5685 = vmatprep.subr.bf16.mxu0 %v4903
    %5686 = vmatpush2.bf16.msra.mxu0 %v4902
    %5687 = vmatprep.subr.bf16.mxu0 %v4896
    %5688 = vmatpush2.bf16.msra.mxu0 %v4895
    %5689 = vmatprep.subr.bf16.mxu0 %v4889
    %5690 = vmatpush2.bf16.msra.mxu0 %v4888
    %5691 = vmatprep.mubr.bf16.mxu0 %v2758
    %5692 = vmatmul.mubr.bf16.gmra.mxu0 %v2757
    %v5693 = vpop.f32.mrf.mxu0
    %v5694 = vadd.f32 %v5651, %v5693
    %v5695 = vpop.f32.mrf.mxu0
    %v5696 = vadd.f32 %v5653, %v5695
    %v5697 = vpop.f32.mrf.mxu0
    %v5698 = vadd.f32 %v5655, %v5697
    %v5699 = vpop.f32.mrf.mxu0
    %v5700 = vadd.f32 %v5657, %v5699
    %5701 = vdwg.mxu0
    %5702 = vmatprep.subr.bf16.mxu0 %v4994
    %5703 = vmatpush1.bf16.msra.mxu0 %v4993
    %5704 = vmatprep.subr.bf16.mxu0 %v4987
    %5705 = vmatpush1.bf16.msra.mxu0 %v4986
    %5706 = vmatprep.subr.bf16.mxu0 %v4980
    %5707 = vmatpush1.bf16.msra.mxu0 %v4979
    %5708 = vmatprep.subr.bf16.mxu0 %v4973
    %5709 = vmatpush1.bf16.msra.mxu0 %v4972
    %5710 = vmatprep.subr.bf16.mxu0 %v4966
    %5711 = vmatpush1.bf16.msra.mxu0 %v4965
    %5712 = vmatprep.subr.bf16.mxu0 %v4959
    %5713 = vmatpush1.bf16.msra.mxu0 %v4958
    %5714 = vmatprep.subr.bf16.mxu0 %v4952
    %5715 = vmatpush1.bf16.msra.mxu0 %v4951
    %5716 = vmatprep.subr.bf16.mxu0 %v4945
    %5717 = vmatpush1.bf16.msra.mxu0 %v4944
    %5718 = vmatprep.subr.bf16.mxu0 %v5050
    %5719 = vmatpush2.bf16.msra.mxu0 %v5049
    %5720 = vmatprep.subr.bf16.mxu0 %v5043
    %5721 = vmatpush2.bf16.msra.mxu0 %v5042
    %5722 = vmatprep.subr.bf16.mxu0 %v5036
    %5723 = vmatpush2.bf16.msra.mxu0 %v5035
    %5724 = vmatprep.subr.bf16.mxu0 %v5029
    %5725 = vmatpush2.bf16.msra.mxu0 %v5028
    %5726 = vmatprep.subr.bf16.mxu0 %v5022
    %5727 = vmatpush2.bf16.msra.mxu0 %v5021
    %5728 = vmatprep.subr.bf16.mxu0 %v5015
    %5729 = vmatpush2.bf16.msra.mxu0 %v5014
    %5730 = vmatprep.subr.bf16.mxu0 %v5008
    %5731 = vmatpush2.bf16.msra.mxu0 %v5007
    %5732 = vmatprep.subr.bf16.mxu0 %v5001
    %5733 = vmatpush2.bf16.msra.mxu0 %v5000
    %5734 = vmatprep.mubr.bf16.mxu0 %v2760
    %5735 = vmatmul.mubr.bf16.gmra.mxu0 %v2759
    %v5736 = vpop.f32.mrf.mxu0
    %v5737 = vadd.f32 %v5694, %v5736
    %v5738 = vpop.f32.mrf.mxu0
    %v5739 = vadd.f32 %v5696, %v5738
    %v5740 = vpop.f32.mrf.mxu0
    %v5741 = vadd.f32 %v5698, %v5740
    %v5742 = vpop.f32.mrf.mxu0
    %v5743 = vadd.f32 %v5700, %v5742
    %5744 = vdwg.mxu0
    %5745 = vmatprep.subr.bf16.mxu0 %v5106
    %5746 = vmatpush1.bf16.msra.mxu0 %v5105
    %5747 = vmatprep.subr.bf16.mxu0 %v5099
    %5748 = vmatpush1.bf16.msra.mxu0 %v5098
    %5749 = vmatprep.subr.bf16.mxu0 %v5092
    %5750 = vmatpush1.bf16.msra.mxu0 %v5091
    %5751 = vmatprep.subr.bf16.mxu0 %v5085
    %5752 = vmatpush1.bf16.msra.mxu0 %v5084
    %5753 = vmatprep.subr.bf16.mxu0 %v5078
    %5754 = vmatpush1.bf16.msra.mxu0 %v5077
    %5755 = vmatprep.subr.bf16.mxu0 %v5071
    %5756 = vmatpush1.bf16.msra.mxu0 %v5070
    %5757 = vmatprep.subr.bf16.mxu0 %v5064
    %5758 = vmatpush1.bf16.msra.mxu0 %v5063
    %5759 = vmatprep.subr.bf16.mxu0 %v5057
    %5760 = vmatpush1.bf16.msra.mxu0 %v5056
    %5761 = vmatprep.subr.bf16.mxu0 %v5162
    %5762 = vmatpush2.bf16.msra.mxu0 %v5161
    %5763 = vmatprep.subr.bf16.mxu0 %v5155
    %5764 = vmatpush2.bf16.msra.mxu0 %v5154
    %5765 = vmatprep.subr.bf16.mxu0 %v5148
    %5766 = vmatpush2.bf16.msra.mxu0 %v5147
    %5767 = vmatprep.subr.bf16.mxu0 %v5141
    %5768 = vmatpush2.bf16.msra.mxu0 %v5140
    %5769 = vmatprep.subr.bf16.mxu0 %v5134
    %5770 = vmatpush2.bf16.msra.mxu0 %v5133
    %5771 = vmatprep.subr.bf16.mxu0 %v5127
    %5772 = vmatpush2.bf16.msra.mxu0 %v5126
    %5773 = vmatprep.subr.bf16.mxu0 %v5120
    %5774 = vmatpush2.bf16.msra.mxu0 %v5119
    %5775 = vmatprep.subr.bf16.mxu0 %v5113
    %5776 = vmatpush2.bf16.msra.mxu0 %v5112
    %5777 = vmatprep.mubr.bf16.mxu0 %v2762
    %5778 = vmatmul.mubr.bf16.gmra.mxu0 %v2761
    %v5779 = vpop.f32.mrf.mxu0
    %v5780 = vadd.f32 %v5737, %v5779
    %v5781 = vpop.f32.mrf.mxu0
    %v5782 = vadd.f32 %v5739, %v5781
    %v5783 = vpop.f32.mrf.mxu0
    %v5784 = vadd.f32 %v5741, %v5783
    %v5785 = vpop.f32.mrf.mxu0
    %v5786 = vadd.f32 %v5743, %v5785
    %5787 = vdwg.mxu0
    %5788 = vmatprep.subr.bf16.mxu0 %v4772
    %5789 = vmatpush1.bf16.msra.mxu0 %v4771
    %5790 = vmatprep.subr.bf16.mxu0 %v4765
    %5791 = vmatpush1.bf16.msra.mxu0 %v4764
    %5792 = vmatprep.subr.bf16.mxu0 %v4758
    %5793 = vmatpush1.bf16.msra.mxu0 %v4757
    %5794 = vmatprep.subr.bf16.mxu0 %v4751
    %5795 = vmatpush1.bf16.msra.mxu0 %v4750
    %5796 = vmatprep.subr.bf16.mxu0 %v4744
    %5797 = vmatpush1.bf16.msra.mxu0 %v4743
    %5798 = vmatprep.subr.bf16.mxu0 %v4737
    %5799 = vmatpush1.bf16.msra.mxu0 %v4736
    %5800 = vmatprep.subr.bf16.mxu0 %v4730
    %5801 = vmatpush1.bf16.msra.mxu0 %v4729
    %5802 = vmatprep.subr.bf16.mxu0 %v4723
    %5803 = vmatpush1.bf16.msra.mxu0 %v4722
    %5804 = vmatprep.subr.bf16.mxu0 %v4828
    %5805 = vmatpush2.bf16.msra.mxu0 %v4827
    %5806 = vmatprep.subr.bf16.mxu0 %v4821
    %5807 = vmatpush2.bf16.msra.mxu0 %v4820
    %5808 = vmatprep.subr.bf16.mxu0 %v4814
    %5809 = vmatpush2.bf16.msra.mxu0 %v4813
    %5810 = vmatprep.subr.bf16.mxu0 %v4807
    %5811 = vmatpush2.bf16.msra.mxu0 %v4806
    %5812 = vmatprep.subr.bf16.mxu0 %v4800
    %5813 = vmatpush2.bf16.msra.mxu0 %v4799
    %5814 = vmatprep.subr.bf16.mxu0 %v4793
    %5815 = vmatpush2.bf16.msra.mxu0 %v4792
    %5816 = vmatprep.subr.bf16.mxu0 %v4786
    %5817 = vmatpush2.bf16.msra.mxu0 %v4785
    %5818 = vmatprep.subr.bf16.mxu0 %v4779
    %5819 = vmatpush2.bf16.msra.mxu0 %v4778
    %5820 = vmatprep.mubr.bf16.mxu0 %v2756
    %5821 = vmatmul.mubr.bf16.gmra.mxu0 %v2755
    %v5822 = vpop.f32.mrf.mxu0
    %v5823 = vadd.f32 %v3288, %v5822
    %v5824 = vpop.f32.mrf.mxu0
    %v5825 = vadd.f32 %v3292, %v5824
    %v5826 = vpop.f32.mrf.mxu0
    %v5827 = vadd.f32 %v3288, %v5826
    %v5828 = vpop.f32.mrf.mxu0
    %v5829 = vadd.f32 %v3292, %v5828
    %5830 = vdwg.mxu0
    %5831 = vmatprep.subr.bf16.mxu0 %v4884
    %5832 = vmatpush1.bf16.msra.mxu0 %v4883
    %5833 = vmatprep.subr.bf16.mxu0 %v4877
    %5834 = vmatpush1.bf16.msra.mxu0 %v4876
    %5835 = vmatprep.subr.bf16.mxu0 %v4870
    %5836 = vmatpush1.bf16.msra.mxu0 %v4869
    %5837 = vmatprep.subr.bf16.mxu0 %v4863
    %5838 = vmatpush1.bf16.msra.mxu0 %v4862
    %5839 = vmatprep.subr.bf16.mxu0 %v4856
    %5840 = vmatpush1.bf16.msra.mxu0 %v4855
    %5841 = vmatprep.subr.bf16.mxu0 %v4849
    %5842 = vmatpush1.bf16.msra.mxu0 %v4848
    %5843 = vmatprep.subr.bf16.mxu0 %v4842
    %5844 = vmatpush1.bf16.msra.mxu0 %v4841
    %5845 = vmatprep.subr.bf16.mxu0 %v4835
    %5846 = vmatpush1.bf16.msra.mxu0 %v4834
    %5847 = vmatprep.subr.bf16.mxu0 %v4940
    %5848 = vmatpush2.bf16.msra.mxu0 %v4939
    %5849 = vmatprep.subr.bf16.mxu0 %v4933
    %5850 = vmatpush2.bf16.msra.mxu0 %v4932
    %5851 = vmatprep.subr.bf16.mxu0 %v4926
    %5852 = vmatpush2.bf16.msra.mxu0 %v4925
    %5853 = vmatprep.subr.bf16.mxu0 %v4919
    %5854 = vmatpush2.bf16.msra.mxu0 %v4918
    %5855 = vmatprep.subr.bf16.mxu0 %v4912
    %5856 = vmatpush2.bf16.msra.mxu0 %v4911
    %5857 = vmatprep.subr.bf16.mxu0 %v4905
    %5858 = vmatpush2.bf16.msra.mxu0 %v4904
    %5859 = vmatprep.subr.bf16.mxu0 %v4898
    %5860 = vmatpush2.bf16.msra.mxu0 %v4897
    %5861 = vmatprep.subr.bf16.mxu0 %v4891
    %5862 = vmatpush2.bf16.msra.mxu0 %v4890
    %5863 = vmatprep.mubr.bf16.mxu0 %v2758
    %5864 = vmatmul.mubr.bf16.gmra.mxu0 %v2757
    %v5865 = vpop.f32.mrf.mxu0
    %v5866 = vadd.f32 %v5823, %v5865
    %v5867 = vpop.f32.mrf.mxu0
    %v5868 = vadd.f32 %v5825, %v5867
    %v5869 = vpop.f32.mrf.mxu0
    %v5870 = vadd.f32 %v5827, %v5869
    %v5871 = vpop.f32.mrf.mxu0
    %v5872 = vadd.f32 %v5829, %v5871
    %5873 = vdwg.mxu0
    %5874 = vmatprep.subr.bf16.mxu0 %v4996
    %5875 = vmatpush1.bf16.msra.mxu0 %v4995
    %5876 = vmatprep.subr.bf16.mxu0 %v4989
    %5877 = vmatpush1.bf16.msra.mxu0 %v4988
    %5878 = vmatprep.subr.bf16.mxu0 %v4982
    %5879 = vmatpush1.bf16.msra.mxu0 %v4981
    %5880 = vmatprep.subr.bf16.mxu0 %v4975
    %5881 = vmatpush1.bf16.msra.mxu0 %v4974
    %5882 = vmatprep.subr.bf16.mxu0 %v4968
    %5883 = vmatpush1.bf16.msra.mxu0 %v4967
    %5884 = vmatprep.subr.bf16.mxu0 %v4961
    %5885 = vmatpush1.bf16.msra.mxu0 %v4960
    %5886 = vmatprep.subr.bf16.mxu0 %v4954
    %5887 = vmatpush1.bf16.msra.mxu0 %v4953
    %5888 = vmatprep.subr.bf16.mxu0 %v4947
    %5889 = vmatpush1.bf16.msra.mxu0 %v4946
    %5890 = vmatprep.subr.bf16.mxu0 %v5052
    %5891 = vmatpush2.bf16.msra.mxu0 %v5051
    %5892 = vmatprep.subr.bf16.mxu0 %v5045
    %5893 = vmatpush2.bf16.msra.mxu0 %v5044
    %5894 = vmatprep.subr.bf16.mxu0 %v5038
    %5895 = vmatpush2.bf16.msra.mxu0 %v5037
    %5896 = vmatprep.subr.bf16.mxu0 %v5031
    %5897 = vmatpush2.bf16.msra.mxu0 %v5030
    %5898 = vmatprep.subr.bf16.mxu0 %v5024
    %5899 = vmatpush2.bf16.msra.mxu0 %v5023
    %5900 = vmatprep.subr.bf16.mxu0 %v5017
    %5901 = vmatpush2.bf16.msra.mxu0 %v5016
    %5902 = vmatprep.subr.bf16.mxu0 %v5010
    %5903 = vmatpush2.bf16.msra.mxu0 %v5009
    %5904 = vmatprep.subr.bf16.mxu0 %v5003
    %5905 = vmatpush2.bf16.msra.mxu0 %v5002
    %5906 = vmatprep.mubr.bf16.mxu0 %v2760
    %5907 = vmatmul.mubr.bf16.gmra.mxu0 %v2759
    %v5908 = vpop.f32.mrf.mxu0
    %v5909 = vadd.f32 %v5866, %v5908
    %v5910 = vpop.f32.mrf.mxu0
    %v5911 = vadd.f32 %v5868, %v5910
    %v5912 = vpop.f32.mrf.mxu0
    %v5913 = vadd.f32 %v5870, %v5912
    %v5914 = vpop.f32.mrf.mxu0
    %v5915 = vadd.f32 %v5872, %v5914
    %5916 = vdwg.mxu0
    %5917 = vmatprep.subr.bf16.mxu0 %v5108
    %5918 = vmatpush1.bf16.msra.mxu0 %v5107
    %5919 = vmatprep.subr.bf16.mxu0 %v5101
    %5920 = vmatpush1.bf16.msra.mxu0 %v5100
    %5921 = vmatprep.subr.bf16.mxu0 %v5094
    %5922 = vmatpush1.bf16.msra.mxu0 %v5093
    %5923 = vmatprep.subr.bf16.mxu0 %v5087
    %5924 = vmatpush1.bf16.msra.mxu0 %v5086
    %5925 = vmatprep.subr.bf16.mxu0 %v5080
    %5926 = vmatpush1.bf16.msra.mxu0 %v5079
    %5927 = vmatprep.subr.bf16.mxu0 %v5073
    %5928 = vmatpush1.bf16.msra.mxu0 %v5072
    %5929 = vmatprep.subr.bf16.mxu0 %v5066
    %5930 = vmatpush1.bf16.msra.mxu0 %v5065
    %5931 = vmatprep.subr.bf16.mxu0 %v5059
    %5932 = vmatpush1.bf16.msra.mxu0 %v5058
    %5933 = vmatprep.subr.bf16.mxu0 %v5164
    %5934 = vmatpush2.bf16.msra.mxu0 %v5163
    %5935 = vmatprep.subr.bf16.mxu0 %v5157
    %5936 = vmatpush2.bf16.msra.mxu0 %v5156
    %5937 = vmatprep.subr.bf16.mxu0 %v5150
    %5938 = vmatpush2.bf16.msra.mxu0 %v5149
    %5939 = vmatprep.subr.bf16.mxu0 %v5143
    %5940 = vmatpush2.bf16.msra.mxu0 %v5142
    %5941 = vmatprep.subr.bf16.mxu0 %v5136
    %5942 = vmatpush2.bf16.msra.mxu0 %v5135
    %5943 = vmatprep.subr.bf16.mxu0 %v5129
    %5944 = vmatpush2.bf16.msra.mxu0 %v5128
    %5945 = vmatprep.subr.bf16.mxu0 %v5122
    %5946 = vmatpush2.bf16.msra.mxu0 %v5121
    %5947 = vmatprep.subr.bf16.mxu0 %v5115
    %5948 = vmatpush2.bf16.msra.mxu0 %v5114
    %5949 = vmatprep.mubr.bf16.mxu0 %v2762
    %5950 = vmatmul.mubr.bf16.gmra.mxu0 %v2761
    %v5951 = vpop.f32.mrf.mxu0
    %v5952 = vadd.f32 %v5909, %v5951
    %v5953 = vpop.f32.mrf.mxu0
    %v5954 = vadd.f32 %v5911, %v5953
    %v5955 = vpop.f32.mrf.mxu0
    %v5956 = vadd.f32 %v5913, %v5955
    %v5957 = vpop.f32.mrf.mxu0
    %v5958 = vadd.f32 %v5915, %v5957
    %5959 = vdwg.mxu0
    %5960 = vmatprep.subr.bf16.mxu0 %v4774
    %5961 = vmatpush1.bf16.msra.mxu0 %v4773
    %5962 = vmatprep.subr.bf16.mxu0 %v4767
    %5963 = vmatpush1.bf16.msra.mxu0 %v4766
    %5964 = vmatprep.subr.bf16.mxu0 %v4760
    %5965 = vmatpush1.bf16.msra.mxu0 %v4759
    %5966 = vmatprep.subr.bf16.mxu0 %v4753
    %5967 = vmatpush1.bf16.msra.mxu0 %v4752
    %5968 = vmatprep.subr.bf16.mxu0 %v4746
    %5969 = vmatpush1.bf16.msra.mxu0 %v4745
    %5970 = vmatprep.subr.bf16.mxu0 %v4739
    %5971 = vmatpush1.bf16.msra.mxu0 %v4738
    %5972 = vmatprep.subr.bf16.mxu0 %v4732
    %5973 = vmatpush1.bf16.msra.mxu0 %v4731
    %5974 = vmatprep.subr.bf16.mxu0 %v4725
    %5975 = vmatpush1.bf16.msra.mxu0 %v4724
    %5976 = vmatprep.subr.bf16.mxu0 %v4830
    %5977 = vmatpush2.bf16.msra.mxu0 %v4829
    %5978 = vmatprep.subr.bf16.mxu0 %v4823
    %5979 = vmatpush2.bf16.msra.mxu0 %v4822
    %5980 = vmatprep.subr.bf16.mxu0 %v4816
    %5981 = vmatpush2.bf16.msra.mxu0 %v4815
    %5982 = vmatprep.subr.bf16.mxu0 %v4809
    %5983 = vmatpush2.bf16.msra.mxu0 %v4808
    %5984 = vmatprep.subr.bf16.mxu0 %v4802
    %5985 = vmatpush2.bf16.msra.mxu0 %v4801
    %5986 = vmatprep.subr.bf16.mxu0 %v4795
    %5987 = vmatpush2.bf16.msra.mxu0 %v4794
    %5988 = vmatprep.subr.bf16.mxu0 %v4788
    %5989 = vmatpush2.bf16.msra.mxu0 %v4787
    %5990 = vmatprep.subr.bf16.mxu0 %v4781
    %5991 = vmatpush2.bf16.msra.mxu0 %v4780
    %5992 = vmatprep.mubr.bf16.mxu0 %v2756
    %5993 = vmatmul.mubr.bf16.gmra.mxu0 %v2755
    %v5994 = vpop.f32.mrf.mxu0
    %v5995 = vadd.f32 %v3296, %v5994
    %v5996 = vpop.f32.mrf.mxu0
    %v5997 = vadd.f32 %v3300, %v5996
    %v5998 = vpop.f32.mrf.mxu0
    %v5999 = vadd.f32 %v3296, %v5998
    %v6000 = vpop.f32.mrf.mxu0
    %v6001 = vadd.f32 %v3300, %v6000
    %6002 = vdwg.mxu0
    %6003 = vmatprep.subr.bf16.mxu0 %v4886
    %6004 = vmatpush1.bf16.msra.mxu0 %v4885
    %6005 = vmatprep.subr.bf16.mxu0 %v4879
    %6006 = vmatpush1.bf16.msra.mxu0 %v4878
    %6007 = vmatprep.subr.bf16.mxu0 %v4872
    %6008 = vmatpush1.bf16.msra.mxu0 %v4871
    %6009 = vmatprep.subr.bf16.mxu0 %v4865
    %6010 = vmatpush1.bf16.msra.mxu0 %v4864
    %6011 = vmatprep.subr.bf16.mxu0 %v4858
    %6012 = vmatpush1.bf16.msra.mxu0 %v4857
    %6013 = vmatprep.subr.bf16.mxu0 %v4851
    %6014 = vmatpush1.bf16.msra.mxu0 %v4850
    %6015 = vmatprep.subr.bf16.mxu0 %v4844
    %6016 = vmatpush1.bf16.msra.mxu0 %v4843
    %6017 = vmatprep.subr.bf16.mxu0 %v4837
    %6018 = vmatpush1.bf16.msra.mxu0 %v4836
    %6019 = vmatprep.subr.bf16.mxu0 %v4942
    %6020 = vmatpush2.bf16.msra.mxu0 %v4941
    %6021 = vmatprep.subr.bf16.mxu0 %v4935
    %6022 = vmatpush2.bf16.msra.mxu0 %v4934
    %6023 = vmatprep.subr.bf16.mxu0 %v4928
    %6024 = vmatpush2.bf16.msra.mxu0 %v4927
    %6025 = vmatprep.subr.bf16.mxu0 %v4921
    %6026 = vmatpush2.bf16.msra.mxu0 %v4920
    %6027 = vmatprep.subr.bf16.mxu0 %v4914
    %6028 = vmatpush2.bf16.msra.mxu0 %v4913
    %6029 = vmatprep.subr.bf16.mxu0 %v4907
    %6030 = vmatpush2.bf16.msra.mxu0 %v4906
    %6031 = vmatprep.subr.bf16.mxu0 %v4900
    %6032 = vmatpush2.bf16.msra.mxu0 %v4899
    %6033 = vmatprep.subr.bf16.mxu0 %v4893
    %6034 = vmatpush2.bf16.msra.mxu0 %v4892
    %6035 = vmatprep.mubr.bf16.mxu0 %v2758
    %6036 = vmatmul.mubr.bf16.gmra.mxu0 %v2757
    %v6037 = vpop.f32.mrf.mxu0
    %v6038 = vadd.f32 %v5995, %v6037
    %v6039 = vpop.f32.mrf.mxu0
    %v6040 = vadd.f32 %v5997, %v6039
    %v6041 = vpop.f32.mrf.mxu0
    %v6042 = vadd.f32 %v5999, %v6041
    %v6043 = vpop.f32.mrf.mxu0
    %v6044 = vadd.f32 %v6001, %v6043
    %6045 = vdwg.mxu0
    %6046 = vmatprep.subr.bf16.mxu0 %v4998
    %6047 = vmatpush1.bf16.msra.mxu0 %v4997
    %6048 = vmatprep.subr.bf16.mxu0 %v4991
    %6049 = vmatpush1.bf16.msra.mxu0 %v4990
    %6050 = vmatprep.subr.bf16.mxu0 %v4984
    %6051 = vmatpush1.bf16.msra.mxu0 %v4983
    %6052 = vmatprep.subr.bf16.mxu0 %v4977
    %6053 = vmatpush1.bf16.msra.mxu0 %v4976
    %6054 = vmatprep.subr.bf16.mxu0 %v4970
    %6055 = vmatpush1.bf16.msra.mxu0 %v4969
    %6056 = vmatprep.subr.bf16.mxu0 %v4963
    %6057 = vmatpush1.bf16.msra.mxu0 %v4962
    %6058 = vmatprep.subr.bf16.mxu0 %v4956
    %6059 = vmatpush1.bf16.msra.mxu0 %v4955
    %6060 = vmatprep.subr.bf16.mxu0 %v4949
    %6061 = vmatpush1.bf16.msra.mxu0 %v4948
    %6062 = vmatprep.subr.bf16.mxu0 %v5054
    %6063 = vmatpush2.bf16.msra.mxu0 %v5053
    %6064 = vmatprep.subr.bf16.mxu0 %v5047
    %6065 = vmatpush2.bf16.msra.mxu0 %v5046
    %6066 = vmatprep.subr.bf16.mxu0 %v5040
    %6067 = vmatpush2.bf16.msra.mxu0 %v5039
    %6068 = vmatprep.subr.bf16.mxu0 %v5033
    %6069 = vmatpush2.bf16.msra.mxu0 %v5032
    %6070 = vmatprep.subr.bf16.mxu0 %v5026
    %6071 = vmatpush2.bf16.msra.mxu0 %v5025
    %6072 = vmatprep.subr.bf16.mxu0 %v5019
    %6073 = vmatpush2.bf16.msra.mxu0 %v5018
    %6074 = vmatprep.subr.bf16.mxu0 %v5012
    %6075 = vmatpush2.bf16.msra.mxu0 %v5011
    %6076 = vmatprep.subr.bf16.mxu0 %v5005
    %6077 = vmatpush2.bf16.msra.mxu0 %v5004
    %6078 = vmatprep.mubr.bf16.mxu0 %v2760
    %6079 = vmatmul.mubr.bf16.gmra.mxu0 %v2759
    %v6080 = vpop.f32.mrf.mxu0
    %v6081 = vadd.f32 %v6038, %v6080
    %v6082 = vpop.f32.mrf.mxu0
    %v6083 = vadd.f32 %v6040, %v6082
    %v6084 = vpop.f32.mrf.mxu0
    %v6085 = vadd.f32 %v6042, %v6084
    %v6086 = vpop.f32.mrf.mxu0
    %v6087 = vadd.f32 %v6044, %v6086
    %6088 = vdwg.mxu0
    %6089 = vmatprep.subr.bf16.mxu0 %v5110
    %6090 = vmatpush1.bf16.msra.mxu0 %v5109
    %6091 = vmatprep.subr.bf16.mxu0 %v5103
    %6092 = vmatpush1.bf16.msra.mxu0 %v5102
    %6093 = vmatprep.subr.bf16.mxu0 %v5096
    %6094 = vmatpush1.bf16.msra.mxu0 %v5095
    %6095 = vmatprep.subr.bf16.mxu0 %v5089
    %6096 = vmatpush1.bf16.msra.mxu0 %v5088
    %6097 = vmatprep.subr.bf16.mxu0 %v5082
    %6098 = vmatpush1.bf16.msra.mxu0 %v5081
    %6099 = vmatprep.subr.bf16.mxu0 %v5075
    %6100 = vmatpush1.bf16.msra.mxu0 %v5074
    %6101 = vmatprep.subr.bf16.mxu0 %v5068
    %6102 = vmatpush1.bf16.msra.mxu0 %v5067
    %6103 = vmatprep.subr.bf16.mxu0 %v5061
    %6104 = vmatpush1.bf16.msra.mxu0 %v5060
    %6105 = vmatprep.subr.bf16.mxu0 %v5166
    %6106 = vmatpush2.bf16.msra.mxu0 %v5165
    %6107 = vmatprep.subr.bf16.mxu0 %v5159
    %6108 = vmatpush2.bf16.msra.mxu0 %v5158
    %6109 = vmatprep.subr.bf16.mxu0 %v5152
    %6110 = vmatpush2.bf16.msra.mxu0 %v5151
    %6111 = vmatprep.subr.bf16.mxu0 %v5145
    %6112 = vmatpush2.bf16.msra.mxu0 %v5144
    %6113 = vmatprep.subr.bf16.mxu0 %v5138
    %6114 = vmatpush2.bf16.msra.mxu0 %v5137
    %6115 = vmatprep.subr.bf16.mxu0 %v5131
    %6116 = vmatpush2.bf16.msra.mxu0 %v5130
    %6117 = vmatprep.subr.bf16.mxu0 %v5124
    %6118 = vmatpush2.bf16.msra.mxu0 %v5123
    %6119 = vmatprep.subr.bf16.mxu0 %v5117
    %6120 = vmatpush2.bf16.msra.mxu0 %v5116
    %6121 = vmatprep.mubr.bf16.mxu0 %v2762
    %6122 = vmatmul.mubr.bf16.gmra.mxu0 %v2761
    %v6123 = vpop.f32.mrf.mxu0
    %v6124 = vadd.f32 %v6081, %v6123
    %v6125 = vpop.f32.mrf.mxu0
    %v6126 = vadd.f32 %v6083, %v6125
    %v6127 = vpop.f32.mrf.mxu0
    %v6128 = vadd.f32 %v6085, %v6127
    %v6129 = vpop.f32.mrf.mxu0
    %v6130 = vadd.f32 %v6087, %v6129
    %6131 = vdwg.mxu0
    %6132 = vmatprep.subr.bf16.mxu0 0
    %6133 = vmatpush1.bf16.msra.mxu0 %v4775
    %6134 = vmatprep.subr.bf16.mxu0 0
    %6135 = vmatpush1.bf16.msra.mxu0 %v4768
    %6136 = vmatprep.subr.bf16.mxu0 0
    %6137 = vmatpush1.bf16.msra.mxu0 %v4761
    %6138 = vmatprep.subr.bf16.mxu0 0
    %6139 = vmatpush1.bf16.msra.mxu0 %v4754
    %6140 = vmatprep.subr.bf16.mxu0 0
    %6141 = vmatpush1.bf16.msra.mxu0 %v4747
    %6142 = vmatprep.subr.bf16.mxu0 0
    %6143 = vmatpush1.bf16.msra.mxu0 %v4740
    %6144 = vmatprep.subr.bf16.mxu0 0
    %6145 = vmatpush1.bf16.msra.mxu0 %v4733
    %6146 = vmatprep.subr.bf16.mxu0 0
    %6147 = vmatpush1.bf16.msra.mxu0 %v4726
    %6148 = vmatprep.subr.bf16.mxu0 0
    %6149 = vmatpush2.bf16.msra.mxu0 %v4831
    %6150 = vmatprep.subr.bf16.mxu0 0
    %6151 = vmatpush2.bf16.msra.mxu0 %v4824
    %6152 = vmatprep.subr.bf16.mxu0 0
    %6153 = vmatpush2.bf16.msra.mxu0 %v4817
    %6154 = vmatprep.subr.bf16.mxu0 0
    %6155 = vmatpush2.bf16.msra.mxu0 %v4810
    %6156 = vmatprep.subr.bf16.mxu0 0
    %6157 = vmatpush2.bf16.msra.mxu0 %v4803
    %6158 = vmatprep.subr.bf16.mxu0 0
    %6159 = vmatpush2.bf16.msra.mxu0 %v4796
    %6160 = vmatprep.subr.bf16.mxu0 0
    %6161 = vmatpush2.bf16.msra.mxu0 %v4789
    %6162 = vmatprep.subr.bf16.mxu0 0
    %6163 = vmatpush2.bf16.msra.mxu0 %v4782
    %6164 = vmatprep.mubr.bf16.mxu0 %v2756
    %6165 = vmatmul.mubr.bf16.gmra.mxu0 %v2755
    %v6166 = vpop.f32.mrf.mxu0
    %v6167 = vadd.f32 %v3304, %v6166
    %v6168 = vpop.f32.mrf.mxu0
    %v6169 = vpop.f32.mrf.mxu0
    %v6170 = vadd.f32 %v3304, %v6169
    %v6171 = vpop.f32.mrf.mxu0
    %6172 = vdwg.mxu0
    %6173 = vmatprep.subr.bf16.mxu0 0
    %6174 = vmatpush1.bf16.msra.mxu0 %v4887
    %6175 = vmatprep.subr.bf16.mxu0 0
    %6176 = vmatpush1.bf16.msra.mxu0 %v4880
    %6177 = vmatprep.subr.bf16.mxu0 0
    %6178 = vmatpush1.bf16.msra.mxu0 %v4873
    %6179 = vmatprep.subr.bf16.mxu0 0
    %6180 = vmatpush1.bf16.msra.mxu0 %v4866
    %6181 = vmatprep.subr.bf16.mxu0 0
    %6182 = vmatpush1.bf16.msra.mxu0 %v4859
    %6183 = vmatprep.subr.bf16.mxu0 0
    %6184 = vmatpush1.bf16.msra.mxu0 %v4852
    %6185 = vmatprep.subr.bf16.mxu0 0
    %6186 = vmatpush1.bf16.msra.mxu0 %v4845
    %6187 = vmatprep.subr.bf16.mxu0 0
    %6188 = vmatpush1.bf16.msra.mxu0 %v4838
    %6189 = vmatprep.subr.bf16.mxu0 0
    %6190 = vmatpush2.bf16.msra.mxu0 %v4943
    %6191 = vmatprep.subr.bf16.mxu0 0
    %6192 = vmatpush2.bf16.msra.mxu0 %v4936
    %6193 = vmatprep.subr.bf16.mxu0 0
    %6194 = vmatpush2.bf16.msra.mxu0 %v4929
    %6195 = vmatprep.subr.bf16.mxu0 0
    %6196 = vmatpush2.bf16.msra.mxu0 %v4922
    %6197 = vmatprep.subr.bf16.mxu0 0
    %6198 = vmatpush2.bf16.msra.mxu0 %v4915
    %6199 = vmatprep.subr.bf16.mxu0 0
    %6200 = vmatpush2.bf16.msra.mxu0 %v4908
    %6201 = vmatprep.subr.bf16.mxu0 0
    %6202 = vmatpush2.bf16.msra.mxu0 %v4901
    %6203 = vmatprep.subr.bf16.mxu0 0
    %6204 = vmatpush2.bf16.msra.mxu0 %v4894
    %6205 = vmatprep.mubr.bf16.mxu0 %v2758
    %6206 = vmatmul.mubr.bf16.gmra.mxu0 %v2757
    %v6207 = vpop.f32.mrf.mxu0
    %v6208 = vadd.f32 %v6167, %v6207
    %v6209 = vpop.f32.mrf.mxu0
    %v6210 = vpop.f32.mrf.mxu0
    %v6211 = vadd.f32 %v6170, %v6210
    %v6212 = vpop.f32.mrf.mxu0
    %6213 = vdwg.mxu0
    %6214 = vmatprep.subr.bf16.mxu0 0
    %6215 = vmatpush1.bf16.msra.mxu0 %v4999
    %6216 = vmatprep.subr.bf16.mxu0 0
    %6217 = vmatpush1.bf16.msra.mxu0 %v4992
    %6218 = vmatprep.subr.bf16.mxu0 0
    %6219 = vmatpush1.bf16.msra.mxu0 %v4985
    %6220 = vmatprep.subr.bf16.mxu0 0
    %6221 = vmatpush1.bf16.msra.mxu0 %v4978
    %6222 = vmatprep.subr.bf16.mxu0 0
    %6223 = vmatpush1.bf16.msra.mxu0 %v4971
    %6224 = vmatprep.subr.bf16.mxu0 0
    %6225 = vmatpush1.bf16.msra.mxu0 %v4964
    %6226 = vmatprep.subr.bf16.mxu0 0
    %6227 = vmatpush1.bf16.msra.mxu0 %v4957
    %6228 = vmatprep.subr.bf16.mxu0 0
    %6229 = vmatpush1.bf16.msra.mxu0 %v4950
    %6230 = vmatprep.subr.bf16.mxu0 0
    %6231 = vmatpush2.bf16.msra.mxu0 %v5055
    %6232 = vmatprep.subr.bf16.mxu0 0
    %6233 = vmatpush2.bf16.msra.mxu0 %v5048
    %6234 = vmatprep.subr.bf16.mxu0 0
    %6235 = vmatpush2.bf16.msra.mxu0 %v5041
    %6236 = vmatprep.subr.bf16.mxu0 0
    %6237 = vmatpush2.bf16.msra.mxu0 %v5034
    %6238 = vmatprep.subr.bf16.mxu0 0
    %6239 = vmatpush2.bf16.msra.mxu0 %v5027
    %6240 = vmatprep.subr.bf16.mxu0 0
    %6241 = vmatpush2.bf16.msra.mxu0 %v5020
    %6242 = vmatprep.subr.bf16.mxu0 0
    %6243 = vmatpush2.bf16.msra.mxu0 %v5013
    %6244 = vmatprep.subr.bf16.mxu0 0
    %6245 = vmatpush2.bf16.msra.mxu0 %v5006
    %6246 = vmatprep.mubr.bf16.mxu0 %v2760
    %6247 = vmatmul.mubr.bf16.gmra.mxu0 %v2759
    %v6248 = vpop.f32.mrf.mxu0
    %v6249 = vadd.f32 %v6208, %v6248
    %v6250 = vpop.f32.mrf.mxu0
    %v6251 = vpop.f32.mrf.mxu0
    %v6252 = vadd.f32 %v6211, %v6251
    %v6253 = vpop.f32.mrf.mxu0
    %6254 = vdwg.mxu0
    %6255 = vmatprep.subr.bf16.mxu0 0
    %6256 = vmatpush1.bf16.msra.mxu0 %v5111
    %6257 = vmatprep.subr.bf16.mxu0 0
    %6258 = vmatpush1.bf16.msra.mxu0 %v5104
    %6259 = vmatprep.subr.bf16.mxu0 0
    %6260 = vmatpush1.bf16.msra.mxu0 %v5097
    %6261 = vmatprep.subr.bf16.mxu0 0
    %6262 = vmatpush1.bf16.msra.mxu0 %v5090
    %6263 = vmatprep.subr.bf16.mxu0 0
    %6264 = vmatpush1.bf16.msra.mxu0 %v5083
    %6265 = vmatprep.subr.bf16.mxu0 0
    %6266 = vmatpush1.bf16.msra.mxu0 %v5076
    %6267 = vmatprep.subr.bf16.mxu0 0
    %6268 = vmatpush1.bf16.msra.mxu0 %v5069
    %6269 = vmatprep.subr.bf16.mxu0 0
    %6270 = vmatpush1.bf16.msra.mxu0 %v5062
    %6271 = vmatprep.subr.bf16.mxu0 0
    %6272 = vmatpush2.bf16.msra.mxu0 %v5167
    %6273 = vmatprep.subr.bf16.mxu0 0
    %6274 = vmatpush2.bf16.msra.mxu0 %v5160
    %6275 = vmatprep.subr.bf16.mxu0 0
    %6276 = vmatpush2.bf16.msra.mxu0 %v5153
    %6277 = vmatprep.subr.bf16.mxu0 0
    %6278 = vmatpush2.bf16.msra.mxu0 %v5146
    %6279 = vmatprep.subr.bf16.mxu0 0
    %6280 = vmatpush2.bf16.msra.mxu0 %v5139
    %6281 = vmatprep.subr.bf16.mxu0 0
    %6282 = vmatpush2.bf16.msra.mxu0 %v5132
    %6283 = vmatprep.subr.bf16.mxu0 0
    %6284 = vmatpush2.bf16.msra.mxu0 %v5125
    %6285 = vmatprep.subr.bf16.mxu0 0
    %6286 = vmatpush2.bf16.msra.mxu0 %v5118
    %6287 = vmatprep.mubr.bf16.mxu0 %v2762
    %6288 = vmatmul.mubr.bf16.gmra.mxu0 %v2761
    %v6289 = vpop.f32.mrf.mxu0
    %v6290 = vadd.f32 %v6249, %v6289
    %v6291 = vpop.f32.mrf.mxu0
    %v6292 = vpop.f32.mrf.mxu0
    %v6293 = vadd.f32 %v6252, %v6292
    %v6294 = vpop.f32.mrf.mxu0
    %6295 = vdwg.mxu0
    %v6296 = vtanh.pop %v5780
    %v6297 = vtanh.pop %v5782
    %v6298 = vtanh.pop %v5952
    %v6299 = vtanh.pop %v5954
    %v6300 = vtanh.pop %v6124
    %v6301 = vtanh.pop %v6126
    %v6302 = vtanh.pop %v6290
    %v6303 = vtanh.pop %v5784
    %v6304 = vtanh.pop %v5786
    %v6305 = vtanh.pop %v5956
    %v6306 = vtanh.pop %v5958
    %v6307 = vtanh.pop %v6128
    %v6308 = vtanh.pop %v6130
    %v6309 = vtanh.pop %v6293
    %v6310 = vpack.c.bf16 %v6303, %v6296
    %v6311 = vpack.c.bf16 %v6304, %v6297
    %v6312 = vpack.c.bf16 %v6305, %v6298
    %v6313 = vpack.c.bf16 %v6306, %v6299
    %v6314 = vpack.c.bf16 %v6307, %v6300
    %v6315 = vpack.c.bf16 %v6308, %v6301
    %v6316 = vpack.c.bf16 %v6309, %v6302
    %v6324 = vunpack.c.l.b16 %v6310
    %v6325 = vunpack.c.l.b16 %v6311
    %v6326 = vunpack.c.l.b16 %v6312
    %v6327 = vunpack.c.l.b16 %v6313
    %v6328 = vunpack.c.l.b16 %v6314
    %v6329 = vunpack.c.l.b16 %v6315
    %v6330 = vunpack.c.l.b16 %v6316
    %v6331 = vunpack.c.h.b16 %v6310
    %v6332 = vunpack.c.h.b16 %v6311
    %v6333 = vunpack.c.h.b16 %v6312
    %v6334 = vunpack.c.h.b16 %v6313
    %v6335 = vunpack.c.h.b16 %v6314
    %v6336 = vunpack.c.h.b16 %v6315
    %v6337 = vunpack.c.h.b16 %v6316
    %v6338 = vpack.c.b16 %v6325, %v6324
    %v6339 = vpack.c.b16 %v6327, %v6326
    %v6340 = vpack.c.b16 %v6329, %v6328
    %v6341 = vpack.c.b16 %v6330, %v6330
    %v6342 = vpack.c.b16 %v6332, %v6331
    %v6343 = vpack.c.b16 %v6334, %v6333
    %v6344 = vpack.c.b16 %v6336, %v6335
    %v6345 = vpack.c.b16 %v6337, %v6337
    %6354 = vst [vmem:[#allocation17] sm:$0xff] %v6338
    %6355 = vst [vmem:[#allocation17 + $0x8] sm:$0xff] %v6339
    %6356 = vst [vmem:[#allocation17 + $0x10] sm:$0xff] %v6340
    %6357 = vst [vmem:[#allocation17 + $0x18] sm:$0xf] %v6341
    %6358 = vst [vmem:[#allocation17 + $0x1c] sm:$0xff] %v6342
    %6359 = vst [vmem:[#allocation17 + $0x24] sm:$0xff] %v6343
    %6360 = vst [vmem:[#allocation17 + $0x2c] sm:$0xff] %v6344
    %6361 = vst [vmem:[#allocation17 + $0x34] sm:$0xf] %v6345
    // Predicated region
    $region74: #{tpu_custom_call.1} parent=1 // pred_check
      _
    $region75: #{tpu_custom_call.1} parent=1 // pred_check_branch
      %6363 = sbr.rel (0) target = $region77
    $region76: #{tpu_custom_call.1} parent=1 // pred_region
      %s6365 = ssub.s32 896, 896
      %6366 = vsyncadd [#allocation4], %s6365
      %s6367 = sshll.u32 [#allocation17], 4
      %s6368 = int_to_ptr.vmem [resolvable:$true] %s6367
      %6373 = dma.vmem_to_hbm [thread:$0]  %s6368, 896, %s9, [#allocation4], 448, 448, 28
    $region77: #{tpu_custom_call.1} parent=1 // pred_fallthru
      _
    // Predicated region
    $region78: #{tpu_custom_call.1} parent=1 // pred_check
      _
    $region79: #{tpu_custom_call.1} parent=1 // pred_check_branch
      %6375 = sbr.rel (0) target = $region81
    $region80: #{tpu_custom_call.1} parent=1 // pred_region
      %6376 = dma.done [#allocation4], 896
    $region81: #{tpu_custom_call.1} parent=1 // pred_fallthru
      _
    %6377 = vsyncpa [#allocation3], 1
    %6378 = vsyncpa [#allocation6], 1
    %6379 = vsyncpa [#allocation9], 1
    %6380 = vsyncpa [#allocation12], 1
    %6381 = vsyncpa [#allocation15], 1
    %6382 = vsyncpa [#allocation4], 1

</llo_original>
